<compile_context>
chip_gen: v7x
topology: tpu7x:2x2x1
jax: 0.10.0
libtpu: 0.0.40
codegen_flags: <defaults>
</compile_context>

<pallas_src>
import math
from functools import partial

import jax
import jax.numpy as jnp
from jax.experimental import pallas as pl
from jax.experimental.pallas import tpu as pltpu

# ----- config (small, lane-dense) ---------------------------------------------
B, T, C = 2, 16, 128          # batch, seq len, n_embd (C multiple of 128)
N_HEAD = 4                    # head_dim D = C // N_HEAD = 32
LN_EPS = 1e-5                 # torch.nn.LayerNorm default eps


# ----- in-kernel helpers (f32) -------------------------------------------------
def _layernorm(x, w, b):
    # one-pass: independent sum / sum-of-squares reductions (overlap on XLU)
    n = x.shape[-1]
    s1 = jnp.sum(x, axis=-1, keepdims=True)
    s2 = jnp.sum(x * x, axis=-1, keepdims=True)
    mu = s1 * (1.0 / n)
    var = s2 * (1.0 / n) - mu * mu
    inv = jax.lax.rsqrt(var + LN_EPS)
    return (x - mu) * inv * w + b


def _gelu_tanh(x):
    # nn.GELU(approximate='tanh')
    c = math.sqrt(2.0 / math.pi)
    return 0.5 * x * (1.0 + jnp.tanh(c * (x + 0.044715 * x * x * x)))


# ----- Pallas kernel: one batch element per grid step ---------------------------
def block_kernel(x_ref,
                 ln1w_ref, ln1b_ref,
                 wqkv_ref, bqkv_ref,
                 wpr_ref, bpr_ref,
                 ln2w_ref, ln2b_ref,
                 wfc_ref, bfc_ref, wp2_ref, bp2_ref,
                 o_ref, *, n_head):
    _, t, c = x_ref.shape
    h = n_head
    d = c // h
    scale = 1.0 / math.sqrt(d)
    bf16, f32 = jnp.bfloat16, jnp.float32

    x = x_ref[...].reshape(t, c)                                  # (T, C) f32 residual

    # ---------------- attention branch ----------------
    h1 = _layernorm(x, ln1w_ref[...], ln1b_ref[...])              # (T, C) f32
    # fused QKV projection: one lane-dense (T,C)@(C,3C) MXU matmul
    qkv = jnp.dot(h1.astype(bf16), wqkv_ref[...],
                  preferred_element_type=f32) + bqkv_ref[...]     # (T, 3C) f32

    # per-head views, cast to bf16 once
    q = qkv[:, 0 * c:1 * c].astype(bf16).reshape(t, h, d).transpose(1, 0, 2)  # (H,T,D)
    k = qkv[:, 1 * c:2 * c].astype(bf16).reshape(t, h, d).transpose(1, 0, 2)
    v = qkv[:, 2 * c:3 * c].astype(bf16).reshape(t, h, d).transpose(1, 0, 2)

    s = jnp.einsum('hqd,hkd->hqk', q, k,
                   preferred_element_type=f32) * scale            # (H, T, T) f32

    # causal additive mask, generated in-kernel (no HBM traffic)
    row = jax.lax.broadcasted_iota(jnp.int32, (t, t), 0)
    col = jax.lax.broadcasted_iota(jnp.int32, (t, t), 1)
    mask = jnp.where(col <= row, 0.0, -1e30).astype(f32)          # (T, T)
    s = s + mask[None]

    m = jnp.max(s, axis=-1, keepdims=True)
    p = jnp.exp(s - m)
    denom = jnp.sum(p, axis=-1, keepdims=True)
    p = p * pl.reciprocal(denom, approx=True)                     # EUP vrcp

    y = jnp.einsum('hqk,hkd->hqd', p.astype(bf16), v,
                   preferred_element_type=f32)                    # (H, T, D) f32
    y = y.transpose(1, 0, 2).reshape(t, c)                        # (T, C)

    # fused output projection: single K=C MXU matmul
    attn = jnp.dot(y.astype(bf16), wpr_ref[...],
                   preferred_element_type=f32) + bpr_ref[...]     # (T, C) f32

    x = x + attn                                                  # residual 1

    # ---------------- MLP branch ----------------
    h2 = _layernorm(x, ln2w_ref[...], ln2b_ref[...])
    f = jnp.dot(h2.astype(bf16), wfc_ref[...],
                preferred_element_type=f32) + bfc_ref[...]        # (T, 4C) f32
    g = _gelu_tanh(f)
    mo = jnp.dot(g.astype(bf16), wp2_ref[...],
                 preferred_element_type=f32) + bp2_ref[...]       # (T, C) f32

    out = x + mo                                                  # residual 2
    o_ref[...] = out.reshape(1, t, c).astype(o_ref.dtype)


# ----- wrapper ------------------------------------------------------------------
def gpt_block(x, params, n_head=N_HEAD):
    (ln1w, ln1b, wqkv, bqkv, wpr, bpr, ln2w, ln2b, wfc, bfc, wp2, bp2) = params
    b, t, c = x.shape
    f32, bf16 = jnp.float32, jnp.bfloat16

    inputs = (x,
              ln1w.reshape(1, c).astype(f32), ln1b.reshape(1, c).astype(f32),
              wqkv.astype(bf16), bqkv.reshape(1, 3 * c).astype(f32),
              wpr.astype(bf16), bpr.reshape(1, c).astype(f32),
              ln2w.reshape(1, c).astype(f32), ln2b.reshape(1, c).astype(f32),
              wfc.astype(bf16), bfc.reshape(1, 4 * c).astype(f32),
              wp2.astype(bf16), bp2.reshape(1, c).astype(f32))

    def const_spec(shape):                  # whole array resident, same block every step
        nd = len(shape)
        return pl.BlockSpec(shape, lambda i, _nd=nd: (0,) * _nd)

    in_specs = ([pl.BlockSpec((1, t, c), lambda i: (i, 0, 0))]
                + [const_spec(a.shape) for a in inputs[1:]])
    out_spec = pl.BlockSpec((1, t, c), lambda i: (i, 0, 0))

    return pl.pallas_call(
        partial(block_kernel, n_head=n_head),
        out_shape=jax.ShapeDtypeStruct((b, t, c), x.dtype),
        grid_spec=pltpu.PrefetchScalarGridSpec(
            num_scalar_prefetch=0,
            grid=(b,),                       # batch = parallel grid axis (2 TCs on v7x)
            in_specs=in_specs,
            out_specs=out_spec,
        ),
        compiler_params=pltpu.CompilerParams(
            dimension_semantics=("parallel",)),
    )(*inputs)


# ----- pure-JAX reference (same math, f32 throughout) ----------------------------
def gpt_block_ref(x, params):
    (ln1w, ln1b, wqkv, bqkv, wpr, bpr, ln2w, ln2b, wfc, bfc, wp2, bp2) = params
    b, t, c = x.shape
    d = c // N_HEAD

    def ln(v, w, bb):
        mu = jnp.mean(v, axis=-1, keepdims=True)
        var = jnp.mean((v - mu) ** 2, axis=-1, keepdims=True)
        return (v - mu) / jnp.sqrt(var + LN_EPS) * w + bb

    hh = ln(x, ln1w, ln1b)
    qkv = hh @ wqkv + bqkv
    q, k, v = jnp.split(qkv, 3, axis=-1)
    q = q.reshape(b, t, N_HEAD, d).transpose(0, 2, 1, 3)
    k = k.reshape(b, t, N_HEAD, d).transpose(0, 2, 1, 3)
    v = v.reshape(b, t, N_HEAD, d).transpose(0, 2, 1, 3)
    s = jnp.einsum("bhqd,bhkd->bhqk", q, k) / math.sqrt(d)
    m = jnp.tril(jnp.ones((t, t), dtype=bool))
    s = jnp.where(m, s, -jnp.inf)
    p = jax.nn.softmax(s, axis=-1)
    y = jnp.einsum("bhqk,bhkd->bhqd", p, v)
    y = y.transpose(0, 2, 1, 3).reshape(b, t, c)
    x = x + (y @ wpr + bpr)

    h2 = ln(x, ln2w, ln2b)
    f = h2 @ wfc + bfc
    g = 0.5 * f * (1.0 + jnp.tanh(math.sqrt(2.0 / math.pi) * (f + 0.044715 * f ** 3)))
    return x + (g @ wp2 + bp2)


# ----- main ----------------------------------------------------------------------
if __name__ == "__main__":
    key = jax.random.PRNGKey(0)
    ks = jax.random.split(key, 8)

    # deterministic synthetic params (nanoGPT-style 0.02 init, zero biases)
    ln1w = jnp.ones((C,), jnp.float32)
    ln1b = jnp.zeros((C,), jnp.float32)
    wqkv = 0.02 * jax.random.normal(ks[0], (C, 3 * C), jnp.float32)
    bqkv = jnp.zeros((3 * C,), jnp.float32)
    wpr = 0.02 * jax.random.normal(ks[1], (C, C), jnp.float32)
    bpr = jnp.zeros((C,), jnp.float32)
    ln2w = jnp.ones((C,), jnp.float32)
    ln2b = jnp.zeros((C,), jnp.float32)
    wfc = 0.02 * jax.random.normal(ks[2], (C, 4 * C), jnp.float32)
    bfc = jnp.zeros((4 * C,), jnp.float32)
    wp2 = 0.02 * jax.random.normal(ks[3], (4 * C, C), jnp.float32)
    bp2 = jnp.zeros((C,), jnp.float32)
    params = (ln1w, ln1b, wqkv, bqkv, wpr, bpr, ln2w, ln2b, wfc, bfc, wp2, bp2)

    x = jax.random.normal(ks[4], (B, T, C), jnp.float32)

    out = jax.block_until_ready(gpt_block(x, params))
    ref = jax.block_until_ready(gpt_block_ref(x, params))

    if not bool(jnp.allclose(out, ref, atol=5e-2, rtol=5e-2)):
        raise AssertionError("Pallas block output mismatch vs JAX reference")

    print("KERNEL_OK")
</pallas_src>

<mosaic_0001>
module attributes {stable_mosaic.version = 11 : i64} {
  func.func @block_kernel(%arg0: i32, %arg1: memref<1x16x128xf32, #tpu.memory_space<vmem>>, %arg2: memref<1x128xf32, #tpu.memory_space<vmem>>, %arg3: memref<1x128xf32, #tpu.memory_space<vmem>>, %arg4: memref<128x384xbf16, #tpu.memory_space<vmem>>, %arg5: memref<1x384xf32, #tpu.memory_space<vmem>>, %arg6: memref<128x128xbf16, #tpu.memory_space<vmem>>, %arg7: memref<1x128xf32, #tpu.memory_space<vmem>>, %arg8: memref<1x128xf32, #tpu.memory_space<vmem>>, %arg9: memref<1x128xf32, #tpu.memory_space<vmem>>, %arg10: memref<128x512xbf16, #tpu.memory_space<vmem>>, %arg11: memref<1x512xf32, #tpu.memory_space<vmem>>, %arg12: memref<512x128xbf16, #tpu.memory_space<vmem>>, %arg13: memref<1x128xf32, #tpu.memory_space<vmem>>, %arg14: memref<1x16x128xf32, #tpu.memory_space<vmem>>) attributes {dimension_semantics = [#tpu.dimension_semantics<parallel>], iteration_bounds = array<i64: 2>, scalar_prefetch = 0 : i64, scratch_operands = 0 : i64, tpu.core_type = #tpu.core_type<tc>, window_params = [{transform_indices = @transform_0, window_bounds = array<i64: 1, 16, 128>}, {pipeline_mode = #tpu.pipeline_mode<synchronous>, transform_indices = @transform_1, window_bounds = array<i64: 1, 128>}, {pipeline_mode = #tpu.pipeline_mode<synchronous>, transform_indices = @transform_2, window_bounds = array<i64: 1, 128>}, {pipeline_mode = #tpu.pipeline_mode<synchronous>, transform_indices = @transform_3, window_bounds = array<i64: 128, 384>}, {pipeline_mode = #tpu.pipeline_mode<synchronous>, transform_indices = @transform_4, window_bounds = array<i64: 1, 384>}, {pipeline_mode = #tpu.pipeline_mode<synchronous>, transform_indices = @transform_5, window_bounds = array<i64: 128, 128>}, {pipeline_mode = #tpu.pipeline_mode<synchronous>, transform_indices = @transform_6, window_bounds = array<i64: 1, 128>}, {pipeline_mode = #tpu.pipeline_mode<synchronous>, transform_indices = @transform_7, window_bounds = array<i64: 1, 128>}, {pipeline_mode = #tpu.pipeline_mode<synchronous>, transform_indices = @transform_8, window_bounds = array<i64: 1, 128>}, {pipeline_mode = #tpu.pipeline_mode<synchronous>, transform_indices = @transform_9, window_bounds = array<i64: 128, 512>}, {pipeline_mode = #tpu.pipeline_mode<synchronous>, transform_indices = @transform_10, window_bounds = array<i64: 1, 512>}, {pipeline_mode = #tpu.pipeline_mode<synchronous>, transform_indices = @transform_11, window_bounds = array<i64: 512, 128>}, {pipeline_mode = #tpu.pipeline_mode<synchronous>, transform_indices = @transform_12, window_bounds = array<i64: 1, 128>}, {transform_indices = @transform_13, window_bounds = array<i64: 1, 16, 128>}]} {
    %c0 = arith.constant 0 : index
    %c0_0 = arith.constant 0 : index
    %c0_1 = arith.constant 0 : index
    %0 = vector.load %arg1[%c0, %c0_0, %c0_1] : memref<1x16x128xf32, #tpu.memory_space<vmem>>, vector<1x16x128xf32>
    %1 = vector.shape_cast %0 : vector<1x16x128xf32> to vector<16x128xf32>
    %c0_2 = arith.constant 0 : index
    %c0_3 = arith.constant 0 : index
    %2 = vector.load %arg2[%c0_2, %c0_3] : memref<1x128xf32, #tpu.memory_space<vmem>>, vector<1x128xf32>
    %c0_4 = arith.constant 0 : index
    %c0_5 = arith.constant 0 : index
    %3 = vector.load %arg3[%c0_4, %c0_5] : memref<1x128xf32, #tpu.memory_space<vmem>>, vector<1x128xf32>
    %cst = arith.constant dense<0.000000e+00> : vector<16xf32>
    %4 = vector.multi_reduction <add>, %1, %cst [1] : vector<16x128xf32> to vector<16xf32>
    %5 = vector.shape_cast %4 : vector<16xf32> to vector<16x1xf32>
    %6 = arith.mulf %1, %1 : vector<16x128xf32>
    %cst_6 = arith.constant dense<0.000000e+00> : vector<16xf32>
    %7 = vector.multi_reduction <add>, %6, %cst_6 [1] : vector<16x128xf32> to vector<16xf32>
    %8 = vector.shape_cast %7 : vector<16xf32> to vector<16x1xf32>
    %cst_7 = arith.constant 7.812500e-03 : f32
    %9 = vector.broadcast %cst_7 : f32 to vector<16x1xf32>
    %10 = arith.mulf %5, %9 : vector<16x1xf32>
    %cst_8 = arith.constant 7.812500e-03 : f32
    %11 = vector.broadcast %cst_8 : f32 to vector<16x1xf32>
    %12 = arith.mulf %8, %11 : vector<16x1xf32>
    %13 = arith.mulf %10, %10 : vector<16x1xf32>
    %14 = arith.subf %12, %13 : vector<16x1xf32>
    %cst_9 = arith.constant 9.99999974E-6 : f32
    %15 = vector.broadcast %cst_9 : f32 to vector<16x1xf32>
    %16 = arith.addf %14, %15 : vector<16x1xf32>
    %17 = math.rsqrt %16 : vector<16x1xf32>
    %18 = vector.broadcast %10 : vector<16x1xf32> to vector<16x128xf32>
    %19 = arith.subf %1, %18 : vector<16x128xf32>
    %20 = vector.broadcast %17 : vector<16x1xf32> to vector<16x128xf32>
    %21 = arith.mulf %19, %20 : vector<16x128xf32>
    %22 = vector.broadcast %2 : vector<1x128xf32> to vector<16x128xf32>
    %23 = arith.mulf %21, %22 : vector<16x128xf32>
    %24 = vector.broadcast %3 : vector<1x128xf32> to vector<16x128xf32>
    %25 = arith.addf %23, %24 : vector<16x128xf32>
    %26 = arith.truncf %25 : vector<16x128xf32> to vector<16x128xbf16>
    %c0_10 = arith.constant 0 : index
    %c0_11 = arith.constant 0 : index
    %27 = vector.load %arg4[%c0_10, %c0_11] : memref<128x384xbf16, #tpu.memory_space<vmem>>, vector<128x384xbf16>
    %cst_12 = arith.constant dense<0.000000e+00> : vector<16x384xf32>
    %28 = tpu.matmul %26, %27, %cst_12 {dimension_numbers = #tpu.dot_dimension_numbers<[1], [0], [0], [1], [0, 0, 1, 1], [], []>} : vector<16x128xbf16>, vector<128x384xbf16>, vector<16x384xf32> -> vector<16x384xf32>
    %c0_13 = arith.constant 0 : index
    %c0_14 = arith.constant 0 : index
    %29 = vector.load %arg5[%c0_13, %c0_14] : memref<1x384xf32, #tpu.memory_space<vmem>>, vector<1x384xf32>
    %30 = vector.broadcast %29 : vector<1x384xf32> to vector<16x384xf32>
    %31 = arith.addf %28, %30 : vector<16x384xf32>
    %32 = vector.extract_strided_slice %31 {offsets = [0, 0], sizes = [16, 128], strides = [1, 1]} : vector<16x384xf32> to vector<16x128xf32>
    %33 = arith.truncf %32 : vector<16x128xf32> to vector<16x128xbf16>
    %34 = vector.shape_cast %33 : vector<16x128xbf16> to vector<16x4x32xbf16>
    %35 = tpu.transpose %34, [1, 0, 2] : vector<16x4x32xbf16> -> vector<4x16x32xbf16>
    %36 = vector.extract_strided_slice %31 {offsets = [0, 128], sizes = [16, 128], strides = [1, 1]} : vector<16x384xf32> to vector<16x128xf32>
    %37 = arith.truncf %36 : vector<16x128xf32> to vector<16x128xbf16>
    %38 = vector.shape_cast %37 : vector<16x128xbf16> to vector<16x4x32xbf16>
    %39 = tpu.transpose %38, [1, 0, 2] : vector<16x4x32xbf16> -> vector<4x16x32xbf16>
    %40 = vector.extract_strided_slice %31 {offsets = [0, 256], sizes = [16, 128], strides = [1, 1]} : vector<16x384xf32> to vector<16x128xf32>
    %41 = arith.truncf %40 : vector<16x128xf32> to vector<16x128xbf16>
    %42 = vector.shape_cast %41 : vector<16x128xbf16> to vector<16x4x32xbf16>
    %43 = tpu.transpose %42, [1, 0, 2] : vector<16x4x32xbf16> -> vector<4x16x32xbf16>
    "tpu.trace_start"() <{level = 10 : i32, message = "hqd,hkd->hqk"}> : () -> ()
    %cst_15 = arith.constant dense<0.000000e+00> : vector<4x16x16xf32>
    %44 = tpu.matmul %35, %39, %cst_15 {dimension_numbers = #tpu.dot_dimension_numbers<[2], [2], [1], [1], [0, 0, 0, 1, 1, 1], [0], [0]>} : vector<4x16x32xbf16>, vector<4x16x32xbf16>, vector<4x16x16xf32> -> vector<4x16x16xf32>
    "tpu.trace_stop"() : () -> ()
    %cst_16 = arith.constant 0.176776692 : f32
    %45 = vector.broadcast %cst_16 : f32 to vector<4x16x16xf32>
    %46 = arith.mulf %44, %45 : vector<4x16x16xf32>
    %47 = tpu.iota {dimensions = array<i32: 0>} : vector<16x16xi32>
    %48 = tpu.iota {dimensions = array<i32: 1>} : vector<16x16xi32>
    %49 = arith.cmpi sle, %48, %47 : vector<16x16xi32>
    %cst_17 = arith.constant 0.000000e+00 : f32
    %cst_18 = arith.constant -1.000000e+30 : f32
    %50 = vector.broadcast %cst_17 : f32 to vector<16x16xf32>
    %51 = vector.broadcast %cst_18 : f32 to vector<16x16xf32>
    %52 = arith.select %49, %50, %51 : vector<16x16xi1>, vector<16x16xf32>
    %53 = vector.shape_cast %52 : vector<16x16xf32> to vector<1x16x16xf32>
    %54 = vector.broadcast %53 : vector<1x16x16xf32> to vector<4x16x16xf32>
    %55 = arith.addf %46, %54 : vector<4x16x16xf32>
    %cst_19 = arith.constant dense<0xFF800000> : vector<4x16xf32>
    %56 = vector.multi_reduction <maximumf>, %55, %cst_19 [2] : vector<4x16x16xf32> to vector<4x16xf32>
    %57 = vector.shape_cast %56 : vector<4x16xf32> to vector<4x16x1xf32>
    %58 = vector.broadcast %57 : vector<4x16x1xf32> to vector<4x16x16xf32>
    %59 = arith.subf %55, %58 : vector<4x16x16xf32>
    %60 = math.exp %59 : vector<4x16x16xf32>
    %cst_20 = arith.constant dense<0.000000e+00> : vector<4x16xf32>
    %61 = vector.multi_reduction <add>, %60, %cst_20 [2] : vector<4x16x16xf32> to vector<4x16xf32>
    %62 = vector.shape_cast %61 : vector<4x16xf32> to vector<4x16x1xf32>
    %63 = tpu.reciprocal %62 {approx = true} : vector<4x16x1xf32> -> vector<4x16x1xf32>
    %64 = vector.broadcast %63 : vector<4x16x1xf32> to vector<4x16x16xf32>
    %65 = arith.mulf %60, %64 : vector<4x16x16xf32>
    %66 = arith.truncf %65 : vector<4x16x16xf32> to vector<4x16x16xbf16>
    "tpu.trace_start"() <{level = 10 : i32, message = "hqk,hkd->hqd"}> : () -> ()
    %cst_21 = arith.constant dense<0.000000e+00> : vector<4x16x32xf32>
    %67 = tpu.matmul %66, %43, %cst_21 {dimension_numbers = #tpu.dot_dimension_numbers<[2], [1], [1], [2], [0, 0, 0, 1, 1, 2], [0], [0]>} : vector<4x16x16xbf16>, vector<4x16x32xbf16>, vector<4x16x32xf32> -> vector<4x16x32xf32>
    "tpu.trace_stop"() : () -> ()
    %68 = tpu.transpose %67, [1, 0, 2] : vector<4x16x32xf32> -> vector<16x4x32xf32>
    %69 = vector.shape_cast %68 : vector<16x4x32xf32> to vector<16x128xf32>
    %70 = arith.truncf %69 : vector<16x128xf32> to vector<16x128xbf16>
    %c0_22 = arith.constant 0 : index
    %c0_23 = arith.constant 0 : index
    %71 = vector.load %arg6[%c0_22, %c0_23] : memref<128x128xbf16, #tpu.memory_space<vmem>>, vector<128x128xbf16>
    %cst_24 = arith.constant dense<0.000000e+00> : vector<16x128xf32>
    %72 = tpu.matmul %70, %71, %cst_24 {dimension_numbers = #tpu.dot_dimension_numbers<[1], [0], [0], [1], [0, 0, 1, 1], [], []>} : vector<16x128xbf16>, vector<128x128xbf16>, vector<16x128xf32> -> vector<16x128xf32>
    %c0_25 = arith.constant 0 : index
    %c0_26 = arith.constant 0 : index
    %73 = vector.load %arg7[%c0_25, %c0_26] : memref<1x128xf32, #tpu.memory_space<vmem>>, vector<1x128xf32>
    %74 = vector.broadcast %73 : vector<1x128xf32> to vector<16x128xf32>
    %75 = arith.addf %72, %74 : vector<16x128xf32>
    %76 = arith.addf %1, %75 : vector<16x128xf32>
    %c0_27 = arith.constant 0 : index
    %c0_28 = arith.constant 0 : index
    %77 = vector.load %arg8[%c0_27, %c0_28] : memref<1x128xf32, #tpu.memory_space<vmem>>, vector<1x128xf32>
    %c0_29 = arith.constant 0 : index
    %c0_30 = arith.constant 0 : index
    %78 = vector.load %arg9[%c0_29, %c0_30] : memref<1x128xf32, #tpu.memory_space<vmem>>, vector<1x128xf32>
    %cst_31 = arith.constant dense<0.000000e+00> : vector<16xf32>
    %79 = vector.multi_reduction <add>, %76, %cst_31 [1] : vector<16x128xf32> to vector<16xf32>
    %80 = vector.shape_cast %79 : vector<16xf32> to vector<16x1xf32>
    %81 = arith.mulf %76, %76 : vector<16x128xf32>
    %cst_32 = arith.constant dense<0.000000e+00> : vector<16xf32>
    %82 = vector.multi_reduction <add>, %81, %cst_32 [1] : vector<16x128xf32> to vector<16xf32>
    %83 = vector.shape_cast %82 : vector<16xf32> to vector<16x1xf32>
    %cst_33 = arith.constant 7.812500e-03 : f32
    %84 = vector.broadcast %cst_33 : f32 to vector<16x1xf32>
    %85 = arith.mulf %80, %84 : vector<16x1xf32>
    %cst_34 = arith.constant 7.812500e-03 : f32
    %86 = vector.broadcast %cst_34 : f32 to vector<16x1xf32>
    %87 = arith.mulf %83, %86 : vector<16x1xf32>
    %88 = arith.mulf %85, %85 : vector<16x1xf32>
    %89 = arith.subf %87, %88 : vector<16x1xf32>
    %cst_35 = arith.constant 9.99999974E-6 : f32
    %90 = vector.broadcast %cst_35 : f32 to vector<16x1xf32>
    %91 = arith.addf %89, %90 : vector<16x1xf32>
    %92 = math.rsqrt %91 : vector<16x1xf32>
    %93 = vector.broadcast %85 : vector<16x1xf32> to vector<16x128xf32>
    %94 = arith.subf %76, %93 : vector<16x128xf32>
    %95 = vector.broadcast %92 : vector<16x1xf32> to vector<16x128xf32>
    %96 = arith.mulf %94, %95 : vector<16x128xf32>
    %97 = vector.broadcast %77 : vector<1x128xf32> to vector<16x128xf32>
    %98 = arith.mulf %96, %97 : vector<16x128xf32>
    %99 = vector.broadcast %78 : vector<1x128xf32> to vector<16x128xf32>
    %100 = arith.addf %98, %99 : vector<16x128xf32>
    %101 = arith.truncf %100 : vector<16x128xf32> to vector<16x128xbf16>
    %c0_36 = arith.constant 0 : index
    %c0_37 = arith.constant 0 : index
    %102 = vector.load %arg10[%c0_36, %c0_37] : memref<128x512xbf16, #tpu.memory_space<vmem>>, vector<128x512xbf16>
    %cst_38 = arith.constant dense<0.000000e+00> : vector<16x512xf32>
    %103 = tpu.matmul %101, %102, %cst_38 {dimension_numbers = #tpu.dot_dimension_numbers<[1], [0], [0], [1], [0, 0, 1, 1], [], []>} : vector<16x128xbf16>, vector<128x512xbf16>, vector<16x512xf32> -> vector<16x512xf32>
    %c0_39 = arith.constant 0 : index
    %c0_40 = arith.constant 0 : index
    %104 = vector.load %arg11[%c0_39, %c0_40] : memref<1x512xf32, #tpu.memory_space<vmem>>, vector<1x512xf32>
    %105 = vector.broadcast %104 : vector<1x512xf32> to vector<16x512xf32>
    %106 = arith.addf %103, %105 : vector<16x512xf32>
    %cst_41 = arith.constant 5.000000e-01 : f32
    %107 = vector.broadcast %cst_41 : f32 to vector<16x512xf32>
    %108 = arith.mulf %107, %106 : vector<16x512xf32>
    %cst_42 = arith.constant 4.471500e-02 : f32
    %109 = vector.broadcast %cst_42 : f32 to vector<16x512xf32>
    %110 = arith.mulf %109, %106 : vector<16x512xf32>
    %111 = arith.mulf %110, %106 : vector<16x512xf32>
    %112 = arith.mulf %111, %106 : vector<16x512xf32>
    %113 = arith.addf %106, %112 : vector<16x512xf32>
    %cst_43 = arith.constant 0.797884583 : f32
    %114 = vector.broadcast %cst_43 : f32 to vector<16x512xf32>
    %115 = arith.mulf %114, %113 : vector<16x512xf32>
    %116 = math.tanh %115 : vector<16x512xf32>
    %cst_44 = arith.constant 1.000000e+00 : f32
    %117 = vector.broadcast %cst_44 : f32 to vector<16x512xf32>
    %118 = arith.addf %117, %116 : vector<16x512xf32>
    %119 = arith.mulf %108, %118 : vector<16x512xf32>
    %120 = arith.truncf %119 : vector<16x512xf32> to vector<16x512xbf16>
    %c0_45 = arith.constant 0 : index
    %c0_46 = arith.constant 0 : index
    %121 = vector.load %arg12[%c0_45, %c0_46] : memref<512x128xbf16, #tpu.memory_space<vmem>>, vector<512x128xbf16>
    %cst_47 = arith.constant dense<0.000000e+00> : vector<16x128xf32>
    %122 = tpu.matmul %120, %121, %cst_47 {dimension_numbers = #tpu.dot_dimension_numbers<[1], [0], [0], [1], [0, 0, 1, 1], [], []>} : vector<16x512xbf16>, vector<512x128xbf16>, vector<16x128xf32> -> vector<16x128xf32>
    %c0_48 = arith.constant 0 : index
    %c0_49 = arith.constant 0 : index
    %123 = vector.load %arg13[%c0_48, %c0_49] : memref<1x128xf32, #tpu.memory_space<vmem>>, vector<1x128xf32>
    %124 = vector.broadcast %123 : vector<1x128xf32> to vector<16x128xf32>
    %125 = arith.addf %122, %124 : vector<16x128xf32>
    %126 = arith.addf %76, %125 : vector<16x128xf32>
    %127 = vector.shape_cast %126 : vector<16x128xf32> to vector<1x16x128xf32>
    %c0_50 = arith.constant 0 : index
    %c0_51 = arith.constant 0 : index
    %c0_52 = arith.constant 0 : index
    %128 = vector.load %arg14[%c0_50, %c0_51, %c0_52] : memref<1x16x128xf32, #tpu.memory_space<vmem>>, vector<1x16x128xf32>
    tpu.vector_store %arg14[%c0_50, %c0_51, %c0_52], %127 {strides = array<i32>} : memref<1x16x128xf32, #tpu.memory_space<vmem>>, vector<1x16x128xf32>,
    return
  }
  func.func @transform_0(%arg0: i32) -> (i32, i32, i32) {
    %c0_i32 = arith.constant 0 : i32
    %c0_i32_0 = arith.constant 0 : i32
    %c0_i32_1 = arith.constant 0 : i32
    return %arg0, %c0_i32, %c0_i32_0 : i32, i32, i32
  }
  func.func @transform_1(%arg0: i32) -> (i32, i32) {
    %c0_i32 = arith.constant 0 : i32
    %c0_i32_0 = arith.constant 0 : i32
    %c0_i32_1 = arith.constant 0 : i32
    return %c0_i32, %c0_i32_0 : i32, i32
  }
  func.func @transform_2(%arg0: i32) -> (i32, i32) {
    %c0_i32 = arith.constant 0 : i32
    %c0_i32_0 = arith.constant 0 : i32
    %c0_i32_1 = arith.constant 0 : i32
    return %c0_i32, %c0_i32_0 : i32, i32
  }
  func.func @transform_3(%arg0: i32) -> (i32, i32) {
    %c0_i32 = arith.constant 0 : i32
    %c0_i32_0 = arith.constant 0 : i32
    %c0_i32_1 = arith.constant 0 : i32
    return %c0_i32, %c0_i32_0 : i32, i32
  }
  func.func @transform_4(%arg0: i32) -> (i32, i32) {
    %c0_i32 = arith.constant 0 : i32
    %c0_i32_0 = arith.constant 0 : i32
    %c0_i32_1 = arith.constant 0 : i32
    return %c0_i32, %c0_i32_0 : i32, i32
  }
  func.func @transform_5(%arg0: i32) -> (i32, i32) {
    %c0_i32 = arith.constant 0 : i32
    %c0_i32_0 = arith.constant 0 : i32
    %c0_i32_1 = arith.constant 0 : i32
    return %c0_i32, %c0_i32_0 : i32, i32
  }
  func.func @transform_6(%arg0: i32) -> (i32, i32) {
    %c0_i32 = arith.constant 0 : i32
    %c0_i32_0 = arith.constant 0 : i32
    %c0_i32_1 = arith.constant 0 : i32
    return %c0_i32, %c0_i32_0 : i32, i32
  }
  func.func @transform_7(%arg0: i32) -> (i32, i32) {
    %c0_i32 = arith.constant 0 : i32
    %c0_i32_0 = arith.constant 0 : i32
    %c0_i32_1 = arith.constant 0 : i32
    return %c0_i32, %c0_i32_0 : i32, i32
  }
  func.func @transform_8(%arg0: i32) -> (i32, i32) {
    %c0_i32 = arith.constant 0 : i32
    %c0_i32_0 = arith.constant 0 : i32
    %c0_i32_1 = arith.constant 0 : i32
    return %c0_i32, %c0_i32_0 : i32, i32
  }
  func.func @transform_9(%arg0: i32) -> (i32, i32) {
    %c0_i32 = arith.constant 0 : i32
    %c0_i32_0 = arith.constant 0 : i32
    %c0_i32_1 = arith.constant 0 : i32
    return %c0_i32, %c0_i32_0 : i32, i32
  }
  func.func @transform_10(%arg0: i32) -> (i32, i32) {
    %c0_i32 = arith.constant 0 : i32
    %c0_i32_0 = arith.constant 0 : i32
    %c0_i32_1 = arith.constant 0 : i32
    return %c0_i32, %c0_i32_0 : i32, i32
  }
  func.func @transform_11(%arg0: i32) -> (i32, i32) {
    %c0_i32 = arith.constant 0 : i32
    %c0_i32_0 = arith.constant 0 : i32
    %c0_i32_1 = arith.constant 0 : i32
    return %c0_i32, %c0_i32_0 : i32, i32
  }
  func.func @transform_12(%arg0: i32) -> (i32, i32) {
    %c0_i32 = arith.constant 0 : i32
    %c0_i32_0 = arith.constant 0 : i32
    %c0_i32_1 = arith.constant 0 : i32
    return %c0_i32, %c0_i32_0 : i32, i32
  }
  func.func @transform_13(%arg0: i32) -> (i32, i32, i32) {
    %c0_i32 = arith.constant 0 : i32
    %c0_i32_0 = arith.constant 0 : i32
    %c0_i32_1 = arith.constant 0 : i32
    return %arg0, %c0_i32, %c0_i32_0 : i32, i32, i32
  }
}

</mosaic_0001>

<llo_original>
// kernel: tpu_custom_call.1
$region0: #{tpu_custom_call.1}
  #allocation0 [shape = 'u32[]', space=smem, size = 0x4, offset = 0x4, fixed_abs, tag = 'smem constant byte address 0x4 - core index']
  #allocation1 [shape = 'u32[144,128]{1,0:T(1,128)}', space=vmem, size = 0x12000, scoped, tag = 'internal scratch']
  %s0 = inlined_call_operand.hbm [shape: f32[2,16,128], index: 0, kind: input, shape index: {}]
  %s1 = inlined_call_operand.hbm [shape: f32[1,128], index: 1, kind: input, shape index: {}]
  %s2 = inlined_call_operand.hbm [shape: f32[1,128], index: 2, kind: input, shape index: {}]
  %s3 = inlined_call_operand.hbm [shape: bf16[128,384], index: 3, kind: input, shape index: {}]
  %s4 = inlined_call_operand.vmem [shape: f32[1,384], index: 4, kind: input, shape index: {}]
  %s5 = inlined_call_operand.hbm [shape: bf16[128,128], index: 5, kind: input, shape index: {}]
  %s6 = inlined_call_operand.vmem [shape: f32[1,128], index: 6, kind: input, shape index: {}]
  %s7 = inlined_call_operand.vmem [shape: f32[1,128], index: 7, kind: input, shape index: {}]
  %s8 = inlined_call_operand.vmem [shape: f32[1,128], index: 8, kind: input, shape index: {}]
  %s9 = inlined_call_operand.hbm [shape: bf16[128,512], index: 9, kind: input, shape index: {}]
  %s10 = inlined_call_operand.vmem [shape: f32[1,512], index: 10, kind: input, shape index: {}]
  %s11 = inlined_call_operand.hbm [shape: bf16[512,128], index: 11, kind: input, shape index: {}]
  %s12 = inlined_call_operand.vmem [shape: f32[1,128], index: 12, kind: input, shape index: {}]
  %s13 = inlined_call_operand.hbm [shape: f32[2,16,128], index: 13, kind: output, shape index: {}]
  %s14 = sld [smem:[#allocation0]]
  $region113: #{tpu_custom_call.1} parent=0
    _
  %s16 = ssub.s32 1, %s14
  %s17 = scalar_select 0, %s16, %s14
  $region1: #{tpu_custom_call.1} parent=0
    #allocation2 [shape = 'u8[16384]{0}', space=vmem, size = 0x4000, scoped, tag = 'input window, operand 0']
    #allocation3 [shape = 's32[2]{0}', space=sflag, size = 0x8, scoped, tag = 'scoped memory for tpu_custom_call.1']
    #allocation4 [shape = 's32[2]{0}', space=sflag, size = 0x8, scoped, tag = 'scoped memory for tpu_custom_call.1']
    #allocation5 [shape = 'u8[512]{0}', space=vmem, size = 0x400, scoped, tag = 'input window, operand 1, single buffered']
    #allocation6 [shape = 's32[1]{0}', space=sflag, size = 0x4, scoped, tag = 'scoped memory for tpu_custom_call.1']
    #allocation7 [shape = 'u8[512]{0}', space=vmem, size = 0x400, scoped, tag = 'input window, operand 2, single buffered']
    #allocation8 [shape = 'u8[98304]{0}', space=vmem, size = 0x18000, scoped, tag = 'input window, operand 3, single buffered']
    #allocation9 [shape = 's32[1]{0}', space=sflag, size = 0x4, scoped, tag = 'scoped memory for tpu_custom_call.1']
    #allocation10 [shape = 'u8[32768]{0}', space=vmem, size = 0x8000, scoped, tag = 'input window, operand 5, single buffered']
    #allocation11 [shape = 'u8[131072]{0}', space=vmem, size = 0x20000, scoped, tag = 'input window, operand 9, single buffered']
    #allocation12 [shape = 's32[1]{0}', space=sflag, size = 0x4, scoped, tag = 'scoped memory for tpu_custom_call.1']
    #allocation13 [shape = 'u8[131072]{0}', space=vmem, size = 0x20000, scoped, tag = 'input window, operand 11, single buffered']
    #allocation14 [shape = 'u8[16384]{0}', space=vmem, size = 0x4000, scoped, tag = 'output window, operand 0']
    %18 = vsyncpa [#allocation3], 0
    %s19 = scalar_lea.sflag [#allocation3], 1
    %20 = vsyncpa %s19, 0
    %21 = vsyncpa [#allocation6], 0
    %22 = vsyncpa [#allocation9], 0
    %23 = vsyncpa [#allocation12], 0
    %24 = vsyncpa [#allocation4], 0
    %s25 = scalar_lea.sflag [#allocation4], 1
    %26 = vsyncpa %s25, 0
    loop: start=0, step=1, limit=4
    $region2: #{tpu_custom_call.1} parent=1 // loop_pre_header
      _
    $region3: #{tpu_custom_call.1} parent=1 // loop_header
      %s28 = sphi 0, %s32
      %p29 = scmp.ge.s32.totalorder %s28, 4
      %s38 = sphi 0, %s40
      %s41 = sphi 0, %s38
      %s42 = sphi 0, %s41
      %s58 = sphi 0, %s42
      %s62 = sphi 0, %s62
      %s64 = sphi 0, %s62
      %s65 = sphi 0, %s64
      %s79 = sphi 0, %s65
      %s83 = sphi 0, %s83
      %s85 = sphi 0, %s83
      %s86 = sphi 0, %s85
      %s100 = sphi 0, %s86
      %s104 = sphi 0, %s104
      %s106 = sphi 0, %s104
      %s107 = sphi 0, %s106
      %s121 = sphi 0, %s107
      %s125 = sphi 0, %s125
      %s127 = sphi 0, %s125
      %s128 = sphi 0, %s127
      %s142 = sphi 0, %s128
      %s146 = sphi 0, %s146
      %s148 = sphi 0, %s146
      %s149 = sphi 0, %s148
      %s163 = sphi 0, %s149
      %s167 = sphi 0, %s167
      %s169 = sphi 0, %s167
      %s170 = sphi 0, %s169
      %s184 = sphi 0, %s170
      %s188 = sphi 0, %s188
      %s190 = sphi 0, %s188
      %s191 = sphi 0, %s190
      %s205 = sphi 0, %s191
      %s209 = sphi 0, %s209
      %s211 = sphi 0, %s209
      %s212 = sphi 0, %s211
      %s226 = sphi 0, %s212
      %s230 = sphi 0, %s230
      %s232 = sphi 0, %s230
      %s233 = sphi 0, %s232
      %s247 = sphi 0, %s233
      %s251 = sphi 0, %s251
      %s253 = sphi 0, %s251
      %s254 = sphi 0, %s253
      %s268 = sphi 0, %s254
      %s272 = sphi 0, %s272
      %s274 = sphi 0, %s272
      %s275 = sphi 0, %s274
      %s289 = sphi 0, %s275
      %s293 = sphi 0, %s293
      %s295 = sphi 0, %s293
      %s296 = sphi 0, %s295
      %s310 = sphi 0, %s296
      %s316 = sphi 0, %s318
      %s319 = sphi 0, %s316
      %s320 = sphi 0, %s319
      %s336 = sphi 0, %s320
    $region4: #{tpu_custom_call.1} parent=1 // loop_header_branch
      %31 = sbr.rel (%p29) target = $region8
    $region5: #{tpu_custom_call.1} parent=1 // loop_body
      %s33 = ssub.s32 %s28, 1
      %s34 = ssub.s32 %s28, 2
      %s35 = sadd.s32 %s28, 1
      %s36 = ssub.s32 %s28, %s35
      %p37 = scmp.eq.s32.totalorder %s36, 0
      %s39 = sadd.s32 %s38, 1
      %s40 = scalar_select %p37, %s38, %s39
      %p43 = pneg %p37
      %p44 = scmp.eq.s32.totalorder %s28, 1
      %p45 = por %p43, %p44
      %p46 = scmp.ne.s32.totalorder %s38, %s41
      %p47 = scmp.eq.s32.totalorder %s28, 0
      %p48 = por %p46, %p47
      %p49 = scmp.ne.s32.totalorder %s38, %s41
      %p50 = scmp.eq.s32.totalorder %s33, 1
      %p51 = por %p49, %p50
      %p52 = scmp.ne.s32.totalorder %s41, %s42
      %p53 = scmp.eq.s32.totalorder %s33, 0
      %p54 = por %p52, %p53
      %p55 = scmp.ne.s32.totalorder %s41, %s42
      %p56 = scmp.eq.s32.totalorder %s34, 1
      %p57 = por %p55, %p56
      %p59 = scmp.ne.s32.totalorder %s42, %s58
      %p60 = scmp.eq.s32.totalorder %s34, 0
      %p61 = por %p59, %p60
      %s63 = sadd.s32 %s62, 1
      %p66 = scmp.eq.s32.totalorder %s28, 1
      %p67 = scmp.ne.s32.totalorder %s62, %s64
      %p68 = scmp.eq.s32.totalorder %s28, 0
      %p69 = por %p67, %p68
      %p70 = scmp.ne.s32.totalorder %s62, %s64
      %p71 = scmp.eq.s32.totalorder %s33, 1
      %p72 = por %p70, %p71
      %p73 = scmp.ne.s32.totalorder %s64, %s65
      %p74 = scmp.eq.s32.totalorder %s33, 0
      %p75 = por %p73, %p74
      %p76 = scmp.ne.s32.totalorder %s64, %s65
      %p77 = scmp.eq.s32.totalorder %s34, 1
      %p78 = por %p76, %p77
      %p80 = scmp.ne.s32.totalorder %s65, %s79
      %p81 = scmp.eq.s32.totalorder %s34, 0
      %p82 = por %p80, %p81
      %s84 = sadd.s32 %s83, 1
      %p87 = scmp.eq.s32.totalorder %s28, 1
      %p88 = scmp.ne.s32.totalorder %s83, %s85
      %p89 = scmp.eq.s32.totalorder %s28, 0
      %p90 = por %p88, %p89
      %p91 = scmp.ne.s32.totalorder %s83, %s85
      %p92 = scmp.eq.s32.totalorder %s33, 1
      %p93 = por %p91, %p92
      %p94 = scmp.ne.s32.totalorder %s85, %s86
      %p95 = scmp.eq.s32.totalorder %s33, 0
      %p96 = por %p94, %p95
      %p97 = scmp.ne.s32.totalorder %s85, %s86
      %p98 = scmp.eq.s32.totalorder %s34, 1
      %p99 = por %p97, %p98
      %p101 = scmp.ne.s32.totalorder %s86, %s100
      %p102 = scmp.eq.s32.totalorder %s34, 0
      %p103 = por %p101, %p102
      %s105 = sadd.s32 %s104, 1
      %p108 = scmp.eq.s32.totalorder %s28, 1
      %p109 = scmp.ne.s32.totalorder %s104, %s106
      %p110 = scmp.eq.s32.totalorder %s28, 0
      %p111 = por %p109, %p110
      %p112 = scmp.ne.s32.totalorder %s104, %s106
      %p113 = scmp.eq.s32.totalorder %s33, 1
      %p114 = por %p112, %p113
      %p115 = scmp.ne.s32.totalorder %s106, %s107
      %p116 = scmp.eq.s32.totalorder %s33, 0
      %p117 = por %p115, %p116
      %p118 = scmp.ne.s32.totalorder %s106, %s107
      %p119 = scmp.eq.s32.totalorder %s34, 1
      %p120 = por %p118, %p119
      %p122 = scmp.ne.s32.totalorder %s107, %s121
      %p123 = scmp.eq.s32.totalorder %s34, 0
      %p124 = por %p122, %p123
      %s126 = sadd.s32 %s125, 1
      %p129 = scmp.eq.s32.totalorder %s28, 1
      %p130 = scmp.ne.s32.totalorder %s125, %s127
      %p131 = scmp.eq.s32.totalorder %s28, 0
      %p132 = por %p130, %p131
      %p133 = scmp.ne.s32.totalorder %s125, %s127
      %p134 = scmp.eq.s32.totalorder %s33, 1
      %p135 = por %p133, %p134
      %p136 = scmp.ne.s32.totalorder %s127, %s128
      %p137 = scmp.eq.s32.totalorder %s33, 0
      %p138 = por %p136, %p137
      %p139 = scmp.ne.s32.totalorder %s127, %s128
      %p140 = scmp.eq.s32.totalorder %s34, 1
      %p141 = por %p139, %p140
      %p143 = scmp.ne.s32.totalorder %s128, %s142
      %p144 = scmp.eq.s32.totalorder %s34, 0
      %p145 = por %p143, %p144
      %s147 = sadd.s32 %s146, 1
      %p150 = scmp.eq.s32.totalorder %s28, 1
      %p151 = scmp.ne.s32.totalorder %s146, %s148
      %p152 = scmp.eq.s32.totalorder %s28, 0
      %p153 = por %p151, %p152
      %p154 = scmp.ne.s32.totalorder %s146, %s148
      %p155 = scmp.eq.s32.totalorder %s33, 1
      %p156 = por %p154, %p155
      %p157 = scmp.ne.s32.totalorder %s148, %s149
      %p158 = scmp.eq.s32.totalorder %s33, 0
      %p159 = por %p157, %p158
      %p160 = scmp.ne.s32.totalorder %s148, %s149
      %p161 = scmp.eq.s32.totalorder %s34, 1
      %p162 = por %p160, %p161
      %p164 = scmp.ne.s32.totalorder %s149, %s163
      %p165 = scmp.eq.s32.totalorder %s34, 0
      %p166 = por %p164, %p165
      %s168 = sadd.s32 %s167, 1
      %p171 = scmp.eq.s32.totalorder %s28, 1
      %p172 = scmp.ne.s32.totalorder %s167, %s169
      %p173 = scmp.eq.s32.totalorder %s28, 0
      %p174 = por %p172, %p173
      %p175 = scmp.ne.s32.totalorder %s167, %s169
      %p176 = scmp.eq.s32.totalorder %s33, 1
      %p177 = por %p175, %p176
      %p178 = scmp.ne.s32.totalorder %s169, %s170
      %p179 = scmp.eq.s32.totalorder %s33, 0
      %p180 = por %p178, %p179
      %p181 = scmp.ne.s32.totalorder %s169, %s170
      %p182 = scmp.eq.s32.totalorder %s34, 1
      %p183 = por %p181, %p182
      %p185 = scmp.ne.s32.totalorder %s170, %s184
      %p186 = scmp.eq.s32.totalorder %s34, 0
      %p187 = por %p185, %p186
      %s189 = sadd.s32 %s188, 1
      %p192 = scmp.eq.s32.totalorder %s28, 1
      %p193 = scmp.ne.s32.totalorder %s188, %s190
      %p194 = scmp.eq.s32.totalorder %s28, 0
      %p195 = por %p193, %p194
      %p196 = scmp.ne.s32.totalorder %s188, %s190
      %p197 = scmp.eq.s32.totalorder %s33, 1
      %p198 = por %p196, %p197
      %p199 = scmp.ne.s32.totalorder %s190, %s191
      %p200 = scmp.eq.s32.totalorder %s33, 0
      %p201 = por %p199, %p200
      %p202 = scmp.ne.s32.totalorder %s190, %s191
      %p203 = scmp.eq.s32.totalorder %s34, 1
      %p204 = por %p202, %p203
      %p206 = scmp.ne.s32.totalorder %s191, %s205
      %p207 = scmp.eq.s32.totalorder %s34, 0
      %p208 = por %p206, %p207
      %s210 = sadd.s32 %s209, 1
      %p213 = scmp.eq.s32.totalorder %s28, 1
      %p214 = scmp.ne.s32.totalorder %s209, %s211
      %p215 = scmp.eq.s32.totalorder %s28, 0
      %p216 = por %p214, %p215
      %p217 = scmp.ne.s32.totalorder %s209, %s211
      %p218 = scmp.eq.s32.totalorder %s33, 1
      %p219 = por %p217, %p218
      %p220 = scmp.ne.s32.totalorder %s211, %s212
      %p221 = scmp.eq.s32.totalorder %s33, 0
      %p222 = por %p220, %p221
      %p223 = scmp.ne.s32.totalorder %s211, %s212
      %p224 = scmp.eq.s32.totalorder %s34, 1
      %p225 = por %p223, %p224
      %p227 = scmp.ne.s32.totalorder %s212, %s226
      %p228 = scmp.eq.s32.totalorder %s34, 0
      %p229 = por %p227, %p228
      %s231 = sadd.s32 %s230, 1
      %p234 = scmp.eq.s32.totalorder %s28, 1
      %p235 = scmp.ne.s32.totalorder %s230, %s232
      %p236 = scmp.eq.s32.totalorder %s28, 0
      %p237 = por %p235, %p236
      %p238 = scmp.ne.s32.totalorder %s230, %s232
      %p239 = scmp.eq.s32.totalorder %s33, 1
      %p240 = por %p238, %p239
      %p241 = scmp.ne.s32.totalorder %s232, %s233
      %p242 = scmp.eq.s32.totalorder %s33, 0
      %p243 = por %p241, %p242
      %p244 = scmp.ne.s32.totalorder %s232, %s233
      %p245 = scmp.eq.s32.totalorder %s34, 1
      %p246 = por %p244, %p245
      %p248 = scmp.ne.s32.totalorder %s233, %s247
      %p249 = scmp.eq.s32.totalorder %s34, 0
      %p250 = por %p248, %p249
      %s252 = sadd.s32 %s251, 1
      %p255 = scmp.eq.s32.totalorder %s28, 1
      %p256 = scmp.ne.s32.totalorder %s251, %s253
      %p257 = scmp.eq.s32.totalorder %s28, 0
      %p258 = por %p256, %p257
      %p259 = scmp.ne.s32.totalorder %s251, %s253
      %p260 = scmp.eq.s32.totalorder %s33, 1
      %p261 = por %p259, %p260
      %p262 = scmp.ne.s32.totalorder %s253, %s254
      %p263 = scmp.eq.s32.totalorder %s33, 0
      %p264 = por %p262, %p263
      %p265 = scmp.ne.s32.totalorder %s253, %s254
      %p266 = scmp.eq.s32.totalorder %s34, 1
      %p267 = por %p265, %p266
      %p269 = scmp.ne.s32.totalorder %s254, %s268
      %p270 = scmp.eq.s32.totalorder %s34, 0
      %p271 = por %p269, %p270
      %s273 = sadd.s32 %s272, 1
      %p276 = scmp.eq.s32.totalorder %s28, 1
      %p277 = scmp.ne.s32.totalorder %s272, %s274
      %p278 = scmp.eq.s32.totalorder %s28, 0
      %p279 = por %p277, %p278
      %p280 = scmp.ne.s32.totalorder %s272, %s274
      %p281 = scmp.eq.s32.totalorder %s33, 1
      %p282 = por %p280, %p281
      %p283 = scmp.ne.s32.totalorder %s274, %s275
      %p284 = scmp.eq.s32.totalorder %s33, 0
      %p285 = por %p283, %p284
      %p286 = scmp.ne.s32.totalorder %s274, %s275
      %p287 = scmp.eq.s32.totalorder %s34, 1
      %p288 = por %p286, %p287
      %p290 = scmp.ne.s32.totalorder %s275, %s289
      %p291 = scmp.eq.s32.totalorder %s34, 0
      %p292 = por %p290, %p291
      %s294 = sadd.s32 %s293, 1
      %p297 = scmp.eq.s32.totalorder %s28, 1
      %p298 = scmp.ne.s32.totalorder %s293, %s295
      %p299 = scmp.eq.s32.totalorder %s28, 0
      %p300 = por %p298, %p299
      %p301 = scmp.ne.s32.totalorder %s293, %s295
      %p302 = scmp.eq.s32.totalorder %s33, 1
      %p303 = por %p301, %p302
      %p304 = scmp.ne.s32.totalorder %s295, %s296
      %p305 = scmp.eq.s32.totalorder %s33, 0
      %p306 = por %p304, %p305
      %p307 = scmp.ne.s32.totalorder %s295, %s296
      %p308 = scmp.eq.s32.totalorder %s34, 1
      %p309 = por %p307, %p308
      %p311 = scmp.ne.s32.totalorder %s296, %s310
      %p312 = scmp.eq.s32.totalorder %s34, 0
      %p313 = por %p311, %p312
      %s314 = ssub.s32 %s28, %s35
      %p315 = scmp.eq.s32.totalorder %s314, 0
      %s317 = sadd.s32 %s316, 1
      %s318 = scalar_select %p315, %s316, %s317
      %p321 = pneg %p315
      %p322 = scmp.eq.s32.totalorder %s28, 1
      %p323 = por %p321, %p322
      %p324 = scmp.ne.s32.totalorder %s316, %s319
      %p325 = scmp.eq.s32.totalorder %s28, 0
      %p326 = por %p324, %p325
      %p327 = scmp.ne.s32.totalorder %s316, %s319
      %p328 = scmp.eq.s32.totalorder %s33, 1
      %p329 = por %p327, %p328
      %p330 = scmp.ne.s32.totalorder %s319, %s320
      %p331 = scmp.eq.s32.totalorder %s33, 0
      %p332 = por %p330, %p331
      %p333 = scmp.ne.s32.totalorder %s319, %s320
      %p334 = scmp.eq.s32.totalorder %s34, 1
      %p335 = por %p333, %p334
      %p337 = scmp.ne.s32.totalorder %s320, %s336
      %p338 = scmp.eq.s32.totalorder %s34, 0
      %p339 = por %p337, %p338
      %p340 = scmp.le.s32.totalorder 1, %s28
      %p341 = scmp.lt.s32.totalorder %s28, 3
      %p342 = pnand %p340, %p341
      %p343 = pneg %p342
      // Predicated region
      $region9: #{tpu_custom_call.1} parent=5 // pred_check
        _
      $region10: #{tpu_custom_call.1} parent=5 // pred_check_branch
        %345 = sbr.rel (%p342) target = $region12
      $region11: #{tpu_custom_call.1} parent=5 // pred_region
        %s346 = ssub.s32 %s28, 1
        // Predicated region
        $region13: #{tpu_custom_call.1} parent=11 // pred_check
          %p347 = pneg %p75
        $region14: #{tpu_custom_call.1} parent=11 // pred_check_branch
          %349 = sbr.rel (%p347) target = $region16
        $region15: #{tpu_custom_call.1} parent=11 // pred_region
          %s351 = ssub.s32 16, 16
          %352 = vsyncadd [#allocation6], %s351
          %s354 = sshll.u32 [#allocation5], 4
          %s355 = int_to_ptr.vmem [resolvable:$true] %s354
          %357 = dma.hbm_to_vmem [thread:$0]  %s1, 16, %s355, [#allocation6]
        $region16: #{tpu_custom_call.1} parent=11 // pred_fallthru
          _
        // Predicated region
        $region17: #{tpu_custom_call.1} parent=11 // pred_check
          %p358 = pneg %p96
        $region18: #{tpu_custom_call.1} parent=11 // pred_check_branch
          %360 = sbr.rel (%p358) target = $region20
        $region19: #{tpu_custom_call.1} parent=11 // pred_region
          %s362 = ssub.s32 16, 16
          %363 = vsyncadd [#allocation6], %s362
          %s365 = sshll.u32 [#allocation7], 4
          %s366 = int_to_ptr.vmem [resolvable:$true] %s365
          %368 = dma.hbm_to_vmem [thread:$0]  %s2, 16, %s366, [#allocation6]
        $region20: #{tpu_custom_call.1} parent=11 // pred_fallthru
          _
        // Predicated region
        $region21: #{tpu_custom_call.1} parent=11 // pred_check
          %p369 = pneg %p117
        $region22: #{tpu_custom_call.1} parent=11 // pred_check_branch
          %371 = sbr.rel (%p369) target = $region24
        $region23: #{tpu_custom_call.1} parent=11 // pred_region
          %s373 = ssub.s32 3072, 3072
          %374 = vsyncadd [#allocation9], %s373
          %s375 = sshll.u32 [#allocation8], 4
          %s376 = int_to_ptr.vmem [resolvable:$true] %s375
          %381 = dma.hbm_to_vmem [thread:$0]  %s3, 3072, %s376, [#allocation9], 192, 192, 12
        $region24: #{tpu_custom_call.1} parent=11 // pred_fallthru
          _
        // Predicated region
        $region25: #{tpu_custom_call.1} parent=11 // pred_check
          %p382 = pneg %p138
        $region26: #{tpu_custom_call.1} parent=11 // pred_check_branch
          %384 = sbr.rel (%p382) target = $region28
        $region27: #{tpu_custom_call.1} parent=11 // pred_region
          _
        $region28: #{tpu_custom_call.1} parent=11 // pred_fallthru
          _
        // Predicated region
        $region29: #{tpu_custom_call.1} parent=11 // pred_check
          %p385 = pneg %p159
        $region30: #{tpu_custom_call.1} parent=11 // pred_check_branch
          %387 = sbr.rel (%p385) target = $region32
        $region31: #{tpu_custom_call.1} parent=11 // pred_region
          %s389 = ssub.s32 1024, 1024
          %390 = vsyncadd [#allocation9], %s389
          %s391 = sshll.u32 [#allocation10], 4
          %s392 = int_to_ptr.vmem [resolvable:$true] %s391
          %397 = dma.hbm_to_vmem [thread:$0]  %s5, 1024, %s392, [#allocation9], 64, 64, 4
        $region32: #{tpu_custom_call.1} parent=11 // pred_fallthru
          _
        // Predicated region
        $region33: #{tpu_custom_call.1} parent=11 // pred_check
          %p398 = pneg %p180
        $region34: #{tpu_custom_call.1} parent=11 // pred_check_branch
          %400 = sbr.rel (%p398) target = $region36
        $region35: #{tpu_custom_call.1} parent=11 // pred_region
          _
        $region36: #{tpu_custom_call.1} parent=11 // pred_fallthru
          _
        // Predicated region
        $region37: #{tpu_custom_call.1} parent=11 // pred_check
          %p401 = pneg %p201
        $region38: #{tpu_custom_call.1} parent=11 // pred_check_branch
          %403 = sbr.rel (%p401) target = $region40
        $region39: #{tpu_custom_call.1} parent=11 // pred_region
          _
        $region40: #{tpu_custom_call.1} parent=11 // pred_fallthru
          _
        // Predicated region
        $region41: #{tpu_custom_call.1} parent=11 // pred_check
          %p404 = pneg %p222
        $region42: #{tpu_custom_call.1} parent=11 // pred_check_branch
          %406 = sbr.rel (%p404) target = $region44
        $region43: #{tpu_custom_call.1} parent=11 // pred_region
          _
        $region44: #{tpu_custom_call.1} parent=11 // pred_fallthru
          _
        // Predicated region
        $region45: #{tpu_custom_call.1} parent=11 // pred_check
          %p407 = pneg %p243
        $region46: #{tpu_custom_call.1} parent=11 // pred_check_branch
          %409 = sbr.rel (%p407) target = $region48
        $region47: #{tpu_custom_call.1} parent=11 // pred_region
          %s411 = ssub.s32 4096, 4096
          %412 = vsyncadd [#allocation12], %s411
          %s413 = sshll.u32 [#allocation11], 4
          %s414 = int_to_ptr.vmem [resolvable:$true] %s413
          %419 = dma.hbm_to_vmem [thread:$0]  %s9, 4096, %s414, [#allocation12], 256, 256, 16
        $region48: #{tpu_custom_call.1} parent=11 // pred_fallthru
          _
        // Predicated region
        $region49: #{tpu_custom_call.1} parent=11 // pred_check
          %p420 = pneg %p264
        $region50: #{tpu_custom_call.1} parent=11 // pred_check_branch
          %422 = sbr.rel (%p420) target = $region52
        $region51: #{tpu_custom_call.1} parent=11 // pred_region
          _
        $region52: #{tpu_custom_call.1} parent=11 // pred_fallthru
          _
        // Predicated region
        $region53: #{tpu_custom_call.1} parent=11 // pred_check
          %p423 = pneg %p285
        $region54: #{tpu_custom_call.1} parent=11 // pred_check_branch
          %425 = sbr.rel (%p423) target = $region56
        $region55: #{tpu_custom_call.1} parent=11 // pred_region
          %s427 = ssub.s32 4096, 4096
          %428 = vsyncadd [#allocation12], %s427
          %s429 = sshll.u32 [#allocation13], 4
          %s430 = int_to_ptr.vmem [resolvable:$true] %s429
          %435 = dma.hbm_to_vmem [thread:$0]  %s11, 4096, %s430, [#allocation12], 64, 64, 4
        $region56: #{tpu_custom_call.1} parent=11 // pred_fallthru
          _
        // Predicated region
        $region57: #{tpu_custom_call.1} parent=11 // pred_check
          %p436 = pneg %p306
        $region58: #{tpu_custom_call.1} parent=11 // pred_check_branch
          %438 = sbr.rel (%p436) target = $region60
        $region59: #{tpu_custom_call.1} parent=11 // pred_region
          _
        $region60: #{tpu_custom_call.1} parent=11 // pred_fallthru
          _
      $region12: #{tpu_custom_call.1} parent=5 // pred_fallthru
        _
      %p439 = scmp.lt.s32.totalorder %s28, 2
      // Predicated region
      $region61: #{tpu_custom_call.1} parent=5 // pred_check
        %p440 = pneg %p439
      $region62: #{tpu_custom_call.1} parent=5 // pred_check_branch
        %442 = sbr.rel (%p440) target = $region64
      $region63: #{tpu_custom_call.1} parent=5 // pred_region
        // Predicated region
        $region65: #{tpu_custom_call.1} parent=63 // pred_check
          %p443 = pneg %p48
        $region66: #{tpu_custom_call.1} parent=63 // pred_check_branch
          %445 = sbr.rel (%p443) target = $region68
        $region67: #{tpu_custom_call.1} parent=63 // pred_region
          %s446 = sand.u32 %s38, 1
          %s447 = scalar_lea.sflag [#allocation3], %s446
          %s448 = sand.u32 %s38, 1
          %s449 = smul.addr %s448, 16
          %s450 = scalar_lea.vmem [#allocation2], %s449
          %s452 = ssub.s32 256, 256
          %453 = vsyncadd %s447, %s452
          %s454 = smul.addr %s28, 2
          %s455 = smul.addr %s454, 128
          %s456 = scalar_lea.hbm %s0, %s455
          %s457 = sshll.u32 %s450, 4
          %s458 = int_to_ptr.vmem [resolvable:$true] %s457
          %463 = dma.hbm_to_vmem [thread:$0]  %s456, 256, %s458, %s447, 128, 128, 8
        $region68: #{tpu_custom_call.1} parent=63 // pred_fallthru
          _
      $region64: #{tpu_custom_call.1} parent=5 // pred_fallthru
        _
      %p464 = scmp.le.s32.totalorder 1, %s28
      %p465 = scmp.lt.s32.totalorder %s28, 3
      %p466 = pnand %p464, %p465
      %p467 = pneg %p466
      // Predicated region
      $region69: #{tpu_custom_call.1} parent=5 // pred_check
        _
      $region70: #{tpu_custom_call.1} parent=5 // pred_check_branch
        %469 = sbr.rel (%p466) target = $region72
      $region71: #{tpu_custom_call.1} parent=5 // pred_region
        %s470 = ssub.s32 %s28, 1
        %s471 = sand.u32 %s41, 1
        %s472 = scalar_lea.sflag [#allocation3], %s471
        %s473 = sand.u32 %s41, 1
        %s474 = smul.addr %s473, 16
        %s475 = scalar_lea.vmem [#allocation2], %s474
        // Predicated region
        $region73: #{tpu_custom_call.1} parent=71 // pred_check
          %p476 = pneg %p54
        $region74: #{tpu_custom_call.1} parent=71 // pred_check_branch
          %478 = sbr.rel (%p476) target = $region76
        $region75: #{tpu_custom_call.1} parent=71 // pred_region
          %479 = dma.done %s472, 256
        $region76: #{tpu_custom_call.1} parent=71 // pred_fallthru
          _
        // Predicated region
        $region77: #{tpu_custom_call.1} parent=71 // pred_check
          %p480 = pneg %p75
        $region78: #{tpu_custom_call.1} parent=71 // pred_check_branch
          %482 = sbr.rel (%p480) target = $region80
        $region79: #{tpu_custom_call.1} parent=71 // pred_region
          %483 = dma.done [#allocation6], 16
        $region80: #{tpu_custom_call.1} parent=71 // pred_fallthru
          _
        // Predicated region
        $region81: #{tpu_custom_call.1} parent=71 // pred_check
          %p484 = pneg %p96
        $region82: #{tpu_custom_call.1} parent=71 // pred_check_branch
          %486 = sbr.rel (%p484) target = $region84
        $region83: #{tpu_custom_call.1} parent=71 // pred_region
          %487 = dma.done [#allocation6], 16
        $region84: #{tpu_custom_call.1} parent=71 // pred_fallthru
          _
        // Predicated region
        $region85: #{tpu_custom_call.1} parent=71 // pred_check
          %p488 = pneg %p117
        $region86: #{tpu_custom_call.1} parent=71 // pred_check_branch
          %490 = sbr.rel (%p488) target = $region88
        $region87: #{tpu_custom_call.1} parent=71 // pred_region
          %491 = dma.done [#allocation9], 3072
        $region88: #{tpu_custom_call.1} parent=71 // pred_fallthru
          _
        // Predicated region
        $region89: #{tpu_custom_call.1} parent=71 // pred_check
          %p492 = pneg %p159
        $region90: #{tpu_custom_call.1} parent=71 // pred_check_branch
          %494 = sbr.rel (%p492) target = $region92
        $region91: #{tpu_custom_call.1} parent=71 // pred_region
          %495 = dma.done [#allocation9], 1024
        $region92: #{tpu_custom_call.1} parent=71 // pred_fallthru
          _
        // Predicated region
        $region93: #{tpu_custom_call.1} parent=71 // pred_check
          %p496 = pneg %p243
        $region94: #{tpu_custom_call.1} parent=71 // pred_check_branch
          %498 = sbr.rel (%p496) target = $region96
        $region95: #{tpu_custom_call.1} parent=71 // pred_region
          %499 = dma.done [#allocation12], 4096
        $region96: #{tpu_custom_call.1} parent=71 // pred_fallthru
          _
        // Predicated region
        $region97: #{tpu_custom_call.1} parent=71 // pred_check
          %p500 = pneg %p285
        $region98: #{tpu_custom_call.1} parent=71 // pred_check_branch
          %502 = sbr.rel (%p500) target = $region100
        $region99: #{tpu_custom_call.1} parent=71 // pred_region
          %503 = dma.done [#allocation12], 4096
        $region100: #{tpu_custom_call.1} parent=71 // pred_fallthru
          _
        %s504 = sand.u32 %s41, 1
        %s505 = scalar_lea.sflag [#allocation3], %s504
        %s506 = sand.u32 %s41, 1
        %s507 = smul.addr %s506, 16
        %s508 = scalar_lea.vmem [#allocation2], %s507
        %p509 = pneg %p54
        %p510 = pneg %p51
        %p511 = pneg %p75
        %p512 = pneg %p72
        %p513 = pneg %p96
        %p514 = pneg %p93
        %p515 = pneg %p117
        %p516 = pneg %p114
        %p517 = pneg %p138
        %p518 = pneg %p135
        %p519 = pneg %p159
        %p520 = pneg %p156
        %p521 = pneg %p180
        %p522 = pneg %p177
        %p523 = pneg %p201
        %p524 = pneg %p198
        %p525 = pneg %p222
        %p526 = pneg %p219
        %p527 = pneg %p243
        %p528 = pneg %p240
        %p529 = pneg %p264
        %p530 = pneg %p261
        %p531 = pneg %p285
        %p532 = pneg %p282
        %p533 = pneg %p306
        %p534 = pneg %p303
        %p535 = pneg %p332
        %p536 = pneg %p329
        %s537 = sand.u32 %s319, 1
        %s538 = scalar_lea.sflag [#allocation4], %s537
        %s539 = sand.u32 %s319, 1
        %s540 = smul.addr %s539, 16
        %s541 = scalar_lea.vmem [#allocation14], %s540
        %v543 = vld [vmem:[%s475] sm:$0xff]
        %v544 = vld [vmem:[%s475 + $0x8] sm:$0xff]
        %v545 = vld [vmem:[#allocation5] sm:$0x1]
        %v546 = vld [vmem:[#allocation7] sm:$0x1]
        %547 = vadd.xlane.f32.xlu0 %v543
        %v548 = vpop.xlane.xlu0 %547
        %549 = vadd.xlane.f32.xlu0 %v544
        %v550 = vpop.xlane.xlu0 %549
        %v551 = vmul.f32 %v543, %v543
        %v552 = vmul.f32 %v544, %v544
        %553 = vadd.xlane.f32.xlu0 %v551
        %v554 = vpop.xlane.xlu0 %553
        %555 = vadd.xlane.f32.xlu0 %v552
        %v556 = vpop.xlane.xlu0 %555
        %v557 = vmul.f32 %v548, 0.0078125
        %v558 = vmul.f32 %v550, 0.0078125
        %v559 = vmul.f32 %v554, 0.0078125
        %v560 = vmul.f32 %v556, 0.0078125
        %v561 = vmul.f32 %v557, %v557
        %v562 = vmul.f32 %v558, %v558
        %v563 = vsub.f32 %v559, %v561
        %v564 = vsub.f32 %v560, %v562
        %v565 = vadd.f32 %v563, 1e-05
        %v566 = vadd.f32 %v564, 1e-05
        %v567 = vrsqrt.pop %v565
        %v568 = vrsqrt.pop %v566
        %v569 = vsub.f32 %v543, %v557
        %v570 = vsub.f32 %v544, %v558
        %v571 = vmul.f32 %v569, %v567
        %v572 = vmul.f32 %v570, %v568
        %v574 = vlaneseq
        %v575 = vshrl.u32 %v574, 7
        %v576 = vsub.s32 0, %v575
        %v577 = vrot.slane %v545, %v576
        %v579 = vmul.f32 %v571, %v577
        %v580 = vmul.f32 %v572, %v577
        %v582 = vlaneseq
        %v583 = vshrl.u32 %v582, 7
        %v584 = vsub.s32 0, %v583
        %v585 = vrot.slane %v546, %v584
        %v587 = vadd.f32 %v579, %v585
        %v588 = vadd.f32 %v580, %v585
        %v589 = vpack.c.bf16 %v588, %v587
        %v590 = vld [vmem:[#allocation8] sm:$0xff]
        %v591 = vld [vmem:[#allocation8 + $0x8] sm:$0xf]
        %v592 = vld [vmem:[#allocation8 + $0xc] sm:$0xff]
        %v593 = vld [vmem:[#allocation8 + $0x14] sm:$0xf]
        %v594 = vld [vmem:[#allocation8 + $0x18] sm:$0xff]
        %v595 = vld [vmem:[#allocation8 + $0x20] sm:$0xf]
        %v596 = vld [vmem:[#allocation8 + $0x24] sm:$0xff]
        %v597 = vld [vmem:[#allocation8 + $0x2c] sm:$0xf]
        %v598 = vld [vmem:[#allocation8 + $0x30] sm:$0xff]
        %v599 = vld [vmem:[#allocation8 + $0x38] sm:$0xf]
        %v600 = vld [vmem:[#allocation8 + $0x3c] sm:$0xff]
        %v601 = vld [vmem:[#allocation8 + $0x44] sm:$0xf]
        %v602 = vld [vmem:[#allocation8 + $0x48] sm:$0xff]
        %v603 = vld [vmem:[#allocation8 + $0x50] sm:$0xf]
        %v604 = vld [vmem:[#allocation8 + $0x54] sm:$0xff]
        %v605 = vld [vmem:[#allocation8 + $0x5c] sm:$0xf]
        %v606 = vld [vmem:[#allocation8 + $0x60] sm:$0xff]
        %v607 = vld [vmem:[#allocation8 + $0x68] sm:$0xf]
        %v608 = vld [vmem:[#allocation8 + $0x6c] sm:$0xff]
        %v609 = vld [vmem:[#allocation8 + $0x74] sm:$0xf]
        %v610 = vld [vmem:[#allocation8 + $0x78] sm:$0xff]
        %v611 = vld [vmem:[#allocation8 + $0x80] sm:$0xf]
        %v612 = vld [vmem:[#allocation8 + $0x84] sm:$0xff]
        %v613 = vld [vmem:[#allocation8 + $0x8c] sm:$0xf]
        %v614 = vld [vmem:[#allocation8 + $0x90] sm:$0xff]
        %v615 = vld [vmem:[#allocation8 + $0x98] sm:$0xf]
        %v616 = vld [vmem:[#allocation8 + $0x9c] sm:$0xff]
        %v617 = vld [vmem:[#allocation8 + $0xa4] sm:$0xf]
        %v618 = vld [vmem:[#allocation8 + $0xa8] sm:$0xff]
        %v619 = vld [vmem:[#allocation8 + $0xb0] sm:$0xf]
        %v620 = vld [vmem:[#allocation8 + $0xb4] sm:$0xff]
        %v621 = vld [vmem:[#allocation8 + $0xbc] sm:$0xf]
        %v622 = vld [vmem:[%s4] sm:$0x7]
        %v624 = vlaneseq
        %v625 = vshrl.u32 %v624, 7
        %v626 = vsub.s32 0, %v625
        %v627 = vrot.slane %v622, %v626
        %v628 = vlaneseq
        %v629 = vshrl.u32 %v628, 7
        %v630 = vsub.s32 1, %v629
        %v631 = vrot.slane %v622, %v630
        %v632 = vlaneseq
        %v633 = vshrl.u32 %v632, 7
        %v634 = vsub.s32 2, %v633
        %v635 = vrot.slane %v622, %v634
        %v671 = vunpack.c.l.b16 %v590
        %v672 = vunpack.c.h.b16 %v590
        %v673 = vunpack.c.l.b16 %v591
        %v674 = vunpack.c.l.b16 %v592
        %v675 = vunpack.c.h.b16 %v592
        %v676 = vunpack.c.l.b16 %v593
        %v677 = vunpack.c.l.b16 %v594
        %v678 = vunpack.c.h.b16 %v594
        %v679 = vunpack.c.l.b16 %v595
        %v680 = vunpack.c.l.b16 %v596
        %v681 = vunpack.c.h.b16 %v596
        %v682 = vunpack.c.l.b16 %v597
        %v683 = vunpack.c.l.b16 %v598
        %v684 = vunpack.c.h.b16 %v598
        %v685 = vunpack.c.l.b16 %v599
        %v686 = vunpack.c.l.b16 %v600
        %v687 = vunpack.c.h.b16 %v600
        %v688 = vunpack.c.l.b16 %v601
        %v689 = vunpack.c.l.b16 %v602
        %v690 = vunpack.c.h.b16 %v602
        %v691 = vunpack.c.l.b16 %v603
        %v692 = vunpack.c.l.b16 %v604
        %v693 = vunpack.c.h.b16 %v604
        %v694 = vunpack.c.l.b16 %v605
        %v695 = vunpack.c.l.b16 %v606
        %v696 = vunpack.c.h.b16 %v606
        %v697 = vunpack.c.l.b16 %v607
        %v698 = vunpack.c.l.b16 %v608
        %v699 = vunpack.c.h.b16 %v608
        %v700 = vunpack.c.l.b16 %v609
        %v701 = vunpack.c.l.b16 %v610
        %v702 = vunpack.c.h.b16 %v610
        %v703 = vunpack.c.l.b16 %v611
        %v704 = vunpack.c.l.b16 %v612
        %v705 = vunpack.c.h.b16 %v612
        %v706 = vunpack.c.l.b16 %v613
        %v707 = vunpack.c.l.b16 %v614
        %v708 = vunpack.c.h.b16 %v614
        %v709 = vunpack.c.l.b16 %v615
        %v710 = vunpack.c.l.b16 %v616
        %v711 = vunpack.c.h.b16 %v616
        %v712 = vunpack.c.l.b16 %v617
        %v713 = vunpack.c.l.b16 %v618
        %v714 = vunpack.c.h.b16 %v618
        %v715 = vunpack.c.l.b16 %v619
        %v716 = vunpack.c.l.b16 %v620
        %v717 = vunpack.c.h.b16 %v620
        %v718 = vunpack.c.l.b16 %v621
        %v719 = vpack.c.b16 %v674, %v671
        %v720 = vpack.c.b16 %v675, %v672
        %v721 = vpack.c.b16 %v676, %v673
        %v722 = vpack.c.b16 %v680, %v677
        %v723 = vpack.c.b16 %v681, %v678
        %v724 = vpack.c.b16 %v682, %v679
        %v725 = vpack.c.b16 %v686, %v683
        %v726 = vpack.c.b16 %v687, %v684
        %v727 = vpack.c.b16 %v688, %v685
        %v728 = vpack.c.b16 %v692, %v689
        %v729 = vpack.c.b16 %v693, %v690
        %v730 = vpack.c.b16 %v694, %v691
        %v731 = vpack.c.b16 %v698, %v695
        %v732 = vpack.c.b16 %v699, %v696
        %v733 = vpack.c.b16 %v700, %v697
        %v734 = vpack.c.b16 %v704, %v701
        %v735 = vpack.c.b16 %v705, %v702
        %v736 = vpack.c.b16 %v706, %v703
        %v737 = vpack.c.b16 %v710, %v707
        %v738 = vpack.c.b16 %v711, %v708
        %v739 = vpack.c.b16 %v712, %v709
        %v740 = vpack.c.b16 %v716, %v713
        %v741 = vpack.c.b16 %v717, %v714
        %v742 = vpack.c.b16 %v718, %v715
        %767 = vmatprep.subr.bf16.mxu0 %v720
        %768 = vmatpush1.bf16.msra.mxu0 %v719
        %769 = vmatprep.subr.bf16.mxu0 %v723
        %770 = vmatpush1.bf16.msra.mxu0 %v722
        %771 = vmatprep.subr.bf16.mxu0 %v726
        %772 = vmatpush1.bf16.msra.mxu0 %v725
        %773 = vmatprep.subr.bf16.mxu0 %v729
        %774 = vmatpush1.bf16.msra.mxu0 %v728
        %775 = vmatprep.subr.bf16.mxu0 %v732
        %776 = vmatpush1.bf16.msra.mxu0 %v731
        %777 = vmatprep.subr.bf16.mxu0 %v735
        %778 = vmatpush1.bf16.msra.mxu0 %v734
        %779 = vmatprep.subr.bf16.mxu0 %v738
        %780 = vmatpush1.bf16.msra.mxu0 %v737
        %781 = vmatprep.subr.bf16.mxu0 %v741
        %782 = vmatpush1.bf16.msra.mxu0 %v740
        %783 = vmatprep.subr.bf16.mxu0 0
        %784 = vmatpush1.bf16.msra.mxu0 0
        %785 = vmatprep.subr.bf16.mxu0 0
        %786 = vmatpush1.bf16.msra.mxu0 0
        %787 = vmatprep.subr.bf16.mxu0 0
        %788 = vmatpush1.bf16.msra.mxu0 0
        %789 = vmatprep.subr.bf16.mxu0 0
        %790 = vmatpush1.bf16.msra.mxu0 0
        %791 = vmatprep.subr.bf16.mxu0 0
        %792 = vmatpush1.bf16.msra.mxu0 0
        %793 = vmatprep.subr.bf16.mxu0 0
        %794 = vmatpush1.bf16.msra.mxu0 0
        %795 = vmatprep.subr.bf16.mxu0 0
        %796 = vmatpush1.bf16.msra.mxu0 0
        %797 = vmatprep.subr.bf16.mxu0 0
        %798 = vmatpush1.bf16.msra.mxu0 0
        %799 = vmatprep.mubr.bf16.mxu0 0
        %800 = vmatmul.mubr.bf16.gmra.mrb[0].mxu0 %v589
        %v801 = vpop.f32.mrb[0].mxu0
        %v802 = vadd.f32 %v627, %v801
        %v803 = vpop.f32.mrb[0].mxu0
        %v804 = vadd.f32 %v631, %v803
        %v805 = vpop.f32.mrb[0].mxu0
        %v806 = vadd.f32 %v627, %v805
        %v807 = vpop.f32.mrb[0].mxu0
        %v808 = vadd.f32 %v631, %v807
        %809 = vdwg.mxu0
        %810 = vmatprep.subr.bf16.mxu0 0
        %811 = vmatpush1.bf16.msra.mxu0 %v721
        %812 = vmatprep.subr.bf16.mxu0 0
        %813 = vmatpush1.bf16.msra.mxu0 %v724
        %814 = vmatprep.subr.bf16.mxu0 0
        %815 = vmatpush1.bf16.msra.mxu0 %v727
        %816 = vmatprep.subr.bf16.mxu0 0
        %817 = vmatpush1.bf16.msra.mxu0 %v730
        %818 = vmatprep.subr.bf16.mxu0 0
        %819 = vmatpush1.bf16.msra.mxu0 %v733
        %820 = vmatprep.subr.bf16.mxu0 0
        %821 = vmatpush1.bf16.msra.mxu0 %v736
        %822 = vmatprep.subr.bf16.mxu0 0
        %823 = vmatpush1.bf16.msra.mxu0 %v739
        %824 = vmatprep.subr.bf16.mxu0 0
        %825 = vmatpush1.bf16.msra.mxu0 %v742
        %826 = vmatprep.subr.bf16.mxu0 0
        %827 = vmatpush1.bf16.msra.mxu0 0
        %828 = vmatprep.subr.bf16.mxu0 0
        %829 = vmatpush1.bf16.msra.mxu0 0
        %830 = vmatprep.subr.bf16.mxu0 0
        %831 = vmatpush1.bf16.msra.mxu0 0
        %832 = vmatprep.subr.bf16.mxu0 0
        %833 = vmatpush1.bf16.msra.mxu0 0
        %834 = vmatprep.subr.bf16.mxu0 0
        %835 = vmatpush1.bf16.msra.mxu0 0
        %836 = vmatprep.subr.bf16.mxu0 0
        %837 = vmatpush1.bf16.msra.mxu0 0
        %838 = vmatprep.subr.bf16.mxu0 0
        %839 = vmatpush1.bf16.msra.mxu0 0
        %840 = vmatprep.subr.bf16.mxu0 0
        %841 = vmatpush1.bf16.msra.mxu0 0
        %842 = vmatprep.mubr.bf16.mxu0 0
        %843 = vmatmul.mubr.bf16.gmra.mrb[0].mxu0 %v589
        %v844 = vpop.f32.mrb[0].mxu0
        %v845 = vadd.f32 %v635, %v844
        %v846 = vpop.f32.mrb[0].mxu0
        %v847 = vpop.f32.mrb[0].mxu0
        %v848 = vadd.f32 %v635, %v847
        %v849 = vpop.f32.mrb[0].mxu0
        %850 = vdwg.mxu0
        %v851 = vpack.c.bf16 %v806, %v802
        %853 = vrot.lane.b32.xlu0 %v851, 96
        %v854 = vpop.permute.xlu0 %853
        %855 = vrot.lane.b32.xlu0 %v851, 64
        %v856 = vpop.permute.xlu0 %855
        %857 = vrot.lane.b32.xlu0 %v851, 32
        %v858 = vpop.permute.xlu0 %857
        %v861 = vpack.i.b16 %v854, %v851
        %v863 = vshrl.u32 %v851, 16
        %v864 = vshrl.u32 %v854, 16
        %v865 = vpack.i.b16 %v864, %v863
        %v869 = vpack.i.b16 %v858, %v856
        %v871 = vshrl.u32 %v856, 16
        %v872 = vshrl.u32 %v858, 16
        %v873 = vpack.i.b16 %v872, %v871
        %v876 = vpack.i.b16 0, 0
        %v878 = vshrl.u32 0, 16
        %v879 = vpack.i.b16 %v878, %v878
        %v881 = vcombine.high %v861, %v876
        %v883 = vunpack.c.l.s4 1983009808
        %v884 = vunpack.c.0.s8 %v883
        %v885 = vlaneseq
        %v886 = vshrl.u32 %v885, 7
        %v887 = vsub.s32 %v884, %v886
        %v888 = vrot.slane %v861, %v887
        %v890 = vunpack.c.l.s4 1983009808
        %v891 = vunpack.c.0.s8 %v890
        %v892 = vlaneseq
        %v893 = vshrl.u32 %v892, 7
        %v894 = vsub.s32 %v891, %v893
        %v895 = vrot.slane %v881, %v894
        %v896 = vcombine.high %v869, %v876
        %v898 = vunpack.c.l.s4 1983009808
        %v899 = vunpack.c.0.s8 %v898
        %v900 = vlaneseq
        %v901 = vshrl.u32 %v900, 7
        %v902 = vsub.s32 %v899, %v901
        %v903 = vrot.slane %v869, %v902
        %v905 = vunpack.c.l.s4 1983009808
        %v906 = vunpack.c.0.s8 %v905
        %v907 = vlaneseq
        %v908 = vshrl.u32 %v907, 7
        %v909 = vsub.s32 %v906, %v908
        %v910 = vrot.slane %v896, %v909
        %v911 = vcombine.low %v888, %v903
        %v912 = vcombine.high %v888, %v903
        %v914 = vunpack.c.l.s4 1934713408
        %v915 = vunpack.c.0.s8 %v914
        %v916 = vlaneseq
        %v917 = vshrl.u32 %v916, 7
        %v918 = vsub.s32 %v915, %v917
        %v919 = vrot.slane %v911, %v918
        %v921 = vunpack.c.l.s4 1934713408
        %v922 = vunpack.c.0.s8 %v921
        %v923 = vlaneseq
        %v924 = vshrl.u32 %v923, 7
        %v925 = vsub.s32 %v922, %v924
        %v926 = vrot.slane %v912, %v925
        %v927 = vcombine.low %v895, %v910
        %v928 = vcombine.high %v895, %v910
        %v930 = vunpack.c.l.s4 1934713408
        %v931 = vunpack.c.0.s8 %v930
        %v932 = vlaneseq
        %v933 = vshrl.u32 %v932, 7
        %v934 = vsub.s32 %v931, %v933
        %v935 = vrot.slane %v927, %v934
        %v937 = vunpack.c.l.s4 1934713408
        %v938 = vunpack.c.0.s8 %v937
        %v939 = vlaneseq
        %v940 = vshrl.u32 %v939, 7
        %v941 = vsub.s32 %v938, %v940
        %v942 = vrot.slane %v928, %v941
        %v943 = vcombine.high %v919, 0
        %v944 = vcombine.high %v926, 0
        %v945 = vcombine.high %v935, 0
        %v946 = vcombine.high %v942, 0
        %v947 = vcombine.high %v865, %v879
        %v949 = vunpack.c.l.s4 1983009808
        %v950 = vunpack.c.0.s8 %v949
        %v951 = vlaneseq
        %v952 = vshrl.u32 %v951, 7
        %v953 = vsub.s32 %v950, %v952
        %v954 = vrot.slane %v865, %v953
        %v956 = vunpack.c.l.s4 1983009808
        %v957 = vunpack.c.0.s8 %v956
        %v958 = vlaneseq
        %v959 = vshrl.u32 %v958, 7
        %v960 = vsub.s32 %v957, %v959
        %v961 = vrot.slane %v947, %v960
        %v962 = vcombine.high %v873, %v879
        %v964 = vunpack.c.l.s4 1983009808
        %v965 = vunpack.c.0.s8 %v964
        %v966 = vlaneseq
        %v967 = vshrl.u32 %v966, 7
        %v968 = vsub.s32 %v965, %v967
        %v969 = vrot.slane %v873, %v968
        %v971 = vunpack.c.l.s4 1983009808
        %v972 = vunpack.c.0.s8 %v971
        %v973 = vlaneseq
        %v974 = vshrl.u32 %v973, 7
        %v975 = vsub.s32 %v972, %v974
        %v976 = vrot.slane %v962, %v975
        %v977 = vcombine.low %v954, %v969
        %v978 = vcombine.high %v954, %v969
        %v980 = vunpack.c.l.s4 1934713408
        %v981 = vunpack.c.0.s8 %v980
        %v982 = vlaneseq
        %v983 = vshrl.u32 %v982, 7
        %v984 = vsub.s32 %v981, %v983
        %v985 = vrot.slane %v977, %v984
        %v987 = vunpack.c.l.s4 1934713408
        %v988 = vunpack.c.0.s8 %v987
        %v989 = vlaneseq
        %v990 = vshrl.u32 %v989, 7
        %v991 = vsub.s32 %v988, %v990
        %v992 = vrot.slane %v978, %v991
        %v993 = vcombine.low %v961, %v976
        %v994 = vcombine.high %v961, %v976
        %v996 = vunpack.c.l.s4 1934713408
        %v997 = vunpack.c.0.s8 %v996
        %v998 = vlaneseq
        %v999 = vshrl.u32 %v998, 7
        %v1000 = vsub.s32 %v997, %v999
        %v1001 = vrot.slane %v993, %v1000
        %v1003 = vunpack.c.l.s4 1934713408
        %v1004 = vunpack.c.0.s8 %v1003
        %v1005 = vlaneseq
        %v1006 = vshrl.u32 %v1005, 7
        %v1007 = vsub.s32 %v1004, %v1006
        %v1008 = vrot.slane %v994, %v1007
        %v1009 = vcombine.high %v985, 0
        %v1010 = vcombine.high %v992, 0
        %v1011 = vcombine.high %v1001, 0
        %v1012 = vcombine.high %v1008, 0
        %v1013 = vcombine.low %v919, %v926
        %v1015 = vunpack.c.l.s4 1983009808
        %v1016 = vunpack.c.0.s8 %v1015
        %v1017 = vlaneseq
        %v1018 = vshrl.u32 %v1017, 7
        %v1019 = vsub.s32 %v1016, %v1018
        %v1020 = vrot.slane %v1013, %v1019
        %v1021 = vcombine.low %v943, %v944
        %v1023 = vunpack.c.l.s4 1983009808
        %v1024 = vunpack.c.0.s8 %v1023
        %v1025 = vlaneseq
        %v1026 = vshrl.u32 %v1025, 7
        %v1027 = vsub.s32 %v1024, %v1026
        %v1028 = vrot.slane %v1021, %v1027
        %v1029 = vcombine.low %v935, %v942
        %v1031 = vunpack.c.l.s4 1983009808
        %v1032 = vunpack.c.0.s8 %v1031
        %v1033 = vlaneseq
        %v1034 = vshrl.u32 %v1033, 7
        %v1035 = vsub.s32 %v1032, %v1034
        %v1036 = vrot.slane %v1029, %v1035
        %v1037 = vcombine.low %v945, %v946
        %v1039 = vunpack.c.l.s4 1983009808
        %v1040 = vunpack.c.0.s8 %v1039
        %v1041 = vlaneseq
        %v1042 = vshrl.u32 %v1041, 7
        %v1043 = vsub.s32 %v1040, %v1042
        %v1044 = vrot.slane %v1037, %v1043
        %v1045 = vcombine.low %v1020, %v1028
        %v1047 = vunpack.c.l.s4 1934713408
        %v1048 = vunpack.c.0.s8 %v1047
        %v1049 = vlaneseq
        %v1050 = vshrl.u32 %v1049, 7
        %v1051 = vsub.s32 %v1048, %v1050
        %v1052 = vrot.slane %v1045, %v1051
        %v1053 = vcombine.low %v1036, %v1044
        %v1055 = vunpack.c.l.s4 1934713408
        %v1056 = vunpack.c.0.s8 %v1055
        %v1057 = vlaneseq
        %v1058 = vshrl.u32 %v1057, 7
        %v1059 = vsub.s32 %v1056, %v1058
        %v1060 = vrot.slane %v1053, %v1059
        %v1061 = vcombine.low %v1052, %v1060
        %v1062 = vcombine.high %v1052, %v1060
        %v1063 = vcombine.low %v985, %v992
        %v1065 = vunpack.c.l.s4 1983009808
        %v1066 = vunpack.c.0.s8 %v1065
        %v1067 = vlaneseq
        %v1068 = vshrl.u32 %v1067, 7
        %v1069 = vsub.s32 %v1066, %v1068
        %v1070 = vrot.slane %v1063, %v1069
        %v1071 = vcombine.low %v1009, %v1010
        %v1073 = vunpack.c.l.s4 1983009808
        %v1074 = vunpack.c.0.s8 %v1073
        %v1075 = vlaneseq
        %v1076 = vshrl.u32 %v1075, 7
        %v1077 = vsub.s32 %v1074, %v1076
        %v1078 = vrot.slane %v1071, %v1077
        %v1079 = vcombine.low %v1001, %v1008
        %v1081 = vunpack.c.l.s4 1983009808
        %v1082 = vunpack.c.0.s8 %v1081
        %v1083 = vlaneseq
        %v1084 = vshrl.u32 %v1083, 7
        %v1085 = vsub.s32 %v1082, %v1084
        %v1086 = vrot.slane %v1079, %v1085
        %v1087 = vcombine.low %v1011, %v1012
        %v1089 = vunpack.c.l.s4 1983009808
        %v1090 = vunpack.c.0.s8 %v1089
        %v1091 = vlaneseq
        %v1092 = vshrl.u32 %v1091, 7
        %v1093 = vsub.s32 %v1090, %v1092
        %v1094 = vrot.slane %v1087, %v1093
        %v1095 = vcombine.low %v1070, %v1078
        %v1097 = vunpack.c.l.s4 1934713408
        %v1098 = vunpack.c.0.s8 %v1097
        %v1099 = vlaneseq
        %v1100 = vshrl.u32 %v1099, 7
        %v1101 = vsub.s32 %v1098, %v1100
        %v1102 = vrot.slane %v1095, %v1101
        %v1103 = vcombine.low %v1086, %v1094
        %v1105 = vunpack.c.l.s4 1934713408
        %v1106 = vunpack.c.0.s8 %v1105
        %v1107 = vlaneseq
        %v1108 = vshrl.u32 %v1107, 7
        %v1109 = vsub.s32 %v1106, %v1108
        %v1110 = vrot.slane %v1103, %v1109
        %v1111 = vcombine.low %v1102, %v1110
        %v1112 = vcombine.high %v1102, %v1110
        %v1115 = vpack.i.b16 %v1111, %v1061
        %v1116 = vshrl.u32 %v1061, 16
        %v1117 = vshrl.u32 %v1111, 16
        %v1118 = vpack.i.b16 %v1117, %v1116
        %v1121 = vpack.i.b16 %v1112, %v1062
        %v1122 = vshrl.u32 %v1062, 16
        %v1123 = vshrl.u32 %v1112, 16
        %v1124 = vpack.i.b16 %v1123, %v1122
        %v1125 = vpack.c.bf16 %v808, %v804
        %1127 = vrot.lane.b32.xlu0 %v1125, 96
        %v1128 = vpop.permute.xlu0 %1127
        %1129 = vrot.lane.b32.xlu0 %v1125, 64
        %v1130 = vpop.permute.xlu0 %1129
        %1131 = vrot.lane.b32.xlu0 %v1125, 32
        %v1132 = vpop.permute.xlu0 %1131
        %v1135 = vpack.i.b16 %v1128, %v1125
        %v1137 = vshrl.u32 %v1125, 16
        %v1138 = vshrl.u32 %v1128, 16
        %v1139 = vpack.i.b16 %v1138, %v1137
        %v1143 = vpack.i.b16 %v1132, %v1130
        %v1145 = vshrl.u32 %v1130, 16
        %v1146 = vshrl.u32 %v1132, 16
        %v1147 = vpack.i.b16 %v1146, %v1145
        %v1149 = vcombine.high %v1135, %v876
        %v1151 = vunpack.c.l.s4 1983009808
        %v1152 = vunpack.c.0.s8 %v1151
        %v1153 = vlaneseq
        %v1154 = vshrl.u32 %v1153, 7
        %v1155 = vsub.s32 %v1152, %v1154
        %v1156 = vrot.slane %v1135, %v1155
        %v1158 = vunpack.c.l.s4 1983009808
        %v1159 = vunpack.c.0.s8 %v1158
        %v1160 = vlaneseq
        %v1161 = vshrl.u32 %v1160, 7
        %v1162 = vsub.s32 %v1159, %v1161
        %v1163 = vrot.slane %v1149, %v1162
        %v1164 = vcombine.high %v1143, %v876
        %v1166 = vunpack.c.l.s4 1983009808
        %v1167 = vunpack.c.0.s8 %v1166
        %v1168 = vlaneseq
        %v1169 = vshrl.u32 %v1168, 7
        %v1170 = vsub.s32 %v1167, %v1169
        %v1171 = vrot.slane %v1143, %v1170
        %v1173 = vunpack.c.l.s4 1983009808
        %v1174 = vunpack.c.0.s8 %v1173
        %v1175 = vlaneseq
        %v1176 = vshrl.u32 %v1175, 7
        %v1177 = vsub.s32 %v1174, %v1176
        %v1178 = vrot.slane %v1164, %v1177
        %v1179 = vcombine.low %v1156, %v1171
        %v1180 = vcombine.high %v1156, %v1171
        %v1182 = vunpack.c.l.s4 1934713408
        %v1183 = vunpack.c.0.s8 %v1182
        %v1184 = vlaneseq
        %v1185 = vshrl.u32 %v1184, 7
        %v1186 = vsub.s32 %v1183, %v1185
        %v1187 = vrot.slane %v1179, %v1186
        %v1189 = vunpack.c.l.s4 1934713408
        %v1190 = vunpack.c.0.s8 %v1189
        %v1191 = vlaneseq
        %v1192 = vshrl.u32 %v1191, 7
        %v1193 = vsub.s32 %v1190, %v1192
        %v1194 = vrot.slane %v1180, %v1193
        %v1195 = vcombine.low %v1163, %v1178
        %v1196 = vcombine.high %v1163, %v1178
        %v1198 = vunpack.c.l.s4 1934713408
        %v1199 = vunpack.c.0.s8 %v1198
        %v1200 = vlaneseq
        %v1201 = vshrl.u32 %v1200, 7
        %v1202 = vsub.s32 %v1199, %v1201
        %v1203 = vrot.slane %v1195, %v1202
        %v1205 = vunpack.c.l.s4 1934713408
        %v1206 = vunpack.c.0.s8 %v1205
        %v1207 = vlaneseq
        %v1208 = vshrl.u32 %v1207, 7
        %v1209 = vsub.s32 %v1206, %v1208
        %v1210 = vrot.slane %v1196, %v1209
        %v1211 = vcombine.high %v1187, 0
        %v1212 = vcombine.high %v1194, 0
        %v1213 = vcombine.high %v1203, 0
        %v1214 = vcombine.high %v1210, 0
        %v1215 = vcombine.high %v1139, %v879
        %v1217 = vunpack.c.l.s4 1983009808
        %v1218 = vunpack.c.0.s8 %v1217
        %v1219 = vlaneseq
        %v1220 = vshrl.u32 %v1219, 7
        %v1221 = vsub.s32 %v1218, %v1220
        %v1222 = vrot.slane %v1139, %v1221
        %v1224 = vunpack.c.l.s4 1983009808
        %v1225 = vunpack.c.0.s8 %v1224
        %v1226 = vlaneseq
        %v1227 = vshrl.u32 %v1226, 7
        %v1228 = vsub.s32 %v1225, %v1227
        %v1229 = vrot.slane %v1215, %v1228
        %v1230 = vcombine.high %v1147, %v879
        %v1232 = vunpack.c.l.s4 1983009808
        %v1233 = vunpack.c.0.s8 %v1232
        %v1234 = vlaneseq
        %v1235 = vshrl.u32 %v1234, 7
        %v1236 = vsub.s32 %v1233, %v1235
        %v1237 = vrot.slane %v1147, %v1236
        %v1239 = vunpack.c.l.s4 1983009808
        %v1240 = vunpack.c.0.s8 %v1239
        %v1241 = vlaneseq
        %v1242 = vshrl.u32 %v1241, 7
        %v1243 = vsub.s32 %v1240, %v1242
        %v1244 = vrot.slane %v1230, %v1243
        %v1245 = vcombine.low %v1222, %v1237
        %v1246 = vcombine.high %v1222, %v1237
        %v1248 = vunpack.c.l.s4 1934713408
        %v1249 = vunpack.c.0.s8 %v1248
        %v1250 = vlaneseq
        %v1251 = vshrl.u32 %v1250, 7
        %v1252 = vsub.s32 %v1249, %v1251
        %v1253 = vrot.slane %v1245, %v1252
        %v1255 = vunpack.c.l.s4 1934713408
        %v1256 = vunpack.c.0.s8 %v1255
        %v1257 = vlaneseq
        %v1258 = vshrl.u32 %v1257, 7
        %v1259 = vsub.s32 %v1256, %v1258
        %v1260 = vrot.slane %v1246, %v1259
        %v1261 = vcombine.low %v1229, %v1244
        %v1262 = vcombine.high %v1229, %v1244
        %v1264 = vunpack.c.l.s4 1934713408
        %v1265 = vunpack.c.0.s8 %v1264
        %v1266 = vlaneseq
        %v1267 = vshrl.u32 %v1266, 7
        %v1268 = vsub.s32 %v1265, %v1267
        %v1269 = vrot.slane %v1261, %v1268
        %v1271 = vunpack.c.l.s4 1934713408
        %v1272 = vunpack.c.0.s8 %v1271
        %v1273 = vlaneseq
        %v1274 = vshrl.u32 %v1273, 7
        %v1275 = vsub.s32 %v1272, %v1274
        %v1276 = vrot.slane %v1262, %v1275
        %v1277 = vcombine.high %v1253, 0
        %v1278 = vcombine.high %v1260, 0
        %v1279 = vcombine.high %v1269, 0
        %v1280 = vcombine.high %v1276, 0
        %v1281 = vcombine.low %v1187, %v1194
        %v1283 = vunpack.c.l.s4 1983009808
        %v1284 = vunpack.c.0.s8 %v1283
        %v1285 = vlaneseq
        %v1286 = vshrl.u32 %v1285, 7
        %v1287 = vsub.s32 %v1284, %v1286
        %v1288 = vrot.slane %v1281, %v1287
        %v1289 = vcombine.low %v1211, %v1212
        %v1291 = vunpack.c.l.s4 1983009808
        %v1292 = vunpack.c.0.s8 %v1291
        %v1293 = vlaneseq
        %v1294 = vshrl.u32 %v1293, 7
        %v1295 = vsub.s32 %v1292, %v1294
        %v1296 = vrot.slane %v1289, %v1295
        %v1297 = vcombine.low %v1203, %v1210
        %v1299 = vunpack.c.l.s4 1983009808
        %v1300 = vunpack.c.0.s8 %v1299
        %v1301 = vlaneseq
        %v1302 = vshrl.u32 %v1301, 7
        %v1303 = vsub.s32 %v1300, %v1302
        %v1304 = vrot.slane %v1297, %v1303
        %v1305 = vcombine.low %v1213, %v1214
        %v1307 = vunpack.c.l.s4 1983009808
        %v1308 = vunpack.c.0.s8 %v1307
        %v1309 = vlaneseq
        %v1310 = vshrl.u32 %v1309, 7
        %v1311 = vsub.s32 %v1308, %v1310
        %v1312 = vrot.slane %v1305, %v1311
        %v1313 = vcombine.low %v1288, %v1296
        %v1315 = vunpack.c.l.s4 1934713408
        %v1316 = vunpack.c.0.s8 %v1315
        %v1317 = vlaneseq
        %v1318 = vshrl.u32 %v1317, 7
        %v1319 = vsub.s32 %v1316, %v1318
        %v1320 = vrot.slane %v1313, %v1319
        %v1321 = vcombine.low %v1304, %v1312
        %v1323 = vunpack.c.l.s4 1934713408
        %v1324 = vunpack.c.0.s8 %v1323
        %v1325 = vlaneseq
        %v1326 = vshrl.u32 %v1325, 7
        %v1327 = vsub.s32 %v1324, %v1326
        %v1328 = vrot.slane %v1321, %v1327
        %v1329 = vcombine.low %v1320, %v1328
        %v1330 = vcombine.high %v1320, %v1328
        %v1331 = vcombine.low %v1253, %v1260
        %v1333 = vunpack.c.l.s4 1983009808
        %v1334 = vunpack.c.0.s8 %v1333
        %v1335 = vlaneseq
        %v1336 = vshrl.u32 %v1335, 7
        %v1337 = vsub.s32 %v1334, %v1336
        %v1338 = vrot.slane %v1331, %v1337
        %v1339 = vcombine.low %v1277, %v1278
        %v1341 = vunpack.c.l.s4 1983009808
        %v1342 = vunpack.c.0.s8 %v1341
        %v1343 = vlaneseq
        %v1344 = vshrl.u32 %v1343, 7
        %v1345 = vsub.s32 %v1342, %v1344
        %v1346 = vrot.slane %v1339, %v1345
        %v1347 = vcombine.low %v1269, %v1276
        %v1349 = vunpack.c.l.s4 1983009808
        %v1350 = vunpack.c.0.s8 %v1349
        %v1351 = vlaneseq
        %v1352 = vshrl.u32 %v1351, 7
        %v1353 = vsub.s32 %v1350, %v1352
        %v1354 = vrot.slane %v1347, %v1353
        %v1355 = vcombine.low %v1279, %v1280
        %v1357 = vunpack.c.l.s4 1983009808
        %v1358 = vunpack.c.0.s8 %v1357
        %v1359 = vlaneseq
        %v1360 = vshrl.u32 %v1359, 7
        %v1361 = vsub.s32 %v1358, %v1360
        %v1362 = vrot.slane %v1355, %v1361
        %v1363 = vcombine.low %v1338, %v1346
        %v1365 = vunpack.c.l.s4 1934713408
        %v1366 = vunpack.c.0.s8 %v1365
        %v1367 = vlaneseq
        %v1368 = vshrl.u32 %v1367, 7
        %v1369 = vsub.s32 %v1366, %v1368
        %v1370 = vrot.slane %v1363, %v1369
        %v1371 = vcombine.low %v1354, %v1362
        %v1373 = vunpack.c.l.s4 1934713408
        %v1374 = vunpack.c.0.s8 %v1373
        %v1375 = vlaneseq
        %v1376 = vshrl.u32 %v1375, 7
        %v1377 = vsub.s32 %v1374, %v1376
        %v1378 = vrot.slane %v1371, %v1377
        %v1379 = vcombine.low %v1370, %v1378
        %v1380 = vcombine.high %v1370, %v1378
        %v1383 = vpack.i.b16 %v1379, %v1329
        %v1384 = vshrl.u32 %v1329, 16
        %v1385 = vshrl.u32 %v1379, 16
        %v1386 = vpack.i.b16 %v1385, %v1384
        %v1389 = vpack.i.b16 %v1380, %v1330
        %v1390 = vshrl.u32 %v1330, 16
        %v1391 = vshrl.u32 %v1380, 16
        %v1392 = vpack.i.b16 %v1391, %v1390
        %v1393 = vpack.c.bf16 %v848, %v845
        %1395 = vrot.lane.b32.xlu0 %v1393, 96
        %v1396 = vpop.permute.xlu0 %1395
        %1397 = vrot.lane.b32.xlu0 %v1393, 64
        %v1398 = vpop.permute.xlu0 %1397
        %1399 = vrot.lane.b32.xlu0 %v1393, 32
        %v1400 = vpop.permute.xlu0 %1399
        %v1403 = vpack.i.b16 %v1396, %v1393
        %v1405 = vshrl.u32 %v1393, 16
        %v1406 = vshrl.u32 %v1396, 16
        %v1407 = vpack.i.b16 %v1406, %v1405
        %v1411 = vpack.i.b16 %v1400, %v1398
        %v1413 = vshrl.u32 %v1398, 16
        %v1414 = vshrl.u32 %v1400, 16
        %v1415 = vpack.i.b16 %v1414, %v1413
        %v1417 = vcombine.high %v1403, %v876
        %v1419 = vunpack.c.l.s4 1983009808
        %v1420 = vunpack.c.0.s8 %v1419
        %v1421 = vlaneseq
        %v1422 = vshrl.u32 %v1421, 7
        %v1423 = vsub.s32 %v1420, %v1422
        %v1424 = vrot.slane %v1403, %v1423
        %v1426 = vunpack.c.l.s4 1983009808
        %v1427 = vunpack.c.0.s8 %v1426
        %v1428 = vlaneseq
        %v1429 = vshrl.u32 %v1428, 7
        %v1430 = vsub.s32 %v1427, %v1429
        %v1431 = vrot.slane %v1417, %v1430
        %v1432 = vcombine.high %v1411, %v876
        %v1434 = vunpack.c.l.s4 1983009808
        %v1435 = vunpack.c.0.s8 %v1434
        %v1436 = vlaneseq
        %v1437 = vshrl.u32 %v1436, 7
        %v1438 = vsub.s32 %v1435, %v1437
        %v1439 = vrot.slane %v1411, %v1438
        %v1441 = vunpack.c.l.s4 1983009808
        %v1442 = vunpack.c.0.s8 %v1441
        %v1443 = vlaneseq
        %v1444 = vshrl.u32 %v1443, 7
        %v1445 = vsub.s32 %v1442, %v1444
        %v1446 = vrot.slane %v1432, %v1445
        %v1447 = vcombine.low %v1424, %v1439
        %v1448 = vcombine.high %v1424, %v1439
        %v1450 = vunpack.c.l.s4 1934713408
        %v1451 = vunpack.c.0.s8 %v1450
        %v1452 = vlaneseq
        %v1453 = vshrl.u32 %v1452, 7
        %v1454 = vsub.s32 %v1451, %v1453
        %v1455 = vrot.slane %v1447, %v1454
        %v1457 = vunpack.c.l.s4 1934713408
        %v1458 = vunpack.c.0.s8 %v1457
        %v1459 = vlaneseq
        %v1460 = vshrl.u32 %v1459, 7
        %v1461 = vsub.s32 %v1458, %v1460
        %v1462 = vrot.slane %v1448, %v1461
        %v1463 = vcombine.low %v1431, %v1446
        %v1464 = vcombine.high %v1431, %v1446
        %v1466 = vunpack.c.l.s4 1934713408
        %v1467 = vunpack.c.0.s8 %v1466
        %v1468 = vlaneseq
        %v1469 = vshrl.u32 %v1468, 7
        %v1470 = vsub.s32 %v1467, %v1469
        %v1471 = vrot.slane %v1463, %v1470
        %v1473 = vunpack.c.l.s4 1934713408
        %v1474 = vunpack.c.0.s8 %v1473
        %v1475 = vlaneseq
        %v1476 = vshrl.u32 %v1475, 7
        %v1477 = vsub.s32 %v1474, %v1476
        %v1478 = vrot.slane %v1464, %v1477
        %v1479 = vcombine.high %v1455, 0
        %v1480 = vcombine.high %v1462, 0
        %v1481 = vcombine.high %v1471, 0
        %v1482 = vcombine.high %v1478, 0
        %v1483 = vcombine.high %v1407, %v879
        %v1485 = vunpack.c.l.s4 1983009808
        %v1486 = vunpack.c.0.s8 %v1485
        %v1487 = vlaneseq
        %v1488 = vshrl.u32 %v1487, 7
        %v1489 = vsub.s32 %v1486, %v1488
        %v1490 = vrot.slane %v1407, %v1489
        %v1492 = vunpack.c.l.s4 1983009808
        %v1493 = vunpack.c.0.s8 %v1492
        %v1494 = vlaneseq
        %v1495 = vshrl.u32 %v1494, 7
        %v1496 = vsub.s32 %v1493, %v1495
        %v1497 = vrot.slane %v1483, %v1496
        %v1498 = vcombine.high %v1415, %v879
        %v1500 = vunpack.c.l.s4 1983009808
        %v1501 = vunpack.c.0.s8 %v1500
        %v1502 = vlaneseq
        %v1503 = vshrl.u32 %v1502, 7
        %v1504 = vsub.s32 %v1501, %v1503
        %v1505 = vrot.slane %v1415, %v1504
        %v1507 = vunpack.c.l.s4 1983009808
        %v1508 = vunpack.c.0.s8 %v1507
        %v1509 = vlaneseq
        %v1510 = vshrl.u32 %v1509, 7
        %v1511 = vsub.s32 %v1508, %v1510
        %v1512 = vrot.slane %v1498, %v1511
        %v1513 = vcombine.low %v1490, %v1505
        %v1514 = vcombine.high %v1490, %v1505
        %v1516 = vunpack.c.l.s4 1934713408
        %v1517 = vunpack.c.0.s8 %v1516
        %v1518 = vlaneseq
        %v1519 = vshrl.u32 %v1518, 7
        %v1520 = vsub.s32 %v1517, %v1519
        %v1521 = vrot.slane %v1513, %v1520
        %v1523 = vunpack.c.l.s4 1934713408
        %v1524 = vunpack.c.0.s8 %v1523
        %v1525 = vlaneseq
        %v1526 = vshrl.u32 %v1525, 7
        %v1527 = vsub.s32 %v1524, %v1526
        %v1528 = vrot.slane %v1514, %v1527
        %v1529 = vcombine.low %v1497, %v1512
        %v1530 = vcombine.high %v1497, %v1512
        %v1532 = vunpack.c.l.s4 1934713408
        %v1533 = vunpack.c.0.s8 %v1532
        %v1534 = vlaneseq
        %v1535 = vshrl.u32 %v1534, 7
        %v1536 = vsub.s32 %v1533, %v1535
        %v1537 = vrot.slane %v1529, %v1536
        %v1539 = vunpack.c.l.s4 1934713408
        %v1540 = vunpack.c.0.s8 %v1539
        %v1541 = vlaneseq
        %v1542 = vshrl.u32 %v1541, 7
        %v1543 = vsub.s32 %v1540, %v1542
        %v1544 = vrot.slane %v1530, %v1543
        %v1545 = vcombine.high %v1521, 0
        %v1546 = vcombine.high %v1528, 0
        %v1547 = vcombine.high %v1537, 0
        %v1548 = vcombine.high %v1544, 0
        %v1549 = vcombine.low %v1455, %v1462
        %v1551 = vunpack.c.l.s4 1983009808
        %v1552 = vunpack.c.0.s8 %v1551
        %v1553 = vlaneseq
        %v1554 = vshrl.u32 %v1553, 7
        %v1555 = vsub.s32 %v1552, %v1554
        %v1556 = vrot.slane %v1549, %v1555
        %v1557 = vcombine.low %v1479, %v1480
        %v1559 = vunpack.c.l.s4 1983009808
        %v1560 = vunpack.c.0.s8 %v1559
        %v1561 = vlaneseq
        %v1562 = vshrl.u32 %v1561, 7
        %v1563 = vsub.s32 %v1560, %v1562
        %v1564 = vrot.slane %v1557, %v1563
        %v1565 = vcombine.low %v1471, %v1478
        %v1567 = vunpack.c.l.s4 1983009808
        %v1568 = vunpack.c.0.s8 %v1567
        %v1569 = vlaneseq
        %v1570 = vshrl.u32 %v1569, 7
        %v1571 = vsub.s32 %v1568, %v1570
        %v1572 = vrot.slane %v1565, %v1571
        %v1573 = vcombine.low %v1481, %v1482
        %v1575 = vunpack.c.l.s4 1983009808
        %v1576 = vunpack.c.0.s8 %v1575
        %v1577 = vlaneseq
        %v1578 = vshrl.u32 %v1577, 7
        %v1579 = vsub.s32 %v1576, %v1578
        %v1580 = vrot.slane %v1573, %v1579
        %v1581 = vcombine.low %v1556, %v1564
        %v1583 = vunpack.c.l.s4 1934713408
        %v1584 = vunpack.c.0.s8 %v1583
        %v1585 = vlaneseq
        %v1586 = vshrl.u32 %v1585, 7
        %v1587 = vsub.s32 %v1584, %v1586
        %v1588 = vrot.slane %v1581, %v1587
        %v1589 = vcombine.low %v1572, %v1580
        %v1591 = vunpack.c.l.s4 1934713408
        %v1592 = vunpack.c.0.s8 %v1591
        %v1593 = vlaneseq
        %v1594 = vshrl.u32 %v1593, 7
        %v1595 = vsub.s32 %v1592, %v1594
        %v1596 = vrot.slane %v1589, %v1595
        %v1597 = vcombine.low %v1588, %v1596
        %v1598 = vcombine.high %v1588, %v1596
        %v1599 = vcombine.low %v1521, %v1528
        %v1601 = vunpack.c.l.s4 1983009808
        %v1602 = vunpack.c.0.s8 %v1601
        %v1603 = vlaneseq
        %v1604 = vshrl.u32 %v1603, 7
        %v1605 = vsub.s32 %v1602, %v1604
        %v1606 = vrot.slane %v1599, %v1605
        %v1607 = vcombine.low %v1545, %v1546
        %v1609 = vunpack.c.l.s4 1983009808
        %v1610 = vunpack.c.0.s8 %v1609
        %v1611 = vlaneseq
        %v1612 = vshrl.u32 %v1611, 7
        %v1613 = vsub.s32 %v1610, %v1612
        %v1614 = vrot.slane %v1607, %v1613
        %v1615 = vcombine.low %v1537, %v1544
        %v1617 = vunpack.c.l.s4 1983009808
        %v1618 = vunpack.c.0.s8 %v1617
        %v1619 = vlaneseq
        %v1620 = vshrl.u32 %v1619, 7
        %v1621 = vsub.s32 %v1618, %v1620
        %v1622 = vrot.slane %v1615, %v1621
        %v1623 = vcombine.low %v1547, %v1548
        %v1625 = vunpack.c.l.s4 1983009808
        %v1626 = vunpack.c.0.s8 %v1625
        %v1627 = vlaneseq
        %v1628 = vshrl.u32 %v1627, 7
        %v1629 = vsub.s32 %v1626, %v1628
        %v1630 = vrot.slane %v1623, %v1629
        %v1631 = vcombine.low %v1606, %v1614
        %v1633 = vunpack.c.l.s4 1934713408
        %v1634 = vunpack.c.0.s8 %v1633
        %v1635 = vlaneseq
        %v1636 = vshrl.u32 %v1635, 7
        %v1637 = vsub.s32 %v1634, %v1636
        %v1638 = vrot.slane %v1631, %v1637
        %v1639 = vcombine.low %v1622, %v1630
        %v1641 = vunpack.c.l.s4 1934713408
        %v1642 = vunpack.c.0.s8 %v1641
        %v1643 = vlaneseq
        %v1644 = vshrl.u32 %v1643, 7
        %v1645 = vsub.s32 %v1642, %v1644
        %v1646 = vrot.slane %v1639, %v1645
        %v1647 = vcombine.low %v1638, %v1646
        %v1648 = vcombine.high %v1638, %v1646
        %v1651 = vpack.i.b16 %v1647, %v1597
        %v1653 = vshrl.u32 %v1597, 16
        %v1654 = vshrl.u32 %v1647, 16
        %v1655 = vpack.i.b16 %v1654, %v1653
        %v1659 = vpack.i.b16 %v1648, %v1598
        %v1661 = vshrl.u32 %v1598, 16
        %v1662 = vshrl.u32 %v1648, 16
        %v1663 = vpack.i.b16 %v1662, %v1661
        %vm1665 = vcmask 261120
        %v1667 = vsel %vm1665, %v1115, 0
        %v1670 = vsel %vm1665, %v1383, 0
        %1672 = vmatprep.subr.bf16.mxu0 0
        %1673 = vmatpush1.bf16.xpose.msra.mxu0 %v1670
        %1674 = vmatprep.subr.bf16.mxu0 0
        %1675 = vmatpush1.bf16.xpose.msra.mxu0 0
        %1676 = vmatprep.subr.bf16.mxu0 0
        %1677 = vmatpush1.bf16.xpose.msra.mxu0 0
        %1678 = vmatprep.subr.bf16.mxu0 0
        %1679 = vmatpush1.bf16.xpose.msra.mxu0 0
        %1680 = vmatprep.subr.bf16.mxu0 0
        %1681 = vmatpush1.bf16.xpose.msra.mxu0 0
        %1682 = vmatprep.subr.bf16.mxu0 0
        %1683 = vmatpush1.bf16.xpose.msra.mxu0 0
        %1684 = vmatprep.subr.bf16.mxu0 0
        %1685 = vmatpush1.bf16.xpose.msra.mxu0 0
        %1686 = vmatprep.subr.bf16.mxu0 0
        %1687 = vmatpush1.bf16.xpose.msra.mxu0 0
        %1688 = vmatprep.subr.bf16.mxu0 0
        %1689 = vmatpush1.bf16.xpose.msra.mxu0 0
        %1690 = vmatprep.subr.bf16.mxu0 0
        %1691 = vmatpush1.bf16.xpose.msra.mxu0 0
        %1692 = vmatprep.subr.bf16.mxu0 0
        %1693 = vmatpush1.bf16.xpose.msra.mxu0 0
        %1694 = vmatprep.subr.bf16.mxu0 0
        %1695 = vmatpush1.bf16.xpose.msra.mxu0 0
        %1696 = vmatprep.subr.bf16.mxu0 0
        %1697 = vmatpush1.bf16.xpose.msra.mxu0 0
        %1698 = vmatprep.subr.bf16.mxu0 0
        %1699 = vmatpush1.bf16.xpose.msra.mxu0 0
        %1700 = vmatprep.subr.bf16.mxu0 0
        %1701 = vmatpush1.bf16.xpose.msra.mxu0 0
        %1702 = vmatprep.subr.bf16.mxu0 0
        %1703 = vmatpush1.bf16.xpose.msra.mxu0 0
        %1704 = vmatprep.mubr.bf16.mxu0 0
        %1705 = vmatmul.mubr.bf16.gmra.mrb[0].mxu0 %v1667
        %v1706 = vpop.f32.mrb[0].mxu0
        %v1707 = vadd.f32 0.0, %v1706
        %v1708 = vpop.f32.mrb[0].mxu0
        %v1709 = vpop.f32.mrb[0].mxu0
        %v1710 = vadd.f32 0.0, %v1709
        %v1711 = vpop.f32.mrb[0].mxu0
        %1712 = vdwg.mxu0
        %v1714 = vsel %vm1665, %v1118, 0
        %v1717 = vsel %vm1665, %v1386, 0
        %1719 = vmatprep.subr.bf16.mxu0 0
        %1720 = vmatpush1.bf16.xpose.msra.mxu0 %v1717
        %1721 = vmatprep.subr.bf16.mxu0 0
        %1722 = vmatpush1.bf16.xpose.msra.mxu0 0
        %1723 = vmatprep.subr.bf16.mxu0 0
        %1724 = vmatpush1.bf16.xpose.msra.mxu0 0
        %1725 = vmatprep.subr.bf16.mxu0 0
        %1726 = vmatpush1.bf16.xpose.msra.mxu0 0
        %1727 = vmatprep.subr.bf16.mxu0 0
        %1728 = vmatpush1.bf16.xpose.msra.mxu0 0
        %1729 = vmatprep.subr.bf16.mxu0 0
        %1730 = vmatpush1.bf16.xpose.msra.mxu0 0
        %1731 = vmatprep.subr.bf16.mxu0 0
        %1732 = vmatpush1.bf16.xpose.msra.mxu0 0
        %1733 = vmatprep.subr.bf16.mxu0 0
        %1734 = vmatpush1.bf16.xpose.msra.mxu0 0
        %1735 = vmatprep.subr.bf16.mxu0 0
        %1736 = vmatpush1.bf16.xpose.msra.mxu0 0
        %1737 = vmatprep.subr.bf16.mxu0 0
        %1738 = vmatpush1.bf16.xpose.msra.mxu0 0
        %1739 = vmatprep.subr.bf16.mxu0 0
        %1740 = vmatpush1.bf16.xpose.msra.mxu0 0
        %1741 = vmatprep.subr.bf16.mxu0 0
        %1742 = vmatpush1.bf16.xpose.msra.mxu0 0
        %1743 = vmatprep.subr.bf16.mxu0 0
        %1744 = vmatpush1.bf16.xpose.msra.mxu0 0
        %1745 = vmatprep.subr.bf16.mxu0 0
        %1746 = vmatpush1.bf16.xpose.msra.mxu0 0
        %1747 = vmatprep.subr.bf16.mxu0 0
        %1748 = vmatpush1.bf16.xpose.msra.mxu0 0
        %1749 = vmatprep.subr.bf16.mxu0 0
        %1750 = vmatpush1.bf16.xpose.msra.mxu0 0
        %1751 = vmatprep.mubr.bf16.mxu0 0
        %1752 = vmatmul.mubr.bf16.gmra.mrb[0].mxu0 %v1714
        %v1753 = vpop.f32.mrb[0].mxu0
        %v1754 = vadd.f32 0.0, %v1753
        %v1755 = vpop.f32.mrb[0].mxu0
        %v1756 = vpop.f32.mrb[0].mxu0
        %v1757 = vadd.f32 0.0, %v1756
        %v1758 = vpop.f32.mrb[0].mxu0
        %1759 = vdwg.mxu0
        %v1761 = vsel %vm1665, %v1121, 0
        %v1764 = vsel %vm1665, %v1389, 0
        %1766 = vmatprep.subr.bf16.mxu0 0
        %1767 = vmatpush1.bf16.xpose.msra.mxu0 %v1764
        %1768 = vmatprep.subr.bf16.mxu0 0
        %1769 = vmatpush1.bf16.xpose.msra.mxu0 0
        %1770 = vmatprep.subr.bf16.mxu0 0
        %1771 = vmatpush1.bf16.xpose.msra.mxu0 0
        %1772 = vmatprep.subr.bf16.mxu0 0
        %1773 = vmatpush1.bf16.xpose.msra.mxu0 0
        %1774 = vmatprep.subr.bf16.mxu0 0
        %1775 = vmatpush1.bf16.xpose.msra.mxu0 0
        %1776 = vmatprep.subr.bf16.mxu0 0
        %1777 = vmatpush1.bf16.xpose.msra.mxu0 0
        %1778 = vmatprep.subr.bf16.mxu0 0
        %1779 = vmatpush1.bf16.xpose.msra.mxu0 0
        %1780 = vmatprep.subr.bf16.mxu0 0
        %1781 = vmatpush1.bf16.xpose.msra.mxu0 0
        %1782 = vmatprep.subr.bf16.mxu0 0
        %1783 = vmatpush1.bf16.xpose.msra.mxu0 0
        %1784 = vmatprep.subr.bf16.mxu0 0
        %1785 = vmatpush1.bf16.xpose.msra.mxu0 0
        %1786 = vmatprep.subr.bf16.mxu0 0
        %1787 = vmatpush1.bf16.xpose.msra.mxu0 0
        %1788 = vmatprep.subr.bf16.mxu0 0
        %1789 = vmatpush1.bf16.xpose.msra.mxu0 0
        %1790 = vmatprep.subr.bf16.mxu0 0
        %1791 = vmatpush1.bf16.xpose.msra.mxu0 0
        %1792 = vmatprep.subr.bf16.mxu0 0
        %1793 = vmatpush1.bf16.xpose.msra.mxu0 0
        %1794 = vmatprep.subr.bf16.mxu0 0
        %1795 = vmatpush1.bf16.xpose.msra.mxu0 0
        %1796 = vmatprep.subr.bf16.mxu0 0
        %1797 = vmatpush1.bf16.xpose.msra.mxu0 0
        %1798 = vmatprep.mubr.bf16.mxu0 0
        %1799 = vmatmul.mubr.bf16.gmra.mrb[0].mxu0 %v1761
        %v1800 = vpop.f32.mrb[0].mxu0
        %v1801 = vadd.f32 0.0, %v1800
        %v1802 = vpop.f32.mrb[0].mxu0
        %v1803 = vpop.f32.mrb[0].mxu0
        %v1804 = vadd.f32 0.0, %v1803
        %v1805 = vpop.f32.mrb[0].mxu0
        %1806 = vdwg.mxu0
        %v1808 = vsel %vm1665, %v1124, 0
        %v1811 = vsel %vm1665, %v1392, 0
        %1813 = vmatprep.subr.bf16.mxu0 0
        %1814 = vmatpush1.bf16.xpose.msra.mxu0 %v1811
        %1815 = vmatprep.subr.bf16.mxu0 0
        %1816 = vmatpush1.bf16.xpose.msra.mxu0 0
        %1817 = vmatprep.subr.bf16.mxu0 0
        %1818 = vmatpush1.bf16.xpose.msra.mxu0 0
        %1819 = vmatprep.subr.bf16.mxu0 0
        %1820 = vmatpush1.bf16.xpose.msra.mxu0 0
        %1821 = vmatprep.subr.bf16.mxu0 0
        %1822 = vmatpush1.bf16.xpose.msra.mxu0 0
        %1823 = vmatprep.subr.bf16.mxu0 0
        %1824 = vmatpush1.bf16.xpose.msra.mxu0 0
        %1825 = vmatprep.subr.bf16.mxu0 0
        %1826 = vmatpush1.bf16.xpose.msra.mxu0 0
        %1827 = vmatprep.subr.bf16.mxu0 0
        %1828 = vmatpush1.bf16.xpose.msra.mxu0 0
        %1829 = vmatprep.subr.bf16.mxu0 0
        %1830 = vmatpush1.bf16.xpose.msra.mxu0 0
        %1831 = vmatprep.subr.bf16.mxu0 0
        %1832 = vmatpush1.bf16.xpose.msra.mxu0 0
        %1833 = vmatprep.subr.bf16.mxu0 0
        %1834 = vmatpush1.bf16.xpose.msra.mxu0 0
        %1835 = vmatprep.subr.bf16.mxu0 0
        %1836 = vmatpush1.bf16.xpose.msra.mxu0 0
        %1837 = vmatprep.subr.bf16.mxu0 0
        %1838 = vmatpush1.bf16.xpose.msra.mxu0 0
        %1839 = vmatprep.subr.bf16.mxu0 0
        %1840 = vmatpush1.bf16.xpose.msra.mxu0 0
        %1841 = vmatprep.subr.bf16.mxu0 0
        %1842 = vmatpush1.bf16.xpose.msra.mxu0 0
        %1843 = vmatprep.subr.bf16.mxu0 0
        %1844 = vmatpush1.bf16.xpose.msra.mxu0 0
        %1845 = vmatprep.mubr.bf16.mxu0 0
        %1846 = vmatmul.mubr.bf16.gmra.mrb[0].mxu0 %v1808
        %v1847 = vpop.f32.mrb[0].mxu0
        %v1848 = vadd.f32 0.0, %v1847
        %v1849 = vpop.f32.mrb[0].mxu0
        %v1850 = vpop.f32.mrb[0].mxu0
        %v1851 = vadd.f32 0.0, %v1850
        %v1852 = vpop.f32.mrb[0].mxu0
        %1853 = vdwg.mxu0
        %v1854 = vmul.f32 %v1707, 0.17677669
        %v1855 = vmul.f32 %v1710, 0.17677669
        %v1856 = vmul.f32 %v1754, 0.17677669
        %v1857 = vmul.f32 %v1757, 0.17677669
        %v1858 = vmul.f32 %v1801, 0.17677669
        %v1859 = vmul.f32 %v1804, 0.17677669
        %v1860 = vmul.f32 %v1848, 0.17677669
        %v1861 = vmul.f32 %v1851, 0.17677669
        %v1862 = vlaneseq
        %v1863 = vshrl.u32 %v1862, 7
        %v1864 = vadd.s32 %v1863, 8
        %v1865 = vlaneseq
        %v1866 = vand.u32 %v1865, 127
        %vm1867 = vcmp.le.s32.totalorder %v1866, %v1863
        %vm1868 = vcmp.le.s32.totalorder %v1866, %v1864
        %v1869 = vsel %vm1867, 0.0, -1e+30
        %v1870 = vsel %vm1868, 0.0, -1e+30
        %v1871 = vadd.f32 %v1854, %v1869
        %v1872 = vadd.f32 %v1855, %v1870
        %v1873 = vadd.f32 %v1856, %v1869
        %v1874 = vadd.f32 %v1857, %v1870
        %v1875 = vadd.f32 %v1858, %v1869
        %v1876 = vadd.f32 %v1859, %v1870
        %v1877 = vadd.f32 %v1860, %v1869
        %v1878 = vadd.f32 %v1861, %v1870
        %vm1879 = vcmask 130048
        %v1880 = vsel %vm1879, %v1871, -inf
        %1881 = vmax.xlane.f32.xlu0 %v1880
        %v1882 = vpop.xlane.xlu0 %1881
        %v1883 = vsel %vm1879, %v1872, -inf
        %1884 = vmax.xlane.f32.xlu0 %v1883
        %v1885 = vpop.xlane.xlu0 %1884
        %v1886 = vsel %vm1879, %v1873, -inf
        %1887 = vmax.xlane.f32.xlu0 %v1886
        %v1888 = vpop.xlane.xlu0 %1887
        %v1889 = vsel %vm1879, %v1874, -inf
        %1890 = vmax.xlane.f32.xlu0 %v1889
        %v1891 = vpop.xlane.xlu0 %1890
        %v1892 = vsel %vm1879, %v1875, -inf
        %1893 = vmax.xlane.f32.xlu0 %v1892
        %v1894 = vpop.xlane.xlu0 %1893
        %v1895 = vsel %vm1879, %v1876, -inf
        %1896 = vmax.xlane.f32.xlu0 %v1895
        %v1897 = vpop.xlane.xlu0 %1896
        %v1898 = vsel %vm1879, %v1877, -inf
        %1899 = vmax.xlane.f32.xlu0 %v1898
        %v1900 = vpop.xlane.xlu0 %1899
        %v1901 = vsel %vm1879, %v1878, -inf
        %1902 = vmax.xlane.f32.xlu0 %v1901
        %v1903 = vpop.xlane.xlu0 %1902
        %v1904 = vsub.f32 %v1871, %v1882
        %v1905 = vsub.f32 %v1872, %v1885
        %v1906 = vsub.f32 %v1873, %v1888
        %v1907 = vsub.f32 %v1874, %v1891
        %v1908 = vsub.f32 %v1875, %v1894
        %v1909 = vsub.f32 %v1876, %v1897
        %v1910 = vsub.f32 %v1877, %v1900
        %v1911 = vsub.f32 %v1878, %v1903
        %v1912 = vmul.f32 %v1904, 1.442695
        %v1913 = vpow.pop %v1912
        %v1914 = vmul.f32 %v1905, 1.442695
        %v1915 = vpow.pop %v1914
        %v1916 = vmul.f32 %v1906, 1.442695
        %v1917 = vpow.pop %v1916
        %v1918 = vmul.f32 %v1907, 1.442695
        %v1919 = vpow.pop %v1918
        %v1920 = vmul.f32 %v1908, 1.442695
        %v1921 = vpow.pop %v1920
        %v1922 = vmul.f32 %v1909, 1.442695
        %v1923 = vpow.pop %v1922
        %v1924 = vmul.f32 %v1910, 1.442695
        %v1925 = vpow.pop %v1924
        %v1926 = vmul.f32 %v1911, 1.442695
        %v1927 = vpow.pop %v1926
        %v1928 = vsel %vm1879, %v1913, 0.0
        %1929 = vadd.xlane.f32.xlu0 %v1928
        %v1930 = vpop.xlane.xlu0 %1929
        %v1931 = vsel %vm1879, %v1915, 0.0
        %1932 = vadd.xlane.f32.xlu0 %v1931
        %v1933 = vpop.xlane.xlu0 %1932
        %v1934 = vsel %vm1879, %v1917, 0.0
        %1935 = vadd.xlane.f32.xlu0 %v1934
        %v1936 = vpop.xlane.xlu0 %1935
        %v1937 = vsel %vm1879, %v1919, 0.0
        %1938 = vadd.xlane.f32.xlu0 %v1937
        %v1939 = vpop.xlane.xlu0 %1938
        %v1940 = vsel %vm1879, %v1921, 0.0
        %1941 = vadd.xlane.f32.xlu0 %v1940
        %v1942 = vpop.xlane.xlu0 %1941
        %v1943 = vsel %vm1879, %v1923, 0.0
        %1944 = vadd.xlane.f32.xlu0 %v1943
        %v1945 = vpop.xlane.xlu0 %1944
        %v1946 = vsel %vm1879, %v1925, 0.0
        %1947 = vadd.xlane.f32.xlu0 %v1946
        %v1948 = vpop.xlane.xlu0 %1947
        %v1949 = vsel %vm1879, %v1927, 0.0
        %1950 = vadd.xlane.f32.xlu0 %v1949
        %v1951 = vpop.xlane.xlu0 %1950
        %v1952 = vrcp.pop %v1930
        %v1953 = vrcp.pop %v1933
        %v1954 = vrcp.pop %v1936
        %v1955 = vrcp.pop %v1939
        %v1956 = vrcp.pop %v1942
        %v1957 = vrcp.pop %v1945
        %v1958 = vrcp.pop %v1948
        %v1959 = vrcp.pop %v1951
        %v1960 = vmul.f32 %v1913, %v1952
        %v1961 = vmul.f32 %v1915, %v1953
        %v1962 = vmul.f32 %v1917, %v1954
        %v1963 = vmul.f32 %v1919, %v1955
        %v1964 = vmul.f32 %v1921, %v1956
        %v1965 = vmul.f32 %v1923, %v1957
        %v1966 = vmul.f32 %v1925, %v1958
        %v1967 = vmul.f32 %v1927, %v1959
        %v1968 = vpack.c.bf16 %v1961, %v1960
        %v1969 = vpack.c.bf16 %v1963, %v1962
        %v1970 = vpack.c.bf16 %v1965, %v1964
        %v1971 = vpack.c.bf16 %v1967, %v1966
        %v1973 = vsel %vm1879, %v1968, 0
        %1975 = vmatprep.subr.bf16.mxu0 0
        %1976 = vmatpush1.bf16.msra.mxu0 %v1651
        %1977 = vmatprep.subr.bf16.mxu0 0
        %1978 = vmatpush1.bf16.msra.mxu0 0
        %1979 = vmatprep.subr.bf16.mxu0 0
        %1980 = vmatpush1.bf16.msra.mxu0 0
        %1981 = vmatprep.subr.bf16.mxu0 0
        %1982 = vmatpush1.bf16.msra.mxu0 0
        %1983 = vmatprep.subr.bf16.mxu0 0
        %1984 = vmatpush1.bf16.msra.mxu0 0
        %1985 = vmatprep.subr.bf16.mxu0 0
        %1986 = vmatpush1.bf16.msra.mxu0 0
        %1987 = vmatprep.subr.bf16.mxu0 0
        %1988 = vmatpush1.bf16.msra.mxu0 0
        %1989 = vmatprep.subr.bf16.mxu0 0
        %1990 = vmatpush1.bf16.msra.mxu0 0
        %1991 = vmatprep.subr.bf16.mxu0 0
        %1992 = vmatpush1.bf16.msra.mxu0 0
        %1993 = vmatprep.subr.bf16.mxu0 0
        %1994 = vmatpush1.bf16.msra.mxu0 0
        %1995 = vmatprep.subr.bf16.mxu0 0
        %1996 = vmatpush1.bf16.msra.mxu0 0
        %1997 = vmatprep.subr.bf16.mxu0 0
        %1998 = vmatpush1.bf16.msra.mxu0 0
        %1999 = vmatprep.subr.bf16.mxu0 0
        %2000 = vmatpush1.bf16.msra.mxu0 0
        %2001 = vmatprep.subr.bf16.mxu0 0
        %2002 = vmatpush1.bf16.msra.mxu0 0
        %2003 = vmatprep.subr.bf16.mxu0 0
        %2004 = vmatpush1.bf16.msra.mxu0 0
        %2005 = vmatprep.subr.bf16.mxu0 0
        %2006 = vmatpush1.bf16.msra.mxu0 0
        %2007 = vmatprep.mubr.bf16.mxu0 0
        %2008 = vmatmul.mubr.bf16.gmra.mrb[0].mxu0 %v1973
        %v2009 = vpop.f32.mrb[0].mxu0
        %v2010 = vadd.f32 0.0, %v2009
        %v2011 = vpop.f32.mrb[0].mxu0
        %v2012 = vpop.f32.mrb[0].mxu0
        %v2013 = vadd.f32 0.0, %v2012
        %v2014 = vpop.f32.mrb[0].mxu0
        %2015 = vdwg.mxu0
        %v2017 = vsel %vm1879, %v1969, 0
        %2019 = vmatprep.subr.bf16.mxu0 0
        %2020 = vmatpush1.bf16.msra.mxu0 %v1655
        %2021 = vmatprep.subr.bf16.mxu0 0
        %2022 = vmatpush1.bf16.msra.mxu0 0
        %2023 = vmatprep.subr.bf16.mxu0 0
        %2024 = vmatpush1.bf16.msra.mxu0 0
        %2025 = vmatprep.subr.bf16.mxu0 0
        %2026 = vmatpush1.bf16.msra.mxu0 0
        %2027 = vmatprep.subr.bf16.mxu0 0
        %2028 = vmatpush1.bf16.msra.mxu0 0
        %2029 = vmatprep.subr.bf16.mxu0 0
        %2030 = vmatpush1.bf16.msra.mxu0 0
        %2031 = vmatprep.subr.bf16.mxu0 0
        %2032 = vmatpush1.bf16.msra.mxu0 0
        %2033 = vmatprep.subr.bf16.mxu0 0
        %2034 = vmatpush1.bf16.msra.mxu0 0
        %2035 = vmatprep.subr.bf16.mxu0 0
        %2036 = vmatpush1.bf16.msra.mxu0 0
        %2037 = vmatprep.subr.bf16.mxu0 0
        %2038 = vmatpush1.bf16.msra.mxu0 0
        %2039 = vmatprep.subr.bf16.mxu0 0
        %2040 = vmatpush1.bf16.msra.mxu0 0
        %2041 = vmatprep.subr.bf16.mxu0 0
        %2042 = vmatpush1.bf16.msra.mxu0 0
        %2043 = vmatprep.subr.bf16.mxu0 0
        %2044 = vmatpush1.bf16.msra.mxu0 0
        %2045 = vmatprep.subr.bf16.mxu0 0
        %2046 = vmatpush1.bf16.msra.mxu0 0
        %2047 = vmatprep.subr.bf16.mxu0 0
        %2048 = vmatpush1.bf16.msra.mxu0 0
        %2049 = vmatprep.subr.bf16.mxu0 0
        %2050 = vmatpush1.bf16.msra.mxu0 0
        %2051 = vmatprep.mubr.bf16.mxu0 0
        %2052 = vmatmul.mubr.bf16.gmra.mrb[0].mxu0 %v2017
        %v2053 = vpop.f32.mrb[0].mxu0
        %v2054 = vadd.f32 0.0, %v2053
        %v2055 = vpop.f32.mrb[0].mxu0
        %v2056 = vpop.f32.mrb[0].mxu0
        %v2057 = vadd.f32 0.0, %v2056
        %v2058 = vpop.f32.mrb[0].mxu0
        %2059 = vdwg.mxu0
        %v2061 = vsel %vm1879, %v1970, 0
        %2063 = vmatprep.subr.bf16.mxu0 0
        %2064 = vmatpush1.bf16.msra.mxu0 %v1659
        %2065 = vmatprep.subr.bf16.mxu0 0
        %2066 = vmatpush1.bf16.msra.mxu0 0
        %2067 = vmatprep.subr.bf16.mxu0 0
        %2068 = vmatpush1.bf16.msra.mxu0 0
        %2069 = vmatprep.subr.bf16.mxu0 0
        %2070 = vmatpush1.bf16.msra.mxu0 0
        %2071 = vmatprep.subr.bf16.mxu0 0
        %2072 = vmatpush1.bf16.msra.mxu0 0
        %2073 = vmatprep.subr.bf16.mxu0 0
        %2074 = vmatpush1.bf16.msra.mxu0 0
        %2075 = vmatprep.subr.bf16.mxu0 0
        %2076 = vmatpush1.bf16.msra.mxu0 0
        %2077 = vmatprep.subr.bf16.mxu0 0
        %2078 = vmatpush1.bf16.msra.mxu0 0
        %2079 = vmatprep.subr.bf16.mxu0 0
        %2080 = vmatpush1.bf16.msra.mxu0 0
        %2081 = vmatprep.subr.bf16.mxu0 0
        %2082 = vmatpush1.bf16.msra.mxu0 0
        %2083 = vmatprep.subr.bf16.mxu0 0
        %2084 = vmatpush1.bf16.msra.mxu0 0
        %2085 = vmatprep.subr.bf16.mxu0 0
        %2086 = vmatpush1.bf16.msra.mxu0 0
        %2087 = vmatprep.subr.bf16.mxu0 0
        %2088 = vmatpush1.bf16.msra.mxu0 0
        %2089 = vmatprep.subr.bf16.mxu0 0
        %2090 = vmatpush1.bf16.msra.mxu0 0
        %2091 = vmatprep.subr.bf16.mxu0 0
        %2092 = vmatpush1.bf16.msra.mxu0 0
        %2093 = vmatprep.subr.bf16.mxu0 0
        %2094 = vmatpush1.bf16.msra.mxu0 0
        %2095 = vmatprep.mubr.bf16.mxu0 0
        %2096 = vmatmul.mubr.bf16.gmra.mrb[0].mxu0 %v2061
        %v2097 = vpop.f32.mrb[0].mxu0
        %v2098 = vadd.f32 0.0, %v2097
        %v2099 = vpop.f32.mrb[0].mxu0
        %v2100 = vpop.f32.mrb[0].mxu0
        %v2101 = vadd.f32 0.0, %v2100
        %v2102 = vpop.f32.mrb[0].mxu0
        %2103 = vdwg.mxu0
        %v2105 = vsel %vm1879, %v1971, 0
        %2107 = vmatprep.subr.bf16.mxu0 0
        %2108 = vmatpush1.bf16.msra.mxu0 %v1663
        %2109 = vmatprep.subr.bf16.mxu0 0
        %2110 = vmatpush1.bf16.msra.mxu0 0
        %2111 = vmatprep.subr.bf16.mxu0 0
        %2112 = vmatpush1.bf16.msra.mxu0 0
        %2113 = vmatprep.subr.bf16.mxu0 0
        %2114 = vmatpush1.bf16.msra.mxu0 0
        %2115 = vmatprep.subr.bf16.mxu0 0
        %2116 = vmatpush1.bf16.msra.mxu0 0
        %2117 = vmatprep.subr.bf16.mxu0 0
        %2118 = vmatpush1.bf16.msra.mxu0 0
        %2119 = vmatprep.subr.bf16.mxu0 0
        %2120 = vmatpush1.bf16.msra.mxu0 0
        %2121 = vmatprep.subr.bf16.mxu0 0
        %2122 = vmatpush1.bf16.msra.mxu0 0
        %2123 = vmatprep.subr.bf16.mxu0 0
        %2124 = vmatpush1.bf16.msra.mxu0 0
        %2125 = vmatprep.subr.bf16.mxu0 0
        %2126 = vmatpush1.bf16.msra.mxu0 0
        %2127 = vmatprep.subr.bf16.mxu0 0
        %2128 = vmatpush1.bf16.msra.mxu0 0
        %2129 = vmatprep.subr.bf16.mxu0 0
        %2130 = vmatpush1.bf16.msra.mxu0 0
        %2131 = vmatprep.subr.bf16.mxu0 0
        %2132 = vmatpush1.bf16.msra.mxu0 0
        %2133 = vmatprep.subr.bf16.mxu0 0
        %2134 = vmatpush1.bf16.msra.mxu0 0
        %2135 = vmatprep.subr.bf16.mxu0 0
        %2136 = vmatpush1.bf16.msra.mxu0 0
        %2137 = vmatprep.subr.bf16.mxu0 0
        %2138 = vmatpush1.bf16.msra.mxu0 0
        %2139 = vmatprep.mubr.bf16.mxu0 0
        %2140 = vmatmul.mubr.bf16.gmra.mrb[0].mxu0 %v2105
        %v2141 = vpop.f32.mrb[0].mxu0
        %v2142 = vadd.f32 0.0, %v2141
        %v2143 = vpop.f32.mrb[0].mxu0
        %v2144 = vpop.f32.mrb[0].mxu0
        %v2145 = vadd.f32 0.0, %v2144
        %v2146 = vpop.f32.mrb[0].mxu0
        %2147 = vdwg.mxu0
        %v2148 = vcombine.low %v2010, %v2098
        %v2149 = vcombine.high %v2010, %v2098
        %v2151 = vunpack.c.l.s4 1983009808
        %v2152 = vunpack.c.0.s8 %v2151
        %v2153 = vlaneseq
        %v2154 = vshrl.u32 %v2153, 7
        %v2155 = vsub.s32 %v2152, %v2154
        %v2156 = vrot.slane %v2148, %v2155
        %v2158 = vunpack.c.l.s4 1983009808
        %v2159 = vunpack.c.0.s8 %v2158
        %v2160 = vlaneseq
        %v2161 = vshrl.u32 %v2160, 7
        %v2162 = vsub.s32 %v2159, %v2161
        %v2163 = vrot.slane %v2149, %v2162
        %v2164 = vcombine.low %v2054, %v2142
        %v2165 = vcombine.high %v2054, %v2142
        %v2167 = vunpack.c.l.s4 1983009808
        %v2168 = vunpack.c.0.s8 %v2167
        %v2169 = vlaneseq
        %v2170 = vshrl.u32 %v2169, 7
        %v2171 = vsub.s32 %v2168, %v2170
        %v2172 = vrot.slane %v2164, %v2171
        %v2174 = vunpack.c.l.s4 1983009808
        %v2175 = vunpack.c.0.s8 %v2174
        %v2176 = vlaneseq
        %v2177 = vshrl.u32 %v2176, 7
        %v2178 = vsub.s32 %v2175, %v2177
        %v2179 = vrot.slane %v2165, %v2178
        %v2180 = vcombine.low %v2156, %v2172
        %v2181 = vcombine.high %v2156, %v2172
        %v2183 = vunpack.c.l.s4 1934713408
        %v2184 = vunpack.c.0.s8 %v2183
        %v2185 = vlaneseq
        %v2186 = vshrl.u32 %v2185, 7
        %v2187 = vsub.s32 %v2184, %v2186
        %v2188 = vrot.slane %v2180, %v2187
        %v2190 = vunpack.c.l.s4 1934713408
        %v2191 = vunpack.c.0.s8 %v2190
        %v2192 = vlaneseq
        %v2193 = vshrl.u32 %v2192, 7
        %v2194 = vsub.s32 %v2191, %v2193
        %v2195 = vrot.slane %v2181, %v2194
        %v2196 = vcombine.low %v2163, %v2179
        %v2197 = vcombine.high %v2163, %v2179
        %v2199 = vunpack.c.l.s4 1934713408
        %v2200 = vunpack.c.0.s8 %v2199
        %v2201 = vlaneseq
        %v2202 = vshrl.u32 %v2201, 7
        %v2203 = vsub.s32 %v2200, %v2202
        %v2204 = vrot.slane %v2196, %v2203
        %v2206 = vunpack.c.l.s4 1934713408
        %v2207 = vunpack.c.0.s8 %v2206
        %v2208 = vlaneseq
        %v2209 = vshrl.u32 %v2208, 7
        %v2210 = vsub.s32 %v2207, %v2209
        %v2211 = vrot.slane %v2197, %v2210
        %v2212 = vcombine.high %v2188, 0.0
        %v2213 = vcombine.high %v2195, 0.0
        %v2214 = vcombine.high %v2204, 0.0
        %v2215 = vcombine.high %v2211, 0.0
        %v2216 = vcombine.low %v2013, %v2101
        %v2217 = vcombine.high %v2013, %v2101
        %v2219 = vunpack.c.l.s4 1983009808
        %v2220 = vunpack.c.0.s8 %v2219
        %v2221 = vlaneseq
        %v2222 = vshrl.u32 %v2221, 7
        %v2223 = vsub.s32 %v2220, %v2222
        %v2224 = vrot.slane %v2216, %v2223
        %v2226 = vunpack.c.l.s4 1983009808
        %v2227 = vunpack.c.0.s8 %v2226
        %v2228 = vlaneseq
        %v2229 = vshrl.u32 %v2228, 7
        %v2230 = vsub.s32 %v2227, %v2229
        %v2231 = vrot.slane %v2217, %v2230
        %v2232 = vcombine.low %v2057, %v2145
        %v2233 = vcombine.high %v2057, %v2145
        %v2235 = vunpack.c.l.s4 1983009808
        %v2236 = vunpack.c.0.s8 %v2235
        %v2237 = vlaneseq
        %v2238 = vshrl.u32 %v2237, 7
        %v2239 = vsub.s32 %v2236, %v2238
        %v2240 = vrot.slane %v2232, %v2239
        %v2242 = vunpack.c.l.s4 1983009808
        %v2243 = vunpack.c.0.s8 %v2242
        %v2244 = vlaneseq
        %v2245 = vshrl.u32 %v2244, 7
        %v2246 = vsub.s32 %v2243, %v2245
        %v2247 = vrot.slane %v2233, %v2246
        %v2248 = vcombine.low %v2224, %v2240
        %v2249 = vcombine.high %v2224, %v2240
        %v2251 = vunpack.c.l.s4 1934713408
        %v2252 = vunpack.c.0.s8 %v2251
        %v2253 = vlaneseq
        %v2254 = vshrl.u32 %v2253, 7
        %v2255 = vsub.s32 %v2252, %v2254
        %v2256 = vrot.slane %v2248, %v2255
        %v2258 = vunpack.c.l.s4 1934713408
        %v2259 = vunpack.c.0.s8 %v2258
        %v2260 = vlaneseq
        %v2261 = vshrl.u32 %v2260, 7
        %v2262 = vsub.s32 %v2259, %v2261
        %v2263 = vrot.slane %v2249, %v2262
        %v2264 = vcombine.low %v2231, %v2247
        %v2265 = vcombine.high %v2231, %v2247
        %v2267 = vunpack.c.l.s4 1934713408
        %v2268 = vunpack.c.0.s8 %v2267
        %v2269 = vlaneseq
        %v2270 = vshrl.u32 %v2269, 7
        %v2271 = vsub.s32 %v2268, %v2270
        %v2272 = vrot.slane %v2264, %v2271
        %v2274 = vunpack.c.l.s4 1934713408
        %v2275 = vunpack.c.0.s8 %v2274
        %v2276 = vlaneseq
        %v2277 = vshrl.u32 %v2276, 7
        %v2278 = vsub.s32 %v2275, %v2277
        %v2279 = vrot.slane %v2265, %v2278
        %v2280 = vcombine.high %v2256, 0.0
        %v2281 = vcombine.high %v2263, 0.0
        %v2282 = vcombine.high %v2272, 0.0
        %v2283 = vcombine.high %v2279, 0.0
        %v2284 = vcombine.low %v2188, %v2195
        %v2286 = vunpack.c.l.s4 1983009808
        %v2287 = vunpack.c.0.s8 %v2286
        %v2288 = vlaneseq
        %v2289 = vshrl.u32 %v2288, 7
        %v2290 = vsub.s32 %v2287, %v2289
        %v2291 = vrot.slane %v2284, %v2290
        %v2292 = vcombine.low %v2212, %v2213
        %v2294 = vunpack.c.l.s4 1983009808
        %v2295 = vunpack.c.0.s8 %v2294
        %v2296 = vlaneseq
        %v2297 = vshrl.u32 %v2296, 7
        %v2298 = vsub.s32 %v2295, %v2297
        %v2299 = vrot.slane %v2292, %v2298
        %v2300 = vcombine.low %v2204, %v2211
        %v2302 = vunpack.c.l.s4 1983009808
        %v2303 = vunpack.c.0.s8 %v2302
        %v2304 = vlaneseq
        %v2305 = vshrl.u32 %v2304, 7
        %v2306 = vsub.s32 %v2303, %v2305
        %v2307 = vrot.slane %v2300, %v2306
        %v2308 = vcombine.low %v2214, %v2215
        %v2310 = vunpack.c.l.s4 1983009808
        %v2311 = vunpack.c.0.s8 %v2310
        %v2312 = vlaneseq
        %v2313 = vshrl.u32 %v2312, 7
        %v2314 = vsub.s32 %v2311, %v2313
        %v2315 = vrot.slane %v2308, %v2314
        %v2316 = vcombine.low %v2291, %v2299
        %v2317 = vcombine.high %v2291, %v2299
        %v2319 = vunpack.c.l.s4 1934713408
        %v2320 = vunpack.c.0.s8 %v2319
        %v2321 = vlaneseq
        %v2322 = vshrl.u32 %v2321, 7
        %v2323 = vsub.s32 %v2320, %v2322
        %v2324 = vrot.slane %v2316, %v2323
        %v2326 = vunpack.c.l.s4 1934713408
        %v2327 = vunpack.c.0.s8 %v2326
        %v2328 = vlaneseq
        %v2329 = vshrl.u32 %v2328, 7
        %v2330 = vsub.s32 %v2327, %v2329
        %v2331 = vrot.slane %v2317, %v2330
        %v2332 = vcombine.low %v2307, %v2315
        %v2333 = vcombine.high %v2307, %v2315
        %v2335 = vunpack.c.l.s4 1934713408
        %v2336 = vunpack.c.0.s8 %v2335
        %v2337 = vlaneseq
        %v2338 = vshrl.u32 %v2337, 7
        %v2339 = vsub.s32 %v2336, %v2338
        %v2340 = vrot.slane %v2332, %v2339
        %v2342 = vunpack.c.l.s4 1934713408
        %v2343 = vunpack.c.0.s8 %v2342
        %v2344 = vlaneseq
        %v2345 = vshrl.u32 %v2344, 7
        %v2346 = vsub.s32 %v2343, %v2345
        %v2347 = vrot.slane %v2333, %v2346
        %v2348 = vcombine.low %v2324, %v2340
        %v2349 = vcombine.high %v2324, %v2340
        %v2350 = vcombine.low %v2331, %v2347
        %v2351 = vcombine.high %v2331, %v2347
        %v2352 = vcombine.low %v2256, %v2263
        %v2354 = vunpack.c.l.s4 1983009808
        %v2355 = vunpack.c.0.s8 %v2354
        %v2356 = vlaneseq
        %v2357 = vshrl.u32 %v2356, 7
        %v2358 = vsub.s32 %v2355, %v2357
        %v2359 = vrot.slane %v2352, %v2358
        %v2360 = vcombine.low %v2280, %v2281
        %v2362 = vunpack.c.l.s4 1983009808
        %v2363 = vunpack.c.0.s8 %v2362
        %v2364 = vlaneseq
        %v2365 = vshrl.u32 %v2364, 7
        %v2366 = vsub.s32 %v2363, %v2365
        %v2367 = vrot.slane %v2360, %v2366
        %v2368 = vcombine.low %v2272, %v2279
        %v2370 = vunpack.c.l.s4 1983009808
        %v2371 = vunpack.c.0.s8 %v2370
        %v2372 = vlaneseq
        %v2373 = vshrl.u32 %v2372, 7
        %v2374 = vsub.s32 %v2371, %v2373
        %v2375 = vrot.slane %v2368, %v2374
        %v2376 = vcombine.low %v2282, %v2283
        %v2378 = vunpack.c.l.s4 1983009808
        %v2379 = vunpack.c.0.s8 %v2378
        %v2380 = vlaneseq
        %v2381 = vshrl.u32 %v2380, 7
        %v2382 = vsub.s32 %v2379, %v2381
        %v2383 = vrot.slane %v2376, %v2382
        %v2384 = vcombine.low %v2359, %v2367
        %v2385 = vcombine.high %v2359, %v2367
        %v2387 = vunpack.c.l.s4 1934713408
        %v2388 = vunpack.c.0.s8 %v2387
        %v2389 = vlaneseq
        %v2390 = vshrl.u32 %v2389, 7
        %v2391 = vsub.s32 %v2388, %v2390
        %v2392 = vrot.slane %v2384, %v2391
        %v2394 = vunpack.c.l.s4 1934713408
        %v2395 = vunpack.c.0.s8 %v2394
        %v2396 = vlaneseq
        %v2397 = vshrl.u32 %v2396, 7
        %v2398 = vsub.s32 %v2395, %v2397
        %v2399 = vrot.slane %v2385, %v2398
        %v2400 = vcombine.low %v2375, %v2383
        %v2401 = vcombine.high %v2375, %v2383
        %v2403 = vunpack.c.l.s4 1934713408
        %v2404 = vunpack.c.0.s8 %v2403
        %v2405 = vlaneseq
        %v2406 = vshrl.u32 %v2405, 7
        %v2407 = vsub.s32 %v2404, %v2406
        %v2408 = vrot.slane %v2400, %v2407
        %v2410 = vunpack.c.l.s4 1934713408
        %v2411 = vunpack.c.0.s8 %v2410
        %v2412 = vlaneseq
        %v2413 = vshrl.u32 %v2412, 7
        %v2414 = vsub.s32 %v2411, %v2413
        %v2415 = vrot.slane %v2401, %v2414
        %v2416 = vcombine.low %v2392, %v2408
        %v2417 = vcombine.high %v2392, %v2408
        %v2418 = vcombine.low %v2399, %v2415
        %v2419 = vcombine.high %v2399, %v2415
        %2422 = vrot.lane.b32.xlu0 %v2349, 32
        %v2423 = vpop.permute.xlu0 %2422
        %2424 = vrot.lane.b32.xlu0 %v2417, 32
        %v2425 = vpop.permute.xlu0 %2424
        %2430 = vrot.lane.b32.xlu0 %v2350, 64
        %v2431 = vpop.permute.xlu0 %2430
        %2432 = vrot.lane.b32.xlu0 %v2418, 64
        %v2433 = vpop.permute.xlu0 %2432
        %2438 = vrot.lane.b32.xlu0 %v2351, 96
        %v2439 = vpop.permute.xlu0 %2438
        %2440 = vrot.lane.b32.xlu0 %v2419, 96
        %v2441 = vpop.permute.xlu0 %2440
        %v2444 = vsel %vm1665, %v2348, %v2423
        %v2445 = vsel %vm1665, %v2416, %v2425
        %vm2446 = vcmask 523264
        %v2447 = vsel %vm2446, %v2444, %v2431
        %v2448 = vsel %vm2446, %v2445, %v2433
        %vm2449 = vcmask 785408
        %v2450 = vsel %vm2449, %v2447, %v2439
        %v2451 = vsel %vm2449, %v2448, %v2441
        %v2452 = vpack.c.bf16 %v2451, %v2450
        %v2453 = vld [vmem:[#allocation10] sm:$0xf]
        %v2454 = vld [vmem:[#allocation10 + $0x4] sm:$0xf]
        %v2455 = vld [vmem:[#allocation10 + $0x8] sm:$0xf]
        %v2456 = vld [vmem:[#allocation10 + $0xc] sm:$0xf]
        %v2457 = vld [vmem:[#allocation10 + $0x10] sm:$0xf]
        %v2458 = vld [vmem:[#allocation10 + $0x14] sm:$0xf]
        %v2459 = vld [vmem:[#allocation10 + $0x18] sm:$0xf]
        %v2460 = vld [vmem:[#allocation10 + $0x1c] sm:$0xf]
        %v2461 = vld [vmem:[#allocation10 + $0x20] sm:$0xf]
        %v2462 = vld [vmem:[#allocation10 + $0x24] sm:$0xf]
        %v2463 = vld [vmem:[#allocation10 + $0x28] sm:$0xf]
        %v2464 = vld [vmem:[#allocation10 + $0x2c] sm:$0xf]
        %v2465 = vld [vmem:[#allocation10 + $0x30] sm:$0xf]
        %v2466 = vld [vmem:[#allocation10 + $0x34] sm:$0xf]
        %v2467 = vld [vmem:[#allocation10 + $0x38] sm:$0xf]
        %v2468 = vld [vmem:[#allocation10 + $0x3c] sm:$0xf]
        %v2469 = vld [vmem:[%s6] sm:$0x1]
        %v2471 = vlaneseq
        %v2472 = vshrl.u32 %v2471, 7
        %v2473 = vsub.s32 0, %v2472
        %v2474 = vrot.slane %v2469, %v2473
        %v2492 = vunpack.c.l.b16 %v2453
        %v2493 = vunpack.c.l.b16 %v2454
        %v2494 = vunpack.c.l.b16 %v2455
        %v2495 = vunpack.c.l.b16 %v2456
        %v2496 = vunpack.c.l.b16 %v2457
        %v2497 = vunpack.c.l.b16 %v2458
        %v2498 = vunpack.c.l.b16 %v2459
        %v2499 = vunpack.c.l.b16 %v2460
        %v2500 = vunpack.c.l.b16 %v2461
        %v2501 = vunpack.c.l.b16 %v2462
        %v2502 = vunpack.c.l.b16 %v2463
        %v2503 = vunpack.c.l.b16 %v2464
        %v2504 = vunpack.c.l.b16 %v2465
        %v2505 = vunpack.c.l.b16 %v2466
        %v2506 = vunpack.c.l.b16 %v2467
        %v2507 = vunpack.c.l.b16 %v2468
        %v2508 = vpack.c.b16 %v2493, %v2492
        %v2509 = vpack.c.b16 %v2495, %v2494
        %v2510 = vpack.c.b16 %v2497, %v2496
        %v2511 = vpack.c.b16 %v2499, %v2498
        %v2512 = vpack.c.b16 %v2501, %v2500
        %v2513 = vpack.c.b16 %v2503, %v2502
        %v2514 = vpack.c.b16 %v2505, %v2504
        %v2515 = vpack.c.b16 %v2507, %v2506
        %2524 = vmatprep.subr.bf16.mxu0 0
        %2525 = vmatpush1.bf16.msra.mxu0 %v2508
        %2526 = vmatprep.subr.bf16.mxu0 0
        %2527 = vmatpush1.bf16.msra.mxu0 %v2509
        %2528 = vmatprep.subr.bf16.mxu0 0
        %2529 = vmatpush1.bf16.msra.mxu0 %v2510
        %2530 = vmatprep.subr.bf16.mxu0 0
        %2531 = vmatpush1.bf16.msra.mxu0 %v2511
        %2532 = vmatprep.subr.bf16.mxu0 0
        %2533 = vmatpush1.bf16.msra.mxu0 %v2512
        %2534 = vmatprep.subr.bf16.mxu0 0
        %2535 = vmatpush1.bf16.msra.mxu0 %v2513
        %2536 = vmatprep.subr.bf16.mxu0 0
        %2537 = vmatpush1.bf16.msra.mxu0 %v2514
        %2538 = vmatprep.subr.bf16.mxu0 0
        %2539 = vmatpush1.bf16.msra.mxu0 %v2515
        %2540 = vmatprep.subr.bf16.mxu0 0
        %2541 = vmatpush1.bf16.msra.mxu0 0
        %2542 = vmatprep.subr.bf16.mxu0 0
        %2543 = vmatpush1.bf16.msra.mxu0 0
        %2544 = vmatprep.subr.bf16.mxu0 0
        %2545 = vmatpush1.bf16.msra.mxu0 0
        %2546 = vmatprep.subr.bf16.mxu0 0
        %2547 = vmatpush1.bf16.msra.mxu0 0
        %2548 = vmatprep.subr.bf16.mxu0 0
        %2549 = vmatpush1.bf16.msra.mxu0 0
        %2550 = vmatprep.subr.bf16.mxu0 0
        %2551 = vmatpush1.bf16.msra.mxu0 0
        %2552 = vmatprep.subr.bf16.mxu0 0
        %2553 = vmatpush1.bf16.msra.mxu0 0
        %2554 = vmatprep.subr.bf16.mxu0 0
        %2555 = vmatpush1.bf16.msra.mxu0 0
        %2556 = vmatprep.mubr.bf16.mxu0 0
        %2557 = vmatmul.mubr.bf16.gmra.mrb[0].mxu0 %v2452
        %v2558 = vpop.f32.mrb[0].mxu0
        %v2559 = vadd.f32 %v2474, %v2558
        %v2560 = vpop.f32.mrb[0].mxu0
        %v2561 = vpop.f32.mrb[0].mxu0
        %v2562 = vadd.f32 %v2474, %v2561
        %v2563 = vpop.f32.mrb[0].mxu0
        %2564 = vdwg.mxu0
        %v2565 = vadd.f32 %v543, %v2559
        %v2566 = vadd.f32 %v544, %v2562
        %v2567 = vld [vmem:[%s7] sm:$0x1]
        %v2568 = vld [vmem:[%s8] sm:$0x1]
        %2569 = vadd.xlane.f32.xlu0 %v2565
        %v2570 = vpop.xlane.xlu0 %2569
        %2571 = vadd.xlane.f32.xlu0 %v2566
        %v2572 = vpop.xlane.xlu0 %2571
        %v2573 = vmul.f32 %v2565, %v2565
        %v2574 = vmul.f32 %v2566, %v2566
        %2575 = vadd.xlane.f32.xlu0 %v2573
        %v2576 = vpop.xlane.xlu0 %2575
        %2577 = vadd.xlane.f32.xlu0 %v2574
        %v2578 = vpop.xlane.xlu0 %2577
        %v2579 = vmul.f32 %v2570, 0.0078125
        %v2580 = vmul.f32 %v2572, 0.0078125
        %v2581 = vmul.f32 %v2576, 0.0078125
        %v2582 = vmul.f32 %v2578, 0.0078125
        %v2583 = vmul.f32 %v2579, %v2579
        %v2584 = vmul.f32 %v2580, %v2580
        %v2585 = vsub.f32 %v2581, %v2583
        %v2586 = vsub.f32 %v2582, %v2584
        %v2587 = vadd.f32 %v2585, 1e-05
        %v2588 = vadd.f32 %v2586, 1e-05
        %v2589 = vrsqrt.pop %v2587
        %v2590 = vrsqrt.pop %v2588
        %v2591 = vsub.f32 %v2565, %v2579
        %v2592 = vsub.f32 %v2566, %v2580
        %v2593 = vmul.f32 %v2591, %v2589
        %v2594 = vmul.f32 %v2592, %v2590
        %v2596 = vlaneseq
        %v2597 = vshrl.u32 %v2596, 7
        %v2598 = vsub.s32 0, %v2597
        %v2599 = vrot.slane %v2567, %v2598
        %v2601 = vmul.f32 %v2593, %v2599
        %v2602 = vmul.f32 %v2594, %v2599
        %v2604 = vlaneseq
        %v2605 = vshrl.u32 %v2604, 7
        %v2606 = vsub.s32 0, %v2605
        %v2607 = vrot.slane %v2568, %v2606
        %v2609 = vadd.f32 %v2601, %v2607
        %v2610 = vadd.f32 %v2602, %v2607
        %v2611 = vpack.c.bf16 %v2610, %v2609
        %v2612 = vld [vmem:[#allocation11] sm:$0xff]
        %v2613 = vld [vmem:[#allocation11 + $0x8] sm:$0xff]
        %v2614 = vld [vmem:[#allocation11 + $0x10] sm:$0xff]
        %v2615 = vld [vmem:[#allocation11 + $0x18] sm:$0xff]
        %v2616 = vld [vmem:[#allocation11 + $0x20] sm:$0xff]
        %v2617 = vld [vmem:[#allocation11 + $0x28] sm:$0xff]
        %v2618 = vld [vmem:[#allocation11 + $0x30] sm:$0xff]
        %v2619 = vld [vmem:[#allocation11 + $0x38] sm:$0xff]
        %v2620 = vld [vmem:[#allocation11 + $0x40] sm:$0xff]
        %v2621 = vld [vmem:[#allocation11 + $0x48] sm:$0xff]
        %v2622 = vld [vmem:[#allocation11 + $0x50] sm:$0xff]
        %v2623 = vld [vmem:[#allocation11 + $0x58] sm:$0xff]
        %v2624 = vld [vmem:[#allocation11 + $0x60] sm:$0xff]
        %v2625 = vld [vmem:[#allocation11 + $0x68] sm:$0xff]
        %v2626 = vld [vmem:[#allocation11 + $0x70] sm:$0xff]
        %v2627 = vld [vmem:[#allocation11 + $0x78] sm:$0xff]
        %v2628 = vld [vmem:[#allocation11 + $0x80] sm:$0xff]
        %v2629 = vld [vmem:[#allocation11 + $0x88] sm:$0xff]
        %v2630 = vld [vmem:[#allocation11 + $0x90] sm:$0xff]
        %v2631 = vld [vmem:[#allocation11 + $0x98] sm:$0xff]
        %v2632 = vld [vmem:[#allocation11 + $0xa0] sm:$0xff]
        %v2633 = vld [vmem:[#allocation11 + $0xa8] sm:$0xff]
        %v2634 = vld [vmem:[#allocation11 + $0xb0] sm:$0xff]
        %v2635 = vld [vmem:[#allocation11 + $0xb8] sm:$0xff]
        %v2636 = vld [vmem:[#allocation11 + $0xc0] sm:$0xff]
        %v2637 = vld [vmem:[#allocation11 + $0xc8] sm:$0xff]
        %v2638 = vld [vmem:[#allocation11 + $0xd0] sm:$0xff]
        %v2639 = vld [vmem:[#allocation11 + $0xd8] sm:$0xff]
        %v2640 = vld [vmem:[#allocation11 + $0xe0] sm:$0xff]
        %v2641 = vld [vmem:[#allocation11 + $0xe8] sm:$0xff]
        %v2642 = vld [vmem:[#allocation11 + $0xf0] sm:$0xff]
        %v2643 = vld [vmem:[#allocation11 + $0xf8] sm:$0xff]
        %v2644 = vld [vmem:[%s10] sm:$0xf]
        %v2646 = vlaneseq
        %v2647 = vshrl.u32 %v2646, 7
        %v2648 = vsub.s32 0, %v2647
        %v2649 = vrot.slane %v2644, %v2648
        %v2650 = vlaneseq
        %v2651 = vshrl.u32 %v2650, 7
        %v2652 = vsub.s32 1, %v2651
        %v2653 = vrot.slane %v2644, %v2652
        %v2654 = vlaneseq
        %v2655 = vshrl.u32 %v2654, 7
        %v2656 = vsub.s32 2, %v2655
        %v2657 = vrot.slane %v2644, %v2656
        %v2658 = vlaneseq
        %v2659 = vshrl.u32 %v2658, 7
        %v2660 = vsub.s32 3, %v2659
        %v2661 = vrot.slane %v2644, %v2660
        %v2698 = vunpack.c.l.b16 %v2612
        %v2699 = vunpack.c.h.b16 %v2612
        %v2700 = vunpack.c.l.b16 %v2613
        %v2701 = vunpack.c.h.b16 %v2613
        %v2702 = vunpack.c.l.b16 %v2614
        %v2703 = vunpack.c.h.b16 %v2614
        %v2704 = vunpack.c.l.b16 %v2615
        %v2705 = vunpack.c.h.b16 %v2615
        %v2706 = vunpack.c.l.b16 %v2616
        %v2707 = vunpack.c.h.b16 %v2616
        %v2708 = vunpack.c.l.b16 %v2617
        %v2709 = vunpack.c.h.b16 %v2617
        %v2710 = vunpack.c.l.b16 %v2618
        %v2711 = vunpack.c.h.b16 %v2618
        %v2712 = vunpack.c.l.b16 %v2619
        %v2713 = vunpack.c.h.b16 %v2619
        %v2714 = vunpack.c.l.b16 %v2620
        %v2715 = vunpack.c.h.b16 %v2620
        %v2716 = vunpack.c.l.b16 %v2621
        %v2717 = vunpack.c.h.b16 %v2621
        %v2718 = vunpack.c.l.b16 %v2622
        %v2719 = vunpack.c.h.b16 %v2622
        %v2720 = vunpack.c.l.b16 %v2623
        %v2721 = vunpack.c.h.b16 %v2623
        %v2722 = vunpack.c.l.b16 %v2624
        %v2723 = vunpack.c.h.b16 %v2624
        %v2724 = vunpack.c.l.b16 %v2625
        %v2725 = vunpack.c.h.b16 %v2625
        %v2726 = vunpack.c.l.b16 %v2626
        %v2727 = vunpack.c.h.b16 %v2626
        %v2728 = vunpack.c.l.b16 %v2627
        %v2729 = vunpack.c.h.b16 %v2627
        %v2730 = vunpack.c.l.b16 %v2628
        %v2731 = vunpack.c.h.b16 %v2628
        %v2732 = vunpack.c.l.b16 %v2629
        %v2733 = vunpack.c.h.b16 %v2629
        %v2734 = vunpack.c.l.b16 %v2630
        %v2735 = vunpack.c.h.b16 %v2630
        %v2736 = vunpack.c.l.b16 %v2631
        %v2737 = vunpack.c.h.b16 %v2631
        %v2738 = vunpack.c.l.b16 %v2632
        %v2739 = vunpack.c.h.b16 %v2632
        %v2740 = vunpack.c.l.b16 %v2633
        %v2741 = vunpack.c.h.b16 %v2633
        %v2742 = vunpack.c.l.b16 %v2634
        %v2743 = vunpack.c.h.b16 %v2634
        %v2744 = vunpack.c.l.b16 %v2635
        %v2745 = vunpack.c.h.b16 %v2635
        %v2746 = vunpack.c.l.b16 %v2636
        %v2747 = vunpack.c.h.b16 %v2636
        %v2748 = vunpack.c.l.b16 %v2637
        %v2749 = vunpack.c.h.b16 %v2637
        %v2750 = vunpack.c.l.b16 %v2638
        %v2751 = vunpack.c.h.b16 %v2638
        %v2752 = vunpack.c.l.b16 %v2639
        %v2753 = vunpack.c.h.b16 %v2639
        %v2754 = vunpack.c.l.b16 %v2640
        %v2755 = vunpack.c.h.b16 %v2640
        %v2756 = vunpack.c.l.b16 %v2641
        %v2757 = vunpack.c.h.b16 %v2641
        %v2758 = vunpack.c.l.b16 %v2642
        %v2759 = vunpack.c.h.b16 %v2642
        %v2760 = vunpack.c.l.b16 %v2643
        %v2761 = vunpack.c.h.b16 %v2643
        %v2762 = vpack.c.b16 %v2702, %v2698
        %v2763 = vpack.c.b16 %v2703, %v2699
        %v2764 = vpack.c.b16 %v2704, %v2700
        %v2765 = vpack.c.b16 %v2705, %v2701
        %v2766 = vpack.c.b16 %v2710, %v2706
        %v2767 = vpack.c.b16 %v2711, %v2707
        %v2768 = vpack.c.b16 %v2712, %v2708
        %v2769 = vpack.c.b16 %v2713, %v2709
        %v2770 = vpack.c.b16 %v2718, %v2714
        %v2771 = vpack.c.b16 %v2719, %v2715
        %v2772 = vpack.c.b16 %v2720, %v2716
        %v2773 = vpack.c.b16 %v2721, %v2717
        %v2774 = vpack.c.b16 %v2726, %v2722
        %v2775 = vpack.c.b16 %v2727, %v2723
        %v2776 = vpack.c.b16 %v2728, %v2724
        %v2777 = vpack.c.b16 %v2729, %v2725
        %v2778 = vpack.c.b16 %v2734, %v2730
        %v2779 = vpack.c.b16 %v2735, %v2731
        %v2780 = vpack.c.b16 %v2736, %v2732
        %v2781 = vpack.c.b16 %v2737, %v2733
        %v2782 = vpack.c.b16 %v2742, %v2738
        %v2783 = vpack.c.b16 %v2743, %v2739
        %v2784 = vpack.c.b16 %v2744, %v2740
        %v2785 = vpack.c.b16 %v2745, %v2741
        %v2786 = vpack.c.b16 %v2750, %v2746
        %v2787 = vpack.c.b16 %v2751, %v2747
        %v2788 = vpack.c.b16 %v2752, %v2748
        %v2789 = vpack.c.b16 %v2753, %v2749
        %v2790 = vpack.c.b16 %v2758, %v2754
        %v2791 = vpack.c.b16 %v2759, %v2755
        %v2792 = vpack.c.b16 %v2760, %v2756
        %v2793 = vpack.c.b16 %v2761, %v2757
        %2826 = vmatprep.subr.bf16.mxu0 %v2763
        %2827 = vmatpush1.bf16.msra.mxu0 %v2762
        %2828 = vmatprep.subr.bf16.mxu0 %v2767
        %2829 = vmatpush1.bf16.msra.mxu0 %v2766
        %2830 = vmatprep.subr.bf16.mxu0 %v2771
        %2831 = vmatpush1.bf16.msra.mxu0 %v2770
        %2832 = vmatprep.subr.bf16.mxu0 %v2775
        %2833 = vmatpush1.bf16.msra.mxu0 %v2774
        %2834 = vmatprep.subr.bf16.mxu0 %v2779
        %2835 = vmatpush1.bf16.msra.mxu0 %v2778
        %2836 = vmatprep.subr.bf16.mxu0 %v2783
        %2837 = vmatpush1.bf16.msra.mxu0 %v2782
        %2838 = vmatprep.subr.bf16.mxu0 %v2787
        %2839 = vmatpush1.bf16.msra.mxu0 %v2786
        %2840 = vmatprep.subr.bf16.mxu0 %v2791
        %2841 = vmatpush1.bf16.msra.mxu0 %v2790
        %2842 = vmatprep.subr.bf16.mxu0 0
        %2843 = vmatpush1.bf16.msra.mxu0 0
        %2844 = vmatprep.subr.bf16.mxu0 0
        %2845 = vmatpush1.bf16.msra.mxu0 0
        %2846 = vmatprep.subr.bf16.mxu0 0
        %2847 = vmatpush1.bf16.msra.mxu0 0
        %2848 = vmatprep.subr.bf16.mxu0 0
        %2849 = vmatpush1.bf16.msra.mxu0 0
        %2850 = vmatprep.subr.bf16.mxu0 0
        %2851 = vmatpush1.bf16.msra.mxu0 0
        %2852 = vmatprep.subr.bf16.mxu0 0
        %2853 = vmatpush1.bf16.msra.mxu0 0
        %2854 = vmatprep.subr.bf16.mxu0 0
        %2855 = vmatpush1.bf16.msra.mxu0 0
        %2856 = vmatprep.subr.bf16.mxu0 0
        %2857 = vmatpush1.bf16.msra.mxu0 0
        %2858 = vmatprep.mubr.bf16.mxu0 0
        %2859 = vmatmul.mubr.bf16.gmra.mrb[0].mxu0 %v2611
        %v2860 = vpop.f32.mrb[0].mxu0
        %v2861 = vadd.f32 %v2649, %v2860
        %v2862 = vpop.f32.mrb[0].mxu0
        %v2863 = vadd.f32 %v2653, %v2862
        %v2864 = vpop.f32.mrb[0].mxu0
        %v2865 = vadd.f32 %v2649, %v2864
        %v2866 = vpop.f32.mrb[0].mxu0
        %v2867 = vadd.f32 %v2653, %v2866
        %2868 = vdwg.mxu0
        %2869 = vmatprep.subr.bf16.mxu0 %v2765
        %2870 = vmatpush1.bf16.msra.mxu0 %v2764
        %2871 = vmatprep.subr.bf16.mxu0 %v2769
        %2872 = vmatpush1.bf16.msra.mxu0 %v2768
        %2873 = vmatprep.subr.bf16.mxu0 %v2773
        %2874 = vmatpush1.bf16.msra.mxu0 %v2772
        %2875 = vmatprep.subr.bf16.mxu0 %v2777
        %2876 = vmatpush1.bf16.msra.mxu0 %v2776
        %2877 = vmatprep.subr.bf16.mxu0 %v2781
        %2878 = vmatpush1.bf16.msra.mxu0 %v2780
        %2879 = vmatprep.subr.bf16.mxu0 %v2785
        %2880 = vmatpush1.bf16.msra.mxu0 %v2784
        %2881 = vmatprep.subr.bf16.mxu0 %v2789
        %2882 = vmatpush1.bf16.msra.mxu0 %v2788
        %2883 = vmatprep.subr.bf16.mxu0 %v2793
        %2884 = vmatpush1.bf16.msra.mxu0 %v2792
        %2885 = vmatprep.subr.bf16.mxu0 0
        %2886 = vmatpush1.bf16.msra.mxu0 0
        %2887 = vmatprep.subr.bf16.mxu0 0
        %2888 = vmatpush1.bf16.msra.mxu0 0
        %2889 = vmatprep.subr.bf16.mxu0 0
        %2890 = vmatpush1.bf16.msra.mxu0 0
        %2891 = vmatprep.subr.bf16.mxu0 0
        %2892 = vmatpush1.bf16.msra.mxu0 0
        %2893 = vmatprep.subr.bf16.mxu0 0
        %2894 = vmatpush1.bf16.msra.mxu0 0
        %2895 = vmatprep.subr.bf16.mxu0 0
        %2896 = vmatpush1.bf16.msra.mxu0 0
        %2897 = vmatprep.subr.bf16.mxu0 0
        %2898 = vmatpush1.bf16.msra.mxu0 0
        %2899 = vmatprep.subr.bf16.mxu0 0
        %2900 = vmatpush1.bf16.msra.mxu0 0
        %2901 = vmatprep.mubr.bf16.mxu0 0
        %2902 = vmatmul.mubr.bf16.gmra.mrb[0].mxu0 %v2611
        %v2903 = vpop.f32.mrb[0].mxu0
        %v2904 = vadd.f32 %v2657, %v2903
        %v2905 = vpop.f32.mrb[0].mxu0
        %v2906 = vadd.f32 %v2661, %v2905
        %v2907 = vpop.f32.mrb[0].mxu0
        %v2908 = vadd.f32 %v2657, %v2907
        %v2909 = vpop.f32.mrb[0].mxu0
        %v2910 = vadd.f32 %v2661, %v2909
        %2911 = vdwg.mxu0
        %v2912 = vmul.f32 %v2861, 0.5
        %v2913 = vmul.f32 %v2863, 0.5
        %v2914 = vmul.f32 %v2904, 0.5
        %v2915 = vmul.f32 %v2906, 0.5
        %v2916 = vmul.f32 %v2865, 0.5
        %v2917 = vmul.f32 %v2867, 0.5
        %v2918 = vmul.f32 %v2908, 0.5
        %v2919 = vmul.f32 %v2910, 0.5
        %v2920 = vmul.f32 %v2861, 0.044715
        %v2921 = vmul.f32 %v2863, 0.044715
        %v2922 = vmul.f32 %v2904, 0.044715
        %v2923 = vmul.f32 %v2906, 0.044715
        %v2924 = vmul.f32 %v2865, 0.044715
        %v2925 = vmul.f32 %v2867, 0.044715
        %v2926 = vmul.f32 %v2908, 0.044715
        %v2927 = vmul.f32 %v2910, 0.044715
        %v2928 = vmul.f32 %v2920, %v2861
        %v2929 = vmul.f32 %v2921, %v2863
        %v2930 = vmul.f32 %v2922, %v2904
        %v2931 = vmul.f32 %v2923, %v2906
        %v2932 = vmul.f32 %v2924, %v2865
        %v2933 = vmul.f32 %v2925, %v2867
        %v2934 = vmul.f32 %v2926, %v2908
        %v2935 = vmul.f32 %v2927, %v2910
        %v2936 = vmul.f32 %v2928, %v2861
        %v2937 = vmul.f32 %v2929, %v2863
        %v2938 = vmul.f32 %v2930, %v2904
        %v2939 = vmul.f32 %v2931, %v2906
        %v2940 = vmul.f32 %v2932, %v2865
        %v2941 = vmul.f32 %v2933, %v2867
        %v2942 = vmul.f32 %v2934, %v2908
        %v2943 = vmul.f32 %v2935, %v2910
        %v2944 = vadd.f32 %v2861, %v2936
        %v2945 = vadd.f32 %v2863, %v2937
        %v2946 = vadd.f32 %v2904, %v2938
        %v2947 = vadd.f32 %v2906, %v2939
        %v2948 = vadd.f32 %v2865, %v2940
        %v2949 = vadd.f32 %v2867, %v2941
        %v2950 = vadd.f32 %v2908, %v2942
        %v2951 = vadd.f32 %v2910, %v2943
        %v2952 = vmul.f32 %v2944, 0.7978846
        %v2953 = vmul.f32 %v2945, 0.7978846
        %v2954 = vmul.f32 %v2946, 0.7978846
        %v2955 = vmul.f32 %v2947, 0.7978846
        %v2956 = vmul.f32 %v2948, 0.7978846
        %v2957 = vmul.f32 %v2949, 0.7978846
        %v2958 = vmul.f32 %v2950, 0.7978846
        %v2959 = vmul.f32 %v2951, 0.7978846
        %v2960 = vtanh.pop %v2952
        %v2961 = vtanh.pop %v2953
        %v2962 = vtanh.pop %v2954
        %v2963 = vtanh.pop %v2955
        %v2964 = vtanh.pop %v2956
        %v2965 = vtanh.pop %v2957
        %v2966 = vtanh.pop %v2958
        %v2967 = vtanh.pop %v2959
        %v2968 = vadd.f32 %v2960, 1.0
        %v2969 = vadd.f32 %v2961, 1.0
        %v2970 = vadd.f32 %v2962, 1.0
        %v2971 = vadd.f32 %v2963, 1.0
        %v2972 = vadd.f32 %v2964, 1.0
        %v2973 = vadd.f32 %v2965, 1.0
        %v2974 = vadd.f32 %v2966, 1.0
        %v2975 = vadd.f32 %v2967, 1.0
        %v2976 = vmul.f32 %v2912, %v2968
        %v2977 = vmul.f32 %v2913, %v2969
        %v2978 = vmul.f32 %v2914, %v2970
        %v2979 = vmul.f32 %v2915, %v2971
        %v2980 = vmul.f32 %v2916, %v2972
        %v2981 = vmul.f32 %v2917, %v2973
        %v2982 = vmul.f32 %v2918, %v2974
        %v2983 = vmul.f32 %v2919, %v2975
        %v2984 = vpack.c.bf16 %v2980, %v2976
        %v2985 = vpack.c.bf16 %v2981, %v2977
        %v2986 = vpack.c.bf16 %v2982, %v2978
        %v2987 = vpack.c.bf16 %v2983, %v2979
        %v2988 = vld [vmem:[#allocation13] sm:$0xf]
        %v2989 = vld [vmem:[#allocation13 + $0x4] sm:$0xf]
        %v2990 = vld [vmem:[#allocation13 + $0x8] sm:$0xf]
        %v2991 = vld [vmem:[#allocation13 + $0xc] sm:$0xf]
        %v2992 = vld [vmem:[#allocation13 + $0x10] sm:$0xf]
        %v2993 = vld [vmem:[#allocation13 + $0x14] sm:$0xf]
        %v2994 = vld [vmem:[#allocation13 + $0x18] sm:$0xf]
        %v2995 = vld [vmem:[#allocation13 + $0x1c] sm:$0xf]
        %v2996 = vld [vmem:[#allocation13 + $0x20] sm:$0xf]
        %v2997 = vld [vmem:[#allocation13 + $0x24] sm:$0xf]
        %v2998 = vld [vmem:[#allocation13 + $0x28] sm:$0xf]
        %v2999 = vld [vmem:[#allocation13 + $0x2c] sm:$0xf]
        %v3000 = vld [vmem:[#allocation13 + $0x30] sm:$0xf]
        %v3001 = vld [vmem:[#allocation13 + $0x34] sm:$0xf]
        %v3002 = vld [vmem:[#allocation13 + $0x38] sm:$0xf]
        %v3003 = vld [vmem:[#allocation13 + $0x3c] sm:$0xf]
        %v3004 = vld [vmem:[#allocation13 + $0x40] sm:$0xf]
        %v3005 = vld [vmem:[#allocation13 + $0x44] sm:$0xf]
        %v3006 = vld [vmem:[#allocation13 + $0x48] sm:$0xf]
        %v3007 = vld [vmem:[#allocation13 + $0x4c] sm:$0xf]
        %v3008 = vld [vmem:[#allocation13 + $0x50] sm:$0xf]
        %v3009 = vld [vmem:[#allocation13 + $0x54] sm:$0xf]
        %v3010 = vld [vmem:[#allocation13 + $0x58] sm:$0xf]
        %v3011 = vld [vmem:[#allocation13 + $0x5c] sm:$0xf]
        %v3012 = vld [vmem:[#allocation13 + $0x60] sm:$0xf]
        %v3013 = vld [vmem:[#allocation13 + $0x64] sm:$0xf]
        %v3014 = vld [vmem:[#allocation13 + $0x68] sm:$0xf]
        %v3015 = vld [vmem:[#allocation13 + $0x6c] sm:$0xf]
        %v3016 = vld [vmem:[#allocation13 + $0x70] sm:$0xf]
        %v3017 = vld [vmem:[#allocation13 + $0x74] sm:$0xf]
        %v3018 = vld [vmem:[#allocation13 + $0x78] sm:$0xf]
        %v3019 = vld [vmem:[#allocation13 + $0x7c] sm:$0xf]
        %v3020 = vld [vmem:[#allocation13 + $0x80] sm:$0xf]
        %v3021 = vld [vmem:[#allocation13 + $0x84] sm:$0xf]
        %v3022 = vld [vmem:[#allocation13 + $0x88] sm:$0xf]
        %v3023 = vld [vmem:[#allocation13 + $0x8c] sm:$0xf]
        %v3024 = vld [vmem:[#allocation13 + $0x90] sm:$0xf]
        %v3025 = vld [vmem:[#allocation13 + $0x94] sm:$0xf]
        %v3026 = vld [vmem:[#allocation13 + $0x98] sm:$0xf]
        %v3027 = vld [vmem:[#allocation13 + $0x9c] sm:$0xf]
        %v3028 = vld [vmem:[#allocation13 + $0xa0] sm:$0xf]
        %v3029 = vld [vmem:[#allocation13 + $0xa4] sm:$0xf]
        %v3030 = vld [vmem:[#allocation13 + $0xa8] sm:$0xf]
        %v3031 = vld [vmem:[#allocation13 + $0xac] sm:$0xf]
        %v3032 = vld [vmem:[#allocation13 + $0xb0] sm:$0xf]
        %v3033 = vld [vmem:[#allocation13 + $0xb4] sm:$0xf]
        %v3034 = vld [vmem:[#allocation13 + $0xb8] sm:$0xf]
        %v3035 = vld [vmem:[#allocation13 + $0xbc] sm:$0xf]
        %v3036 = vld [vmem:[#allocation13 + $0xc0] sm:$0xf]
        %v3037 = vld [vmem:[#allocation13 + $0xc4] sm:$0xf]
        %v3038 = vld [vmem:[#allocation13 + $0xc8] sm:$0xf]
        %v3039 = vld [vmem:[#allocation13 + $0xcc] sm:$0xf]
        %v3040 = vld [vmem:[#allocation13 + $0xd0] sm:$0xf]
        %v3041 = vld [vmem:[#allocation13 + $0xd4] sm:$0xf]
        %v3042 = vld [vmem:[#allocation13 + $0xd8] sm:$0xf]
        %v3043 = vld [vmem:[#allocation13 + $0xdc] sm:$0xf]
        %v3044 = vld [vmem:[#allocation13 + $0xe0] sm:$0xf]
        %v3045 = vld [vmem:[#allocation13 + $0xe4] sm:$0xf]
        %v3046 = vld [vmem:[#allocation13 + $0xe8] sm:$0xf]
        %v3047 = vld [vmem:[#allocation13 + $0xec] sm:$0xf]
        %v3048 = vld [vmem:[#allocation13 + $0xf0] sm:$0xf]
        %v3049 = vld [vmem:[#allocation13 + $0xf4] sm:$0xf]
        %v3050 = vld [vmem:[#allocation13 + $0xf8] sm:$0xf]
        %v3051 = vld [vmem:[#allocation13 + $0xfc] sm:$0xf]
        %v3052 = vld [vmem:[%s12] sm:$0x1]
        %v3054 = vlaneseq
        %v3055 = vshrl.u32 %v3054, 7
        %v3056 = vsub.s32 0, %v3055
        %v3057 = vrot.slane %v3052, %v3056
        %v3123 = vunpack.c.l.b16 %v2988
        %v3124 = vunpack.c.l.b16 %v2989
        %v3125 = vunpack.c.l.b16 %v2990
        %v3126 = vunpack.c.l.b16 %v2991
        %v3127 = vunpack.c.l.b16 %v2992
        %v3128 = vunpack.c.l.b16 %v2993
        %v3129 = vunpack.c.l.b16 %v2994
        %v3130 = vunpack.c.l.b16 %v2995
        %v3131 = vunpack.c.l.b16 %v2996
        %v3132 = vunpack.c.l.b16 %v2997
        %v3133 = vunpack.c.l.b16 %v2998
        %v3134 = vunpack.c.l.b16 %v2999
        %v3135 = vunpack.c.l.b16 %v3000
        %v3136 = vunpack.c.l.b16 %v3001
        %v3137 = vunpack.c.l.b16 %v3002
        %v3138 = vunpack.c.l.b16 %v3003
        %v3139 = vunpack.c.l.b16 %v3004
        %v3140 = vunpack.c.l.b16 %v3005
        %v3141 = vunpack.c.l.b16 %v3006
        %v3142 = vunpack.c.l.b16 %v3007
        %v3143 = vunpack.c.l.b16 %v3008
        %v3144 = vunpack.c.l.b16 %v3009
        %v3145 = vunpack.c.l.b16 %v3010
        %v3146 = vunpack.c.l.b16 %v3011
        %v3147 = vunpack.c.l.b16 %v3012
        %v3148 = vunpack.c.l.b16 %v3013
        %v3149 = vunpack.c.l.b16 %v3014
        %v3150 = vunpack.c.l.b16 %v3015
        %v3151 = vunpack.c.l.b16 %v3016
        %v3152 = vunpack.c.l.b16 %v3017
        %v3153 = vunpack.c.l.b16 %v3018
        %v3154 = vunpack.c.l.b16 %v3019
        %v3155 = vunpack.c.l.b16 %v3020
        %v3156 = vunpack.c.l.b16 %v3021
        %v3157 = vunpack.c.l.b16 %v3022
        %v3158 = vunpack.c.l.b16 %v3023
        %v3159 = vunpack.c.l.b16 %v3024
        %v3160 = vunpack.c.l.b16 %v3025
        %v3161 = vunpack.c.l.b16 %v3026
        %v3162 = vunpack.c.l.b16 %v3027
        %v3163 = vunpack.c.l.b16 %v3028
        %v3164 = vunpack.c.l.b16 %v3029
        %v3165 = vunpack.c.l.b16 %v3030
        %v3166 = vunpack.c.l.b16 %v3031
        %v3167 = vunpack.c.l.b16 %v3032
        %v3168 = vunpack.c.l.b16 %v3033
        %v3169 = vunpack.c.l.b16 %v3034
        %v3170 = vunpack.c.l.b16 %v3035
        %v3171 = vunpack.c.l.b16 %v3036
        %v3172 = vunpack.c.l.b16 %v3037
        %v3173 = vunpack.c.l.b16 %v3038
        %v3174 = vunpack.c.l.b16 %v3039
        %v3175 = vunpack.c.l.b16 %v3040
        %v3176 = vunpack.c.l.b16 %v3041
        %v3177 = vunpack.c.l.b16 %v3042
        %v3178 = vunpack.c.l.b16 %v3043
        %v3179 = vunpack.c.l.b16 %v3044
        %v3180 = vunpack.c.l.b16 %v3045
        %v3181 = vunpack.c.l.b16 %v3046
        %v3182 = vunpack.c.l.b16 %v3047
        %v3183 = vunpack.c.l.b16 %v3048
        %v3184 = vunpack.c.l.b16 %v3049
        %v3185 = vunpack.c.l.b16 %v3050
        %v3186 = vunpack.c.l.b16 %v3051
        %v3187 = vpack.c.b16 %v3124, %v3123
        %v3188 = vpack.c.b16 %v3126, %v3125
        %v3189 = vpack.c.b16 %v3128, %v3127
        %v3190 = vpack.c.b16 %v3130, %v3129
        %v3191 = vpack.c.b16 %v3132, %v3131
        %v3192 = vpack.c.b16 %v3134, %v3133
        %v3193 = vpack.c.b16 %v3136, %v3135
        %v3194 = vpack.c.b16 %v3138, %v3137
        %v3195 = vpack.c.b16 %v3140, %v3139
        %v3196 = vpack.c.b16 %v3142, %v3141
        %v3197 = vpack.c.b16 %v3144, %v3143
        %v3198 = vpack.c.b16 %v3146, %v3145
        %v3199 = vpack.c.b16 %v3148, %v3147
        %v3200 = vpack.c.b16 %v3150, %v3149
        %v3201 = vpack.c.b16 %v3152, %v3151
        %v3202 = vpack.c.b16 %v3154, %v3153
        %v3203 = vpack.c.b16 %v3156, %v3155
        %v3204 = vpack.c.b16 %v3158, %v3157
        %v3205 = vpack.c.b16 %v3160, %v3159
        %v3206 = vpack.c.b16 %v3162, %v3161
        %v3207 = vpack.c.b16 %v3164, %v3163
        %v3208 = vpack.c.b16 %v3166, %v3165
        %v3209 = vpack.c.b16 %v3168, %v3167
        %v3210 = vpack.c.b16 %v3170, %v3169
        %v3211 = vpack.c.b16 %v3172, %v3171
        %v3212 = vpack.c.b16 %v3174, %v3173
        %v3213 = vpack.c.b16 %v3176, %v3175
        %v3214 = vpack.c.b16 %v3178, %v3177
        %v3215 = vpack.c.b16 %v3180, %v3179
        %v3216 = vpack.c.b16 %v3182, %v3181
        %v3217 = vpack.c.b16 %v3184, %v3183
        %v3218 = vpack.c.b16 %v3186, %v3185
        %3251 = vmatprep.subr.bf16.mxu0 0
        %3252 = vmatpush1.bf16.msra.mxu0 %v3187
        %3253 = vmatprep.subr.bf16.mxu0 0
        %3254 = vmatpush1.bf16.msra.mxu0 %v3188
        %3255 = vmatprep.subr.bf16.mxu0 0
        %3256 = vmatpush1.bf16.msra.mxu0 %v3189
        %3257 = vmatprep.subr.bf16.mxu0 0
        %3258 = vmatpush1.bf16.msra.mxu0 %v3190
        %3259 = vmatprep.subr.bf16.mxu0 0
        %3260 = vmatpush1.bf16.msra.mxu0 %v3191
        %3261 = vmatprep.subr.bf16.mxu0 0
        %3262 = vmatpush1.bf16.msra.mxu0 %v3192
        %3263 = vmatprep.subr.bf16.mxu0 0
        %3264 = vmatpush1.bf16.msra.mxu0 %v3193
        %3265 = vmatprep.subr.bf16.mxu0 0
        %3266 = vmatpush1.bf16.msra.mxu0 %v3194
        %3267 = vmatprep.subr.bf16.mxu0 0
        %3268 = vmatpush1.bf16.msra.mxu0 %v3195
        %3269 = vmatprep.subr.bf16.mxu0 0
        %3270 = vmatpush1.bf16.msra.mxu0 %v3196
        %3271 = vmatprep.subr.bf16.mxu0 0
        %3272 = vmatpush1.bf16.msra.mxu0 %v3197
        %3273 = vmatprep.subr.bf16.mxu0 0
        %3274 = vmatpush1.bf16.msra.mxu0 %v3198
        %3275 = vmatprep.subr.bf16.mxu0 0
        %3276 = vmatpush1.bf16.msra.mxu0 %v3199
        %3277 = vmatprep.subr.bf16.mxu0 0
        %3278 = vmatpush1.bf16.msra.mxu0 %v3200
        %3279 = vmatprep.subr.bf16.mxu0 0
        %3280 = vmatpush1.bf16.msra.mxu0 %v3201
        %3281 = vmatprep.subr.bf16.mxu0 0
        %3282 = vmatpush1.bf16.msra.mxu0 %v3202
        %3283 = vmatprep.mubr.bf16.mxu0 %v2985
        %3284 = vmatmul.mubr.bf16.gmra.mrb[0].mxu0 %v2984
        %v3285 = vpop.f32.mrb[0].mxu0
        %v3286 = vadd.f32 %v3057, %v3285
        %v3287 = vpop.f32.mrb[0].mxu0
        %v3288 = vpop.f32.mrb[0].mxu0
        %v3289 = vadd.f32 %v3057, %v3288
        %v3290 = vpop.f32.mrb[0].mxu0
        %3291 = vdwg.mxu0
        %3292 = vmatprep.subr.bf16.mxu0 0
        %3293 = vmatpush1.bf16.msra.mxu0 %v3203
        %3294 = vmatprep.subr.bf16.mxu0 0
        %3295 = vmatpush1.bf16.msra.mxu0 %v3204
        %3296 = vmatprep.subr.bf16.mxu0 0
        %3297 = vmatpush1.bf16.msra.mxu0 %v3205
        %3298 = vmatprep.subr.bf16.mxu0 0
        %3299 = vmatpush1.bf16.msra.mxu0 %v3206
        %3300 = vmatprep.subr.bf16.mxu0 0
        %3301 = vmatpush1.bf16.msra.mxu0 %v3207
        %3302 = vmatprep.subr.bf16.mxu0 0
        %3303 = vmatpush1.bf16.msra.mxu0 %v3208
        %3304 = vmatprep.subr.bf16.mxu0 0
        %3305 = vmatpush1.bf16.msra.mxu0 %v3209
        %3306 = vmatprep.subr.bf16.mxu0 0
        %3307 = vmatpush1.bf16.msra.mxu0 %v3210
        %3308 = vmatprep.subr.bf16.mxu0 0
        %3309 = vmatpush1.bf16.msra.mxu0 %v3211
        %3310 = vmatprep.subr.bf16.mxu0 0
        %3311 = vmatpush1.bf16.msra.mxu0 %v3212
        %3312 = vmatprep.subr.bf16.mxu0 0
        %3313 = vmatpush1.bf16.msra.mxu0 %v3213
        %3314 = vmatprep.subr.bf16.mxu0 0
        %3315 = vmatpush1.bf16.msra.mxu0 %v3214
        %3316 = vmatprep.subr.bf16.mxu0 0
        %3317 = vmatpush1.bf16.msra.mxu0 %v3215
        %3318 = vmatprep.subr.bf16.mxu0 0
        %3319 = vmatpush1.bf16.msra.mxu0 %v3216
        %3320 = vmatprep.subr.bf16.mxu0 0
        %3321 = vmatpush1.bf16.msra.mxu0 %v3217
        %3322 = vmatprep.subr.bf16.mxu0 0
        %3323 = vmatpush1.bf16.msra.mxu0 %v3218
        %3324 = vmatprep.mubr.bf16.mxu0 %v2987
        %3325 = vmatmul.mubr.bf16.gmra.mrb[0].mxu0 %v2986
        %v3326 = vpop.f32.mrb[0].mxu0
        %v3327 = vadd.f32 %v3286, %v3326
        %v3328 = vpop.f32.mrb[0].mxu0
        %v3329 = vpop.f32.mrb[0].mxu0
        %v3330 = vadd.f32 %v3289, %v3329
        %v3331 = vpop.f32.mrb[0].mxu0
        %3332 = vdwg.mxu0
        %v3333 = vadd.f32 %v2565, %v3327
        %v3334 = vadd.f32 %v2566, %v3330
        %3335 = vst [vmem:[%s541] sm:$0xff] %v3333
        %3336 = vst [vmem:[%s541 + $0x8] sm:$0xff] %v3334
        %s3337 = sand.u32 %s319, 1
        %s3338 = scalar_lea.sflag [#allocation4], %s3337
        %s3339 = sand.u32 %s319, 1
        %s3340 = smul.addr %s3339, 16
        %s3341 = scalar_lea.vmem [#allocation14], %s3340
        // Predicated region
        $region101: #{tpu_custom_call.1} parent=71 // pred_check
          %p3342 = pneg %p329
        $region102: #{tpu_custom_call.1} parent=71 // pred_check_branch
          %3344 = sbr.rel (%p3342) target = $region104
        $region103: #{tpu_custom_call.1} parent=71 // pred_region
          %s3346 = ssub.s32 256, 256
          %3347 = vsyncadd %s3338, %s3346
          %s3348 = smul.addr %s33, 2
          %s3349 = smul.addr %s3348, 128
          %s3350 = scalar_lea.hbm %s13, %s3349
          %s3351 = sshll.u32 %s3341, 4
          %s3352 = int_to_ptr.vmem [resolvable:$true] %s3351
          %3357 = dma.vmem_to_hbm [thread:$0]  %s3352, 256, %s3350, %s3338, 128, 128, 8
        $region104: #{tpu_custom_call.1} parent=71 // pred_fallthru
          _
      $region72: #{tpu_custom_call.1} parent=5 // pred_fallthru
        _
      %p3358 = scmp.le.s32.totalorder 2, %s28
      // Predicated region
      $region105: #{tpu_custom_call.1} parent=5 // pred_check
        %p3359 = pneg %p3358
      $region106: #{tpu_custom_call.1} parent=5 // pred_check_branch
        %3361 = sbr.rel (%p3359) target = $region108
      $region107: #{tpu_custom_call.1} parent=5 // pred_region
        %s3362 = ssub.s32 %s28, 2
        // Predicated region
        $region109: #{tpu_custom_call.1} parent=107 // pred_check
          %p3363 = pneg %p335
        $region110: #{tpu_custom_call.1} parent=107 // pred_check_branch
          %3365 = sbr.rel (%p3363) target = $region112
        $region111: #{tpu_custom_call.1} parent=107 // pred_region
          %s3366 = sand.u32 %s320, 1
          %s3367 = scalar_lea.sflag [#allocation4], %s3366
          %s3368 = sand.u32 %s320, 1
          %s3369 = smul.addr %s3368, 16
          %s3370 = scalar_lea.vmem [#allocation14], %s3369
          %3371 = dma.done %s3367, 256
        $region112: #{tpu_custom_call.1} parent=107 // pred_fallthru
          _
      $region108: #{tpu_custom_call.1} parent=5 // pred_fallthru
        _
    $region6: #{tpu_custom_call.1} parent=1 // loop_footer
      %s32 = sadd.s32 1, %s28
    $region7: #{tpu_custom_call.1} parent=1 // loop_footer_branch
      %27 = sbr.rel target = $region3
    $region8: #{tpu_custom_call.1} parent=1 // loop_exit
      _
    %3372 = vsyncpa [#allocation3], 1
    %s3373 = scalar_lea.sflag [#allocation3], 1
    %3374 = vsyncpa %s3373, 1
    %3375 = vsyncpa [#allocation6], 1
    %3376 = vsyncpa [#allocation9], 1
    %3377 = vsyncpa [#allocation12], 1
    %3378 = vsyncpa [#allocation4], 1
    %s3379 = scalar_lea.sflag [#allocation4], 1
    %3380 = vsyncpa %s3379, 1

</llo_original>
